<compile_context>
chip_gen: v6e
topology: v6e:2x2x1
jax: 0.10.0
libtpu: 0.0.40
codegen_flags: <defaults>
</compile_context>

<pallas_src>
import math
import functools

import jax
import jax.numpy as jnp
from jax.experimental import pallas as pl
from jax.experimental.pallas import tpu as pltpu

# ---- small-shape stand-in for klue/roberta-base (768 hidden / 12 layers / 12 heads) ----
BATCH = 2
SEQ = 8
HIDDEN = 128
NUM_HEADS = 4
HEAD_DIM = HIDDEN // NUM_HEADS
INTERMEDIATE = 256
NUM_LAYERS = 2
VOCAB = 64
MAX_POS = 16
TYPE_VOCAB = 2
NUM_CLASSES = 489            # mirrors nn.Linear(768, 489)
NUM_CLASSES_PAD = 512        # padded to a lane-dense multiple of 128
LN_EPS = 1e-12


# ----------------------------- in-kernel helpers -----------------------------
def _layernorm(x, gamma, beta):
    mean = jnp.mean(x, axis=-1, keepdims=True)
    var = jnp.mean(jnp.square(x - mean), axis=-1, keepdims=True)
    return (x - mean) * jax.lax.rsqrt(var + LN_EPS) * gamma + beta


def _gelu(x):
    # GELU (tanh approximation).  TODO(synk): HF BERT uses erf-GELU; difference is tiny.
    c = math.sqrt(2.0 / math.pi)
    return 0.5 * x * (1.0 + jnp.tanh(c * (x + 0.044715 * x * x * x)))


def _vmem_limit_bytes():
    """~75% of physical VMEM, capped at 100 MiB (v5e/v6e: ~96 MiB, v7x: ~48 MiB)."""
    try:
        cap = pltpu.get_tpu_info().vmem_capacity_bytes
    except Exception:
        cap = 64 * 1024 * 1024   # conservative fallback, safe on every generation
    return int(min(cap * 3 // 4, 100 * 1024 * 1024))


# ----------------------- fused encoder-stack + classifier kernel -----------------------
def _fused_kernel(emb_ref, mask_ref, embln_ref,
                  wqkv_ref, bqkv_ref, wao_ref, wff1_ref, bff1_ref, wff2_ref, vec_ref,
                  wcls_ref, bcls_ref,
                  logits_ref, h_ref, *, batch, seq, num_heads, head_dim):
    """Grid = (layer,).  h_ref is a (B*S, H) VMEM scratch carrying the residual stream."""
    l = pl.program_id(0)
    BS, H = h_ref.shape
    B, S, nH, dH = batch, seq, num_heads, head_dim
    bf16 = jnp.bfloat16

    # Layer 0: fused embedding LayerNorm initializes the resident hidden state.
    @pl.when(l == 0)
    def _init():
        h_ref[...] = _layernorm(emb_ref[...], embln_ref[0:1, :], embln_ref[1:2, :])

    x = h_ref[...]                                            # (B*S, H) f32 residual
    xb = x.astype(bf16)

    # --- merged QKV projection: single lane-dense (B*S,H)@(H,3H) matmul ---
    qkv = jnp.dot(xb, wqkv_ref[0], preferred_element_type=jnp.float32) + bqkv_ref[0]
    q3 = qkv[:, 0:H].reshape(B, S, H)
    k3 = qkv[:, H:2 * H].reshape(B, S, H)
    v3 = qkv[:, 2 * H:3 * H].reshape(B, S, H)

    # --- self-attention (per-head score/PV matmuls are inherently K=dH) ---
    # NOTE: at the toy S=8 the (B,S,S) score tensor only uses 8 of 128 lanes; for real
    # use pad S to a multiple of 128 so softmax/exp lanes are full.
    scale = 1.0 / math.sqrt(dH)
    mask = mask_ref[...]                                      # (B, 1, S) additive key mask
    ctx_heads = []
    for h in range(nH):
        sl = slice(h * dH, (h + 1) * dH)
        qh = q3[:, :, sl].astype(bf16)                        # (B, S, dH)
        kh = k3[:, :, sl].astype(bf16)
        vh = v3[:, :, sl].astype(bf16)
        s = jnp.einsum('bqd,bkd->bqk', qh, kh,
                       preferred_element_type=jnp.float32) * scale     # (B, S, S)
        s = s + mask
        s = s - jnp.max(s, axis=-1, keepdims=True)
        p = jnp.exp(s)
        p = p * pl.reciprocal(jnp.sum(p, axis=-1, keepdims=True), approx=True)
        ctx_heads.append(jnp.einsum('bqk,bkd->bqd', p.astype(bf16), vh,
                                    preferred_element_type=jnp.float32))  # (B, S, dH)
    ctx = jnp.concatenate(ctx_heads, axis=-1).reshape(BS, H)  # merge heads -> (B*S, H)

    vec = vec_ref[0]                                          # (6, H) packed per-layer vectors
    # --- attention output projection (K=H, lane dense) + residual LayerNorm ---
    attn = jnp.dot(ctx.astype(bf16), wao_ref[0],
                   preferred_element_type=jnp.float32) + vec[0:1, :]
    y = _layernorm(x + attn, vec[1:2, :], vec[2:3, :])

    # --- feed-forward ---
    h1 = _gelu(jnp.dot(y.astype(bf16), wff1_ref[0],
                       preferred_element_type=jnp.float32) + bff1_ref[0])   # (B*S, I)
    z = jnp.dot(h1.astype(bf16), wff2_ref[0],
                preferred_element_type=jnp.float32) + vec[3:4, :]
    out = _layernorm(y + z, vec[4:5, :], vec[5:6, :])

    h_ref[...] = out          # residual stream stays resident in VMEM across the layer grid

    # --- last layer only: extract [CLS] rows and run the fused classifier matmul ---
    @pl.when(l == pl.num_programs(0) - 1)
    def _finalize():
        rows = [out[b * S:b * S + 1, :] for b in range(B)]
        cls = rows[0] if B == 1 else jnp.concatenate(rows, axis=0)       # (B, H)
        # Dropout(p=0.5) on [CLS] is identity in eval/inference mode.
        # TODO(synk): training-mode stochastic dropout not replicated.
        logits_ref[...] = jnp.dot(cls.astype(bf16), wcls_ref[...],
                                  preferred_element_type=jnp.float32) + bcls_ref[...]


# ----------------------------- pallas_call wrapper -----------------------------
def encoder_and_classify(emb2d, add_mask, p):
    BS, H = emb2d.shape
    B = add_mask.shape[0]
    S = BS // B
    L = p["w_qkv"].shape[0]
    I = p["w_ff1"].shape[2]
    NH = NUM_HEADS
    DH = H // NH
    C_pad = p["fc_w_pad"].shape[1]

    kern = functools.partial(_fused_kernel, batch=B, seq=S, num_heads=NH, head_dim=DH)

    def resident(shape):      # loaded once, stays in VMEM across the whole layer grid
        return pl.BlockSpec(shape, lambda l, n=len(shape): (0,) * n)

    def per_layer(shape):     # streamed / double-buffered along the (slow) layer axis
        return pl.BlockSpec((1,) + shape, lambda l, n=len(shape): (l,) + (0,) * n)

    in_specs = [
        resident((BS, H)),            # embeddings (consumed at layer 0)
        resident((B, 1, S)),          # additive attention mask
        resident((2, H)),             # embedding LayerNorm gamma/beta
        per_layer((H, 3 * H)),        # merged QKV weight
        per_layer((1, 3 * H)),        # merged QKV bias
        per_layer((H, H)),            # attention output projection
        per_layer((H, I)),            # FFN in
        per_layer((1, I)),            # FFN in bias
        per_layer((I, H)),            # FFN out
        per_layer((6, H)),            # packed H-wide vectors: b_ao, ln1 g/b, b_ff2, ln2 g/b
        resident((H, C_pad)),         # classifier weight (used only at the last layer)
        resident((1, C_pad)),         # classifier bias
    ]

    # CostEstimate for the layer-outermost grid (weights are read once per forward pass).
    flops_layer = (2 * BS * H * 3 * H      # QKV projection
                   + 4 * B * S * S * H     # scores + PV over all heads
                   + 2 * BS * H * H        # attention output projection
                   + 4 * BS * H * I)       # FFN
    flops = L * flops_layer + 2 * B * H * C_pad
    transc = L * (B * NH * S * S + BS * I)
    bytes_acc = (L * (2 * (3 * H * H + H * H + 2 * H * I) + 4 * (6 * H + 3 * H + I))
                 + 4 * BS * H + 4 * B * S + 2 * H * C_pad + 4 * C_pad + 4 * B * C_pad)

    return pl.pallas_call(
        kern,
        out_shape=jax.ShapeDtypeStruct((B, C_pad), jnp.float32),
        grid=(L,),
        in_specs=in_specs,
        out_specs=pl.BlockSpec((B, C_pad), lambda l: (0, 0)),
        scratch_shapes=[pltpu.VMEM((BS, H), jnp.float32)],
        compiler_params=pltpu.CompilerParams(
            dimension_semantics=("arbitrary",),
            vmem_limit_bytes=_vmem_limit_bytes()),
        cost_estimate=pl.CostEstimate(flops=int(flops), transcendentals=int(transc),
                                      bytes_accessed=int(bytes_acc)),
    )(emb2d, add_mask, p["emb_ln"],
      p["w_qkv"], p["b_qkv"], p["w_ao"], p["w_ff1"], p["b_ff1"], p["w_ff2"], p["vec_h"],
      p["fc_w_pad"], p["fc_b_pad"])


# ----------------------------- model forward -----------------------------
def fine_tuning_bert_forward(prep, input_ids, attention_mask, token_type_ids):
    B, S = input_ids.shape
    # Embedding lookups (gathers) are plain-JAX glue; everything downstream is Pallas.
    word = jnp.take(prep["word_emb"], input_ids, axis=0)
    pos = jnp.take(prep["pos_emb"], jnp.arange(S), axis=0)[None, :, :]
    tok = jnp.take(prep["type_emb"], token_type_ids, axis=0)
    emb = (word + pos + tok).astype(jnp.float32).reshape(B * S, HIDDEN)

    # HF-style extended attention mask: (1 - mask) * -10000, broadcast over queries.
    add_mask = ((1.0 - attention_mask.astype(jnp.float32)) * -10000.0)[:, None, :]

    logits_pad = encoder_and_classify(emb, add_mask, prep)      # (B, C_pad)
    return logits_pad[:, :NUM_CLASSES]


# ----------------------------- deterministic parameter init -----------------------------
def init_params(key):
    def dense(k, fan_in, fan_out):
        kw, kb = jax.random.split(k)
        w = jax.random.normal(kw, (fan_in, fan_out), jnp.float32) * 0.02
        b = jax.random.normal(kb, (1, fan_out), jnp.float32) * 0.02
        return w, b

    keys = jax.random.split(key, 4 + NUM_LAYERS)
    params = {
        "word_emb": jax.random.normal(keys[0], (VOCAB, HIDDEN), jnp.float32) * 0.02,
        "pos_emb": jax.random.normal(keys[1], (MAX_POS, HIDDEN), jnp.float32) * 0.02,
        "type_emb": jax.random.normal(keys[2], (TYPE_VOCAB, HIDDEN), jnp.float32) * 0.02,
        "emb_ln_g": jnp.ones((1, HIDDEN), jnp.float32),
        "emb_ln_b": jnp.zeros((1, HIDDEN), jnp.float32),
    }
    layers = []
    for l in range(NUM_LAYERS):
        k = jax.random.split(keys[3 + l], 6)
        wq, bq = dense(k[0], HIDDEN, HIDDEN)
        wk, bk = dense(k[1], HIDDEN, HIDDEN)
        wv, bv = dense(k[2], HIDDEN, HIDDEN)
        wao, bao = dense(k[3], HIDDEN, HIDDEN)
        wff1, bff1 = dense(k[4], HIDDEN, INTERMEDIATE)
        wff2, bff2 = dense(k[5], INTERMEDIATE, HIDDEN)
        layers.append(dict(
            w_q=wq, b_q=bq, w_k=wk, b_k=bk, w_v=wv, b_v=bv,
            w_ao=wao, b_ao=bao,
            ln1_g=jnp.ones((1, HIDDEN), jnp.float32), ln1_b=jnp.zeros((1, HIDDEN), jnp.float32),
            w_ff1=wff1, b_ff1=bff1, w_ff2=wff2, b_ff2=bff2,
            ln2_g=jnp.ones((1, HIDDEN), jnp.float32), ln2_b=jnp.zeros((1, HIDDEN), jnp.float32)))
    params["layers"] = layers
    fc_w, fc_b = dense(keys[3 + NUM_LAYERS], HIDDEN, NUM_CLASSES)
    params["fc_w"], params["fc_b"] = fc_w, fc_b
    return params


def prepare_params(params):
    """Stack per-layer weights along L, merge QKV, pack small vectors, cast matmul weights to bf16."""
    bf16 = jnp.bfloat16

    def stack(name):
        return jnp.stack([lp[name] for lp in params["layers"]], axis=0)

    w_qkv = jnp.concatenate([stack("w_q"), stack("w_k"), stack("w_v")], axis=2)   # (L, H, 3H)
    b_qkv = jnp.concatenate([stack("b_q"), stack("b_k"), stack("b_v")], axis=2)   # (L, 1, 3H)
    vec_h = jnp.concatenate([stack("b_ao"), stack("ln1_g"), stack("ln1_b"),
                             stack("b_ff2"), stack("ln2_g"), stack("ln2_b")], axis=1)  # (L, 6, H)

    return {
        "word_emb": params["word_emb"],
        "pos_emb": params["pos_emb"],
        "type_emb": params["type_emb"],
        "emb_ln": jnp.concatenate([params["emb_ln_g"], params["emb_ln_b"]], axis=0),   # (2, H)
        "w_qkv": w_qkv.astype(bf16),
        "b_qkv": b_qkv,
        "w_ao": stack("w_ao").astype(bf16),
        "w_ff1": stack("w_ff1").astype(bf16),
        "b_ff1": stack("b_ff1"),
        "w_ff2": stack("w_ff2").astype(bf16),
        "vec_h": vec_h,
        "fc_w_pad": jnp.pad(params["fc_w"],
                            ((0, 0), (0, NUM_CLASSES_PAD - NUM_CLASSES))).astype(bf16),
        "fc_b_pad": jnp.pad(params["fc_b"],
                            ((0, 0), (0, NUM_CLASSES_PAD - NUM_CLASSES))),
    }


# ----------------------------- main -----------------------------
if __name__ == "__main__":
    key = jax.random.PRNGKey(0)
    k_param, k_ids = jax.random.split(key)

    params = init_params(k_param)
    prep = prepare_params(params)

    input_ids = jax.random.randint(k_ids, (BATCH, SEQ), 0, VOCAB, dtype=jnp.int32)
    attention_mask = jnp.ones((BATCH, SEQ), jnp.int32).at[1, SEQ - 2:].set(0)
    token_type_ids = jnp.zeros((BATCH, SEQ), jnp.int32)

    forward = jax.jit(fine_tuning_bert_forward)
    logits = forward(prep, input_ids, attention_mask, token_type_ids)
    logits = jax.block_until_ready(logits)

    assert logits.shape == (BATCH, NUM_CLASSES) and logits.dtype == jnp.float32
    print("KERNEL_OK")
</pallas_src>

<mosaic_0001>
module attributes {stable_mosaic.version = 11 : i64} {
  func.func @_fused_kernel(%arg0: i32, %arg1: memref<16x128xf32, #tpu.memory_space<vmem>>, %arg2: memref<2x1x8xf32, #tpu.memory_space<vmem>>, %arg3: memref<2x128xf32, #tpu.memory_space<vmem>>, %arg4: memref<1x128x384xbf16, #tpu.memory_space<vmem>>, %arg5: memref<1x1x384xf32, #tpu.memory_space<vmem>>, %arg6: memref<1x128x128xbf16, #tpu.memory_space<vmem>>, %arg7: memref<1x128x256xbf16, #tpu.memory_space<vmem>>, %arg8: memref<1x1x256xf32, #tpu.memory_space<vmem>>, %arg9: memref<1x256x128xbf16, #tpu.memory_space<vmem>>, %arg10: memref<1x6x128xf32, #tpu.memory_space<vmem>>, %arg11: memref<128x512xbf16, #tpu.memory_space<vmem>>, %arg12: memref<1x512xf32, #tpu.memory_space<vmem>>, %arg13: memref<2x512xf32, #tpu.memory_space<vmem>>, %arg14: memref<16x128xf32, #tpu.memory_space<vmem>>) attributes {dimension_semantics = [#tpu.dimension_semantics<arbitrary>], iteration_bounds = array<i64: 2>, scalar_prefetch = 0 : i64, scratch_operands = 1 : i64, tpu.core_type = #tpu.core_type<tc>, window_params = [{pipeline_mode = #tpu.pipeline_mode<synchronous>, transform_indices = @transform_0, window_bounds = array<i64: 16, 128>}, {pipeline_mode = #tpu.pipeline_mode<synchronous>, transform_indices = @transform_1, window_bounds = array<i64: 2, 1, 8>}, {pipeline_mode = #tpu.pipeline_mode<synchronous>, transform_indices = @transform_2, window_bounds = array<i64: 2, 128>}, {transform_indices = @transform_3, window_bounds = array<i64: 1, 128, 384>}, {transform_indices = @transform_4, window_bounds = array<i64: 1, 1, 384>}, {transform_indices = @transform_5, window_bounds = array<i64: 1, 128, 128>}, {transform_indices = @transform_6, window_bounds = array<i64: 1, 128, 256>}, {transform_indices = @transform_7, window_bounds = array<i64: 1, 1, 256>}, {transform_indices = @transform_8, window_bounds = array<i64: 1, 256, 128>}, {transform_indices = @transform_9, window_bounds = array<i64: 1, 6, 128>}, {pipeline_mode = #tpu.pipeline_mode<synchronous>, transform_indices = @transform_10, window_bounds = array<i64: 128, 512>}, {pipeline_mode = #tpu.pipeline_mode<synchronous>, transform_indices = @transform_11, window_bounds = array<i64: 1, 512>}, {pipeline_mode = #tpu.pipeline_mode<synchronous>, transform_indices = @transform_12, window_bounds = array<i64: 2, 512>}]} {
    %c0_i32 = arith.constant 0 : i32
    %0 = arith.cmpi eq, %arg0, %c0_i32 : i32
    %1 = arith.extui %0 : i1 to i32
    %c0_i32_0 = arith.constant 0 : i32
    %2 = arith.cmpi ne, %1, %c0_i32_0 : i32
    scf.if %2 {
      %c0_66 = arith.constant 0 : index
      %c0_67 = arith.constant 0 : index
      %204 = vector.load %arg1[%c0_66, %c0_67] : memref<16x128xf32, #tpu.memory_space<vmem>>, vector<16x128xf32>
      %c0_68 = arith.constant 0 : index
      %c0_69 = arith.constant 0 : index
      %205 = vector.load %arg3[%c0_68, %c0_69] : memref<2x128xf32, #tpu.memory_space<vmem>>, vector<1x128xf32>
      %c1 = arith.constant 1 : index
      %c0_70 = arith.constant 0 : index
      %206 = vector.load %arg3[%c1, %c0_70] : memref<2x128xf32, #tpu.memory_space<vmem>>, vector<1x128xf32>
      %cst_71 = arith.constant dense<0.000000e+00> : vector<16xf32>
      %207 = vector.multi_reduction <add>, %204, %cst_71 [1] : vector<16x128xf32> to vector<16xf32>
      %208 = vector.shape_cast %207 : vector<16xf32> to vector<16x1xf32>
      %cst_72 = arith.constant 1.280000e+02 : f32
      %209 = vector.broadcast %cst_72 : f32 to vector<16x1xf32>
      %210 = arith.divf %208, %209 : vector<16x1xf32>
      %211 = vector.broadcast %210 : vector<16x1xf32> to vector<16x128xf32>
      %212 = arith.subf %204, %211 : vector<16x128xf32>
      %213 = arith.mulf %212, %212 : vector<16x128xf32>
      %cst_73 = arith.constant dense<0.000000e+00> : vector<16xf32>
      %214 = vector.multi_reduction <add>, %213, %cst_73 [1] : vector<16x128xf32> to vector<16xf32>
      %215 = vector.shape_cast %214 : vector<16xf32> to vector<16x1xf32>
      %cst_74 = arith.constant 1.280000e+02 : f32
      %216 = vector.broadcast %cst_74 : f32 to vector<16x1xf32>
      %217 = arith.divf %215, %216 : vector<16x1xf32>
      %218 = vector.broadcast %210 : vector<16x1xf32> to vector<16x128xf32>
      %219 = arith.subf %204, %218 : vector<16x128xf32>
      %cst_75 = arith.constant 9.99999996E-13 : f32
      %220 = vector.broadcast %cst_75 : f32 to vector<16x1xf32>
      %221 = arith.addf %217, %220 : vector<16x1xf32>
      %222 = math.rsqrt %221 : vector<16x1xf32>
      %223 = vector.broadcast %222 : vector<16x1xf32> to vector<16x128xf32>
      %224 = arith.mulf %219, %223 : vector<16x128xf32>
      %225 = vector.broadcast %205 : vector<1x128xf32> to vector<16x128xf32>
      %226 = arith.mulf %224, %225 : vector<16x128xf32>
      %227 = vector.broadcast %206 : vector<1x128xf32> to vector<16x128xf32>
      %228 = arith.addf %226, %227 : vector<16x128xf32>
      %c0_76 = arith.constant 0 : index
      %c0_77 = arith.constant 0 : index
      %229 = vector.load %arg14[%c0_76, %c0_77] : memref<16x128xf32, #tpu.memory_space<vmem>>, vector<16x128xf32>
      tpu.vector_store %arg14[%c0_76, %c0_77], %228 {strides = array<i32>} : memref<16x128xf32, #tpu.memory_space<vmem>>, vector<16x128xf32>,
    } else {
    }
    %c0 = arith.constant 0 : index
    %c0_1 = arith.constant 0 : index
    %3 = vector.load %arg14[%c0, %c0_1] : memref<16x128xf32, #tpu.memory_space<vmem>>, vector<16x128xf32>
    %4 = arith.truncf %3 : vector<16x128xf32> to vector<16x128xbf16>
    %c0_2 = arith.constant 0 : index
    %c0_3 = arith.constant 0 : index
    %c0_4 = arith.constant 0 : index
    %5 = vector.load %arg4[%c0_2, %c0_3, %c0_4] : memref<1x128x384xbf16, #tpu.memory_space<vmem>>, vector<1x128x384xbf16>
    %6 = vector.shape_cast %5 : vector<1x128x384xbf16> to vector<128x384xbf16>
    %cst = arith.constant dense<0.000000e+00> : vector<16x384xf32>
    %7 = tpu.matmul %4, %6, %cst {dimension_numbers = #tpu.dot_dimension_numbers<[1], [0], [0], [1], [0, 0, 1, 1], [], []>} : vector<16x128xbf16>, vector<128x384xbf16>, vector<16x384xf32> -> vector<16x384xf32>
    %c0_5 = arith.constant 0 : index
    %c0_6 = arith.constant 0 : index
    %c0_7 = arith.constant 0 : index
    %8 = vector.load %arg5[%c0_5, %c0_6, %c0_7] : memref<1x1x384xf32, #tpu.memory_space<vmem>>, vector<1x1x384xf32>
    %9 = vector.shape_cast %8 : vector<1x1x384xf32> to vector<1x384xf32>
    %10 = vector.broadcast %9 : vector<1x384xf32> to vector<16x384xf32>
    %11 = arith.addf %7, %10 : vector<16x384xf32>
    %12 = vector.extract_strided_slice %11 {offsets = [0, 0], sizes = [16, 128], strides = [1, 1]} : vector<16x384xf32> to vector<16x128xf32>
    %13 = vector.shape_cast %12 : vector<16x128xf32> to vector<2x8x128xf32>
    %14 = vector.extract_strided_slice %11 {offsets = [0, 128], sizes = [16, 128], strides = [1, 1]} : vector<16x384xf32> to vector<16x128xf32>
    %15 = vector.shape_cast %14 : vector<16x128xf32> to vector<2x8x128xf32>
    %16 = vector.extract_strided_slice %11 {offsets = [0, 256], sizes = [16, 128], strides = [1, 1]} : vector<16x384xf32> to vector<16x128xf32>
    %17 = vector.shape_cast %16 : vector<16x128xf32> to vector<2x8x128xf32>
    %c0_8 = arith.constant 0 : index
    %c0_9 = arith.constant 0 : index
    %c0_10 = arith.constant 0 : index
    %18 = vector.load %arg2[%c0_8, %c0_9, %c0_10] : memref<2x1x8xf32, #tpu.memory_space<vmem>>, vector<2x1x8xf32>
    %19 = vector.extract_strided_slice %13 {offsets = [0, 0, 0], sizes = [2, 8, 32], strides = [1, 1, 1]} : vector<2x8x128xf32> to vector<2x8x32xf32>
    %20 = arith.truncf %19 : vector<2x8x32xf32> to vector<2x8x32xbf16>
    %21 = vector.extract_strided_slice %15 {offsets = [0, 0, 0], sizes = [2, 8, 32], strides = [1, 1, 1]} : vector<2x8x128xf32> to vector<2x8x32xf32>
    %22 = arith.truncf %21 : vector<2x8x32xf32> to vector<2x8x32xbf16>
    %23 = vector.extract_strided_slice %17 {offsets = [0, 0, 0], sizes = [2, 8, 32], strides = [1, 1, 1]} : vector<2x8x128xf32> to vector<2x8x32xf32>
    %24 = arith.truncf %23 : vector<2x8x32xf32> to vector<2x8x32xbf16>
    "tpu.trace_start"() <{level = 10 : i32, message = "bqd,bkd->bqk"}> : () -> ()
    %cst_11 = arith.constant dense<0.000000e+00> : vector<2x8x8xf32>
    %25 = tpu.matmul %20, %22, %cst_11 {dimension_numbers = #tpu.dot_dimension_numbers<[2], [2], [1], [1], [0, 0, 0, 1, 1, 1], [0], [0]>} : vector<2x8x32xbf16>, vector<2x8x32xbf16>, vector<2x8x8xf32> -> vector<2x8x8xf32>
    "tpu.trace_stop"() : () -> ()
    %cst_12 = arith.constant 0.176776692 : f32
    %26 = vector.broadcast %cst_12 : f32 to vector<2x8x8xf32>
    %27 = arith.mulf %25, %26 : vector<2x8x8xf32>
    %28 = vector.broadcast %18 : vector<2x1x8xf32> to vector<2x8x8xf32>
    %29 = arith.addf %27, %28 : vector<2x8x8xf32>
    %cst_13 = arith.constant dense<0xFF800000> : vector<2x8xf32>
    %30 = vector.multi_reduction <maximumf>, %29, %cst_13 [2] : vector<2x8x8xf32> to vector<2x8xf32>
    %31 = vector.shape_cast %30 : vector<2x8xf32> to vector<2x8x1xf32>
    %32 = vector.broadcast %31 : vector<2x8x1xf32> to vector<2x8x8xf32>
    %33 = arith.subf %29, %32 : vector<2x8x8xf32>
    %34 = math.exp %33 : vector<2x8x8xf32>
    %cst_14 = arith.constant dense<0.000000e+00> : vector<2x8xf32>
    %35 = vector.multi_reduction <add>, %34, %cst_14 [2] : vector<2x8x8xf32> to vector<2x8xf32>
    %36 = vector.shape_cast %35 : vector<2x8xf32> to vector<2x8x1xf32>
    %37 = tpu.reciprocal %36 {approx = true} : vector<2x8x1xf32> -> vector<2x8x1xf32>
    %38 = vector.broadcast %37 : vector<2x8x1xf32> to vector<2x8x8xf32>
    %39 = arith.mulf %34, %38 : vector<2x8x8xf32>
    %40 = arith.truncf %39 : vector<2x8x8xf32> to vector<2x8x8xbf16>
    "tpu.trace_start"() <{level = 10 : i32, message = "bqk,bkd->bqd"}> : () -> ()
    %cst_15 = arith.constant dense<0.000000e+00> : vector<2x8x32xf32>
    %41 = tpu.matmul %40, %24, %cst_15 {dimension_numbers = #tpu.dot_dimension_numbers<[2], [1], [1], [2], [0, 0, 0, 1, 1, 2], [0], [0]>} : vector<2x8x8xbf16>, vector<2x8x32xbf16>, vector<2x8x32xf32> -> vector<2x8x32xf32>
    "tpu.trace_stop"() : () -> ()
    %42 = vector.extract_strided_slice %13 {offsets = [0, 0, 32], sizes = [2, 8, 32], strides = [1, 1, 1]} : vector<2x8x128xf32> to vector<2x8x32xf32>
    %43 = arith.truncf %42 : vector<2x8x32xf32> to vector<2x8x32xbf16>
    %44 = vector.extract_strided_slice %15 {offsets = [0, 0, 32], sizes = [2, 8, 32], strides = [1, 1, 1]} : vector<2x8x128xf32> to vector<2x8x32xf32>
    %45 = arith.truncf %44 : vector<2x8x32xf32> to vector<2x8x32xbf16>
    %46 = vector.extract_strided_slice %17 {offsets = [0, 0, 32], sizes = [2, 8, 32], strides = [1, 1, 1]} : vector<2x8x128xf32> to vector<2x8x32xf32>
    %47 = arith.truncf %46 : vector<2x8x32xf32> to vector<2x8x32xbf16>
    "tpu.trace_start"() <{level = 10 : i32, message = "bqd,bkd->bqk"}> : () -> ()
    %cst_16 = arith.constant dense<0.000000e+00> : vector<2x8x8xf32>
    %48 = tpu.matmul %43, %45, %cst_16 {dimension_numbers = #tpu.dot_dimension_numbers<[2], [2], [1], [1], [0, 0, 0, 1, 1, 1], [0], [0]>} : vector<2x8x32xbf16>, vector<2x8x32xbf16>, vector<2x8x8xf32> -> vector<2x8x8xf32>
    "tpu.trace_stop"() : () -> ()
    %cst_17 = arith.constant 0.176776692 : f32
    %49 = vector.broadcast %cst_17 : f32 to vector<2x8x8xf32>
    %50 = arith.mulf %48, %49 : vector<2x8x8xf32>
    %51 = vector.broadcast %18 : vector<2x1x8xf32> to vector<2x8x8xf32>
    %52 = arith.addf %50, %51 : vector<2x8x8xf32>
    %cst_18 = arith.constant dense<0xFF800000> : vector<2x8xf32>
    %53 = vector.multi_reduction <maximumf>, %52, %cst_18 [2] : vector<2x8x8xf32> to vector<2x8xf32>
    %54 = vector.shape_cast %53 : vector<2x8xf32> to vector<2x8x1xf32>
    %55 = vector.broadcast %54 : vector<2x8x1xf32> to vector<2x8x8xf32>
    %56 = arith.subf %52, %55 : vector<2x8x8xf32>
    %57 = math.exp %56 : vector<2x8x8xf32>
    %cst_19 = arith.constant dense<0.000000e+00> : vector<2x8xf32>
    %58 = vector.multi_reduction <add>, %57, %cst_19 [2] : vector<2x8x8xf32> to vector<2x8xf32>
    %59 = vector.shape_cast %58 : vector<2x8xf32> to vector<2x8x1xf32>
    %60 = tpu.reciprocal %59 {approx = true} : vector<2x8x1xf32> -> vector<2x8x1xf32>
    %61 = vector.broadcast %60 : vector<2x8x1xf32> to vector<2x8x8xf32>
    %62 = arith.mulf %57, %61 : vector<2x8x8xf32>
    %63 = arith.truncf %62 : vector<2x8x8xf32> to vector<2x8x8xbf16>
    "tpu.trace_start"() <{level = 10 : i32, message = "bqk,bkd->bqd"}> : () -> ()
    %cst_20 = arith.constant dense<0.000000e+00> : vector<2x8x32xf32>
    %64 = tpu.matmul %63, %47, %cst_20 {dimension_numbers = #tpu.dot_dimension_numbers<[2], [1], [1], [2], [0, 0, 0, 1, 1, 2], [0], [0]>} : vector<2x8x8xbf16>, vector<2x8x32xbf16>, vector<2x8x32xf32> -> vector<2x8x32xf32>
    "tpu.trace_stop"() : () -> ()
    %65 = vector.extract_strided_slice %13 {offsets = [0, 0, 64], sizes = [2, 8, 32], strides = [1, 1, 1]} : vector<2x8x128xf32> to vector<2x8x32xf32>
    %66 = arith.truncf %65 : vector<2x8x32xf32> to vector<2x8x32xbf16>
    %67 = vector.extract_strided_slice %15 {offsets = [0, 0, 64], sizes = [2, 8, 32], strides = [1, 1, 1]} : vector<2x8x128xf32> to vector<2x8x32xf32>
    %68 = arith.truncf %67 : vector<2x8x32xf32> to vector<2x8x32xbf16>
    %69 = vector.extract_strided_slice %17 {offsets = [0, 0, 64], sizes = [2, 8, 32], strides = [1, 1, 1]} : vector<2x8x128xf32> to vector<2x8x32xf32>
    %70 = arith.truncf %69 : vector<2x8x32xf32> to vector<2x8x32xbf16>
    "tpu.trace_start"() <{level = 10 : i32, message = "bqd,bkd->bqk"}> : () -> ()
    %cst_21 = arith.constant dense<0.000000e+00> : vector<2x8x8xf32>
    %71 = tpu.matmul %66, %68, %cst_21 {dimension_numbers = #tpu.dot_dimension_numbers<[2], [2], [1], [1], [0, 0, 0, 1, 1, 1], [0], [0]>} : vector<2x8x32xbf16>, vector<2x8x32xbf16>, vector<2x8x8xf32> -> vector<2x8x8xf32>
    "tpu.trace_stop"() : () -> ()
    %cst_22 = arith.constant 0.176776692 : f32
    %72 = vector.broadcast %cst_22 : f32 to vector<2x8x8xf32>
    %73 = arith.mulf %71, %72 : vector<2x8x8xf32>
    %74 = vector.broadcast %18 : vector<2x1x8xf32> to vector<2x8x8xf32>
    %75 = arith.addf %73, %74 : vector<2x8x8xf32>
    %cst_23 = arith.constant dense<0xFF800000> : vector<2x8xf32>
    %76 = vector.multi_reduction <maximumf>, %75, %cst_23 [2] : vector<2x8x8xf32> to vector<2x8xf32>
    %77 = vector.shape_cast %76 : vector<2x8xf32> to vector<2x8x1xf32>
    %78 = vector.broadcast %77 : vector<2x8x1xf32> to vector<2x8x8xf32>
    %79 = arith.subf %75, %78 : vector<2x8x8xf32>
    %80 = math.exp %79 : vector<2x8x8xf32>
    %cst_24 = arith.constant dense<0.000000e+00> : vector<2x8xf32>
    %81 = vector.multi_reduction <add>, %80, %cst_24 [2] : vector<2x8x8xf32> to vector<2x8xf32>
    %82 = vector.shape_cast %81 : vector<2x8xf32> to vector<2x8x1xf32>
    %83 = tpu.reciprocal %82 {approx = true} : vector<2x8x1xf32> -> vector<2x8x1xf32>
    %84 = vector.broadcast %83 : vector<2x8x1xf32> to vector<2x8x8xf32>
    %85 = arith.mulf %80, %84 : vector<2x8x8xf32>
    %86 = arith.truncf %85 : vector<2x8x8xf32> to vector<2x8x8xbf16>
    "tpu.trace_start"() <{level = 10 : i32, message = "bqk,bkd->bqd"}> : () -> ()
    %cst_25 = arith.constant dense<0.000000e+00> : vector<2x8x32xf32>
    %87 = tpu.matmul %86, %70, %cst_25 {dimension_numbers = #tpu.dot_dimension_numbers<[2], [1], [1], [2], [0, 0, 0, 1, 1, 2], [0], [0]>} : vector<2x8x8xbf16>, vector<2x8x32xbf16>, vector<2x8x32xf32> -> vector<2x8x32xf32>
    "tpu.trace_stop"() : () -> ()
    %88 = vector.extract_strided_slice %13 {offsets = [0, 0, 96], sizes = [2, 8, 32], strides = [1, 1, 1]} : vector<2x8x128xf32> to vector<2x8x32xf32>
    %89 = arith.truncf %88 : vector<2x8x32xf32> to vector<2x8x32xbf16>
    %90 = vector.extract_strided_slice %15 {offsets = [0, 0, 96], sizes = [2, 8, 32], strides = [1, 1, 1]} : vector<2x8x128xf32> to vector<2x8x32xf32>
    %91 = arith.truncf %90 : vector<2x8x32xf32> to vector<2x8x32xbf16>
    %92 = vector.extract_strided_slice %17 {offsets = [0, 0, 96], sizes = [2, 8, 32], strides = [1, 1, 1]} : vector<2x8x128xf32> to vector<2x8x32xf32>
    %93 = arith.truncf %92 : vector<2x8x32xf32> to vector<2x8x32xbf16>
    "tpu.trace_start"() <{level = 10 : i32, message = "bqd,bkd->bqk"}> : () -> ()
    %cst_26 = arith.constant dense<0.000000e+00> : vector<2x8x8xf32>
    %94 = tpu.matmul %89, %91, %cst_26 {dimension_numbers = #tpu.dot_dimension_numbers<[2], [2], [1], [1], [0, 0, 0, 1, 1, 1], [0], [0]>} : vector<2x8x32xbf16>, vector<2x8x32xbf16>, vector<2x8x8xf32> -> vector<2x8x8xf32>
    "tpu.trace_stop"() : () -> ()
    %cst_27 = arith.constant 0.176776692 : f32
    %95 = vector.broadcast %cst_27 : f32 to vector<2x8x8xf32>
    %96 = arith.mulf %94, %95 : vector<2x8x8xf32>
    %97 = vector.broadcast %18 : vector<2x1x8xf32> to vector<2x8x8xf32>
    %98 = arith.addf %96, %97 : vector<2x8x8xf32>
    %cst_28 = arith.constant dense<0xFF800000> : vector<2x8xf32>
    %99 = vector.multi_reduction <maximumf>, %98, %cst_28 [2] : vector<2x8x8xf32> to vector<2x8xf32>
    %100 = vector.shape_cast %99 : vector<2x8xf32> to vector<2x8x1xf32>
    %101 = vector.broadcast %100 : vector<2x8x1xf32> to vector<2x8x8xf32>
    %102 = arith.subf %98, %101 : vector<2x8x8xf32>
    %103 = math.exp %102 : vector<2x8x8xf32>
    %cst_29 = arith.constant dense<0.000000e+00> : vector<2x8xf32>
    %104 = vector.multi_reduction <add>, %103, %cst_29 [2] : vector<2x8x8xf32> to vector<2x8xf32>
    %105 = vector.shape_cast %104 : vector<2x8xf32> to vector<2x8x1xf32>
    %106 = tpu.reciprocal %105 {approx = true} : vector<2x8x1xf32> -> vector<2x8x1xf32>
    %107 = vector.broadcast %106 : vector<2x8x1xf32> to vector<2x8x8xf32>
    %108 = arith.mulf %103, %107 : vector<2x8x8xf32>
    %109 = arith.truncf %108 : vector<2x8x8xf32> to vector<2x8x8xbf16>
    "tpu.trace_start"() <{level = 10 : i32, message = "bqk,bkd->bqd"}> : () -> ()
    %cst_30 = arith.constant dense<0.000000e+00> : vector<2x8x32xf32>
    %110 = tpu.matmul %109, %93, %cst_30 {dimension_numbers = #tpu.dot_dimension_numbers<[2], [1], [1], [2], [0, 0, 0, 1, 1, 2], [0], [0]>} : vector<2x8x8xbf16>, vector<2x8x32xbf16>, vector<2x8x32xf32> -> vector<2x8x32xf32>
    "tpu.trace_stop"() : () -> ()
    %111 = tpu.concatenate %41, %64, %87, %110 in 2 : vector<2x8x32xf32>, vector<2x8x32xf32>, vector<2x8x32xf32>, vector<2x8x32xf32> -> vector<2x8x128xf32>
    %112 = vector.shape_cast %111 : vector<2x8x128xf32> to vector<16x128xf32>
    %c0_31 = arith.constant 0 : index
    %c0_32 = arith.constant 0 : index
    %c0_33 = arith.constant 0 : index
    %113 = vector.load %arg10[%c0_31, %c0_32, %c0_33] : memref<1x6x128xf32, #tpu.memory_space<vmem>>, vector<1x6x128xf32>
    %114 = vector.shape_cast %113 : vector<1x6x128xf32> to vector<6x128xf32>
    %115 = arith.truncf %112 : vector<16x128xf32> to vector<16x128xbf16>
    %c0_34 = arith.constant 0 : index
    %c0_35 = arith.constant 0 : index
    %c0_36 = arith.constant 0 : index
    %116 = vector.load %arg6[%c0_34, %c0_35, %c0_36] : memref<1x128x128xbf16, #tpu.memory_space<vmem>>, vector<1x128x128xbf16>
    %117 = vector.shape_cast %116 : vector<1x128x128xbf16> to vector<128x128xbf16>
    %cst_37 = arith.constant dense<0.000000e+00> : vector<16x128xf32>
    %118 = tpu.matmul %115, %117, %cst_37 {dimension_numbers = #tpu.dot_dimension_numbers<[1], [0], [0], [1], [0, 0, 1, 1], [], []>} : vector<16x128xbf16>, vector<128x128xbf16>, vector<16x128xf32> -> vector<16x128xf32>
    %119 = vector.extract_strided_slice %114 {offsets = [0, 0], sizes = [1, 128], strides = [1, 1]} : vector<6x128xf32> to vector<1x128xf32>
    %120 = vector.broadcast %119 : vector<1x128xf32> to vector<16x128xf32>
    %121 = arith.addf %118, %120 : vector<16x128xf32>
    %122 = arith.addf %3, %121 : vector<16x128xf32>
    %123 = vector.extract_strided_slice %114 {offsets = [1, 0], sizes = [1, 128], strides = [1, 1]} : vector<6x128xf32> to vector<1x128xf32>
    %124 = vector.extract_strided_slice %114 {offsets = [2, 0], sizes = [1, 128], strides = [1, 1]} : vector<6x128xf32> to vector<1x128xf32>
    %cst_38 = arith.constant dense<0.000000e+00> : vector<16xf32>
    %125 = vector.multi_reduction <add>, %122, %cst_38 [1] : vector<16x128xf32> to vector<16xf32>
    %126 = vector.shape_cast %125 : vector<16xf32> to vector<16x1xf32>
    %cst_39 = arith.constant 1.280000e+02 : f32
    %127 = vector.broadcast %cst_39 : f32 to vector<16x1xf32>
    %128 = arith.divf %126, %127 : vector<16x1xf32>
    %129 = vector.broadcast %128 : vector<16x1xf32> to vector<16x128xf32>
    %130 = arith.subf %122, %129 : vector<16x128xf32>
    %131 = arith.mulf %130, %130 : vector<16x128xf32>
    %cst_40 = arith.constant dense<0.000000e+00> : vector<16xf32>
    %132 = vector.multi_reduction <add>, %131, %cst_40 [1] : vector<16x128xf32> to vector<16xf32>
    %133 = vector.shape_cast %132 : vector<16xf32> to vector<16x1xf32>
    %cst_41 = arith.constant 1.280000e+02 : f32
    %134 = vector.broadcast %cst_41 : f32 to vector<16x1xf32>
    %135 = arith.divf %133, %134 : vector<16x1xf32>
    %136 = vector.broadcast %128 : vector<16x1xf32> to vector<16x128xf32>
    %137 = arith.subf %122, %136 : vector<16x128xf32>
    %cst_42 = arith.constant 9.99999996E-13 : f32
    %138 = vector.broadcast %cst_42 : f32 to vector<16x1xf32>
    %139 = arith.addf %135, %138 : vector<16x1xf32>
    %140 = math.rsqrt %139 : vector<16x1xf32>
    %141 = vector.broadcast %140 : vector<16x1xf32> to vector<16x128xf32>
    %142 = arith.mulf %137, %141 : vector<16x128xf32>
    %143 = vector.broadcast %123 : vector<1x128xf32> to vector<16x128xf32>
    %144 = arith.mulf %142, %143 : vector<16x128xf32>
    %145 = vector.broadcast %124 : vector<1x128xf32> to vector<16x128xf32>
    %146 = arith.addf %144, %145 : vector<16x128xf32>
    %147 = arith.truncf %146 : vector<16x128xf32> to vector<16x128xbf16>
    %c0_43 = arith.constant 0 : index
    %c0_44 = arith.constant 0 : index
    %c0_45 = arith.constant 0 : index
    %148 = vector.load %arg7[%c0_43, %c0_44, %c0_45] : memref<1x128x256xbf16, #tpu.memory_space<vmem>>, vector<1x128x256xbf16>
    %149 = vector.shape_cast %148 : vector<1x128x256xbf16> to vector<128x256xbf16>
    %cst_46 = arith.constant dense<0.000000e+00> : vector<16x256xf32>
    %150 = tpu.matmul %147, %149, %cst_46 {dimension_numbers = #tpu.dot_dimension_numbers<[1], [0], [0], [1], [0, 0, 1, 1], [], []>} : vector<16x128xbf16>, vector<128x256xbf16>, vector<16x256xf32> -> vector<16x256xf32>
    %c0_47 = arith.constant 0 : index
    %c0_48 = arith.constant 0 : index
    %c0_49 = arith.constant 0 : index
    %151 = vector.load %arg8[%c0_47, %c0_48, %c0_49] : memref<1x1x256xf32, #tpu.memory_space<vmem>>, vector<1x1x256xf32>
    %152 = vector.shape_cast %151 : vector<1x1x256xf32> to vector<1x256xf32>
    %153 = vector.broadcast %152 : vector<1x256xf32> to vector<16x256xf32>
    %154 = arith.addf %150, %153 : vector<16x256xf32>
    %cst_50 = arith.constant 5.000000e-01 : f32
    %155 = vector.broadcast %cst_50 : f32 to vector<16x256xf32>
    %156 = arith.mulf %155, %154 : vector<16x256xf32>
    %cst_51 = arith.constant 4.471500e-02 : f32
    %157 = vector.broadcast %cst_51 : f32 to vector<16x256xf32>
    %158 = arith.mulf %157, %154 : vector<16x256xf32>
    %159 = arith.mulf %158, %154 : vector<16x256xf32>
    %160 = arith.mulf %159, %154 : vector<16x256xf32>
    %161 = arith.addf %154, %160 : vector<16x256xf32>
    %cst_52 = arith.constant 0.797884583 : f32
    %162 = vector.broadcast %cst_52 : f32 to vector<16x256xf32>
    %163 = arith.mulf %162, %161 : vector<16x256xf32>
    %164 = math.tanh %163 : vector<16x256xf32>
    %cst_53 = arith.constant 1.000000e+00 : f32
    %165 = vector.broadcast %cst_53 : f32 to vector<16x256xf32>
    %166 = arith.addf %165, %164 : vector<16x256xf32>
    %167 = arith.mulf %156, %166 : vector<16x256xf32>
    %168 = arith.truncf %167 : vector<16x256xf32> to vector<16x256xbf16>
    %c0_54 = arith.constant 0 : index
    %c0_55 = arith.constant 0 : index
    %c0_56 = arith.constant 0 : index
    %169 = vector.load %arg9[%c0_54, %c0_55, %c0_56] : memref<1x256x128xbf16, #tpu.memory_space<vmem>>, vector<1x256x128xbf16>
    %170 = vector.shape_cast %169 : vector<1x256x128xbf16> to vector<256x128xbf16>
    %cst_57 = arith.constant dense<0.000000e+00> : vector<16x128xf32>
    %171 = tpu.matmul %168, %170, %cst_57 {dimension_numbers = #tpu.dot_dimension_numbers<[1], [0], [0], [1], [0, 0, 1, 1], [], []>} : vector<16x256xbf16>, vector<256x128xbf16>, vector<16x128xf32> -> vector<16x128xf32>
    %172 = vector.extract_strided_slice %114 {offsets = [3, 0], sizes = [1, 128], strides = [1, 1]} : vector<6x128xf32> to vector<1x128xf32>
    %173 = vector.broadcast %172 : vector<1x128xf32> to vector<16x128xf32>
    %174 = arith.addf %171, %173 : vector<16x128xf32>
    %175 = arith.addf %146, %174 : vector<16x128xf32>
    %176 = vector.extract_strided_slice %114 {offsets = [4, 0], sizes = [1, 128], strides = [1, 1]} : vector<6x128xf32> to vector<1x128xf32>
    %177 = vector.extract_strided_slice %114 {offsets = [5, 0], sizes = [1, 128], strides = [1, 1]} : vector<6x128xf32> to vector<1x128xf32>
    %cst_58 = arith.constant dense<0.000000e+00> : vector<16xf32>
    %178 = vector.multi_reduction <add>, %175, %cst_58 [1] : vector<16x128xf32> to vector<16xf32>
    %179 = vector.shape_cast %178 : vector<16xf32> to vector<16x1xf32>
    %cst_59 = arith.constant 1.280000e+02 : f32
    %180 = vector.broadcast %cst_59 : f32 to vector<16x1xf32>
    %181 = arith.divf %179, %180 : vector<16x1xf32>
    %182 = vector.broadcast %181 : vector<16x1xf32> to vector<16x128xf32>
    %183 = arith.subf %175, %182 : vector<16x128xf32>
    %184 = arith.mulf %183, %183 : vector<16x128xf32>
    %cst_60 = arith.constant dense<0.000000e+00> : vector<16xf32>
    %185 = vector.multi_reduction <add>, %184, %cst_60 [1] : vector<16x128xf32> to vector<16xf32>
    %186 = vector.shape_cast %185 : vector<16xf32> to vector<16x1xf32>
    %cst_61 = arith.constant 1.280000e+02 : f32
    %187 = vector.broadcast %cst_61 : f32 to vector<16x1xf32>
    %188 = arith.divf %186, %187 : vector<16x1xf32>
    %189 = vector.broadcast %181 : vector<16x1xf32> to vector<16x128xf32>
    %190 = arith.subf %175, %189 : vector<16x128xf32>
    %cst_62 = arith.constant 9.99999996E-13 : f32
    %191 = vector.broadcast %cst_62 : f32 to vector<16x1xf32>
    %192 = arith.addf %188, %191 : vector<16x1xf32>
    %193 = math.rsqrt %192 : vector<16x1xf32>
    %194 = vector.broadcast %193 : vector<16x1xf32> to vector<16x128xf32>
    %195 = arith.mulf %190, %194 : vector<16x128xf32>
    %196 = vector.broadcast %176 : vector<1x128xf32> to vector<16x128xf32>
    %197 = arith.mulf %195, %196 : vector<16x128xf32>
    %198 = vector.broadcast %177 : vector<1x128xf32> to vector<16x128xf32>
    %199 = arith.addf %197, %198 : vector<16x128xf32>
    %c0_63 = arith.constant 0 : index
    %c0_64 = arith.constant 0 : index
    %200 = vector.load %arg14[%c0_63, %c0_64] : memref<16x128xf32, #tpu.memory_space<vmem>>, vector<16x128xf32>
    tpu.vector_store %arg14[%c0_63, %c0_64], %199 {strides = array<i32>} : memref<16x128xf32, #tpu.memory_space<vmem>>, vector<16x128xf32>,
    %c1_i32 = arith.constant 1 : i32
    %201 = arith.cmpi eq, %arg0, %c1_i32 : i32
    %202 = arith.extui %201 : i1 to i32
    %c0_i32_65 = arith.constant 0 : i32
    %203 = arith.cmpi ne, %202, %c0_i32_65 : i32
    scf.if %203 {
      %204 = vector.extract_strided_slice %199 {offsets = [0, 0], sizes = [1, 128], strides = [1, 1]} : vector<16x128xf32> to vector<1x128xf32>
      %205 = vector.extract_strided_slice %199 {offsets = [8, 0], sizes = [1, 128], strides = [1, 1]} : vector<16x128xf32> to vector<1x128xf32>
      %206 = tpu.concatenate %204, %205 in 0 : vector<1x128xf32>, vector<1x128xf32> -> vector<2x128xf32>
      %207 = arith.truncf %206 : vector<2x128xf32> to vector<2x128xbf16>
      %c0_66 = arith.constant 0 : index
      %c0_67 = arith.constant 0 : index
      %208 = vector.load %arg11[%c0_66, %c0_67] : memref<128x512xbf16, #tpu.memory_space<vmem>>, vector<128x512xbf16>
      %cst_68 = arith.constant dense<0.000000e+00> : vector<2x512xf32>
      %209 = tpu.matmul %207, %208, %cst_68 {dimension_numbers = #tpu.dot_dimension_numbers<[1], [0], [0], [1], [0, 0, 1, 1], [], []>} : vector<2x128xbf16>, vector<128x512xbf16>, vector<2x512xf32> -> vector<2x512xf32>
      %c0_69 = arith.constant 0 : index
      %c0_70 = arith.constant 0 : index
      %210 = vector.load %arg12[%c0_69, %c0_70] : memref<1x512xf32, #tpu.memory_space<vmem>>, vector<1x512xf32>
      %211 = vector.broadcast %210 : vector<1x512xf32> to vector<2x512xf32>
      %212 = arith.addf %209, %211 : vector<2x512xf32>
      %c0_71 = arith.constant 0 : index
      %c0_72 = arith.constant 0 : index
      %213 = vector.load %arg13[%c0_71, %c0_72] : memref<2x512xf32, #tpu.memory_space<vmem>>, vector<2x512xf32>
      tpu.vector_store %arg13[%c0_71, %c0_72], %212 {strides = array<i32>} : memref<2x512xf32, #tpu.memory_space<vmem>>, vector<2x512xf32>,
    } else {
    }
    return
  }
  func.func @transform_0(%arg0: i32) -> (i32, i32) {
    %c0_i32 = arith.constant 0 : i32
    %c0_i32_0 = arith.constant 0 : i32
    %c0_i32_1 = arith.constant 0 : i32
    return %c0_i32, %c0_i32_0 : i32, i32
  }
  func.func @transform_1(%arg0: i32) -> (i32, i32, i32) {
    %c0_i32 = arith.constant 0 : i32
    %c0_i32_0 = arith.constant 0 : i32
    %c0_i32_1 = arith.constant 0 : i32
    %c0_i32_2 = arith.constant 0 : i32
    return %c0_i32, %c0_i32_0, %c0_i32_1 : i32, i32, i32
  }
  func.func @transform_2(%arg0: i32) -> (i32, i32) {
    %c0_i32 = arith.constant 0 : i32
    %c0_i32_0 = arith.constant 0 : i32
    %c0_i32_1 = arith.constant 0 : i32
    return %c0_i32, %c0_i32_0 : i32, i32
  }
  func.func @transform_3(%arg0: i32) -> (i32, i32, i32) {
    %c0_i32 = arith.constant 0 : i32
    %c0_i32_0 = arith.constant 0 : i32
    %c0_i32_1 = arith.constant 0 : i32
    return %arg0, %c0_i32, %c0_i32_0 : i32, i32, i32
  }
  func.func @transform_4(%arg0: i32) -> (i32, i32, i32) {
    %c0_i32 = arith.constant 0 : i32
    %c0_i32_0 = arith.constant 0 : i32
    %c0_i32_1 = arith.constant 0 : i32
    return %arg0, %c0_i32, %c0_i32_0 : i32, i32, i32
  }
  func.func @transform_5(%arg0: i32) -> (i32, i32, i32) {
    %c0_i32 = arith.constant 0 : i32
    %c0_i32_0 = arith.constant 0 : i32
    %c0_i32_1 = arith.constant 0 : i32
    return %arg0, %c0_i32, %c0_i32_0 : i32, i32, i32
  }
  func.func @transform_6(%arg0: i32) -> (i32, i32, i32) {
    %c0_i32 = arith.constant 0 : i32
    %c0_i32_0 = arith.constant 0 : i32
    %c0_i32_1 = arith.constant 0 : i32
    return %arg0, %c0_i32, %c0_i32_0 : i32, i32, i32
  }
  func.func @transform_7(%arg0: i32) -> (i32, i32, i32) {
    %c0_i32 = arith.constant 0 : i32
    %c0_i32_0 = arith.constant 0 : i32
    %c0_i32_1 = arith.constant 0 : i32
    return %arg0, %c0_i32, %c0_i32_0 : i32, i32, i32
  }
  func.func @transform_8(%arg0: i32) -> (i32, i32, i32) {
    %c0_i32 = arith.constant 0 : i32
    %c0_i32_0 = arith.constant 0 : i32
    %c0_i32_1 = arith.constant 0 : i32
    return %arg0, %c0_i32, %c0_i32_0 : i32, i32, i32
  }
  func.func @transform_9(%arg0: i32) -> (i32, i32, i32) {
    %c0_i32 = arith.constant 0 : i32
    %c0_i32_0 = arith.constant 0 : i32
    %c0_i32_1 = arith.constant 0 : i32
    return %arg0, %c0_i32, %c0_i32_0 : i32, i32, i32
  }
  func.func @transform_10(%arg0: i32) -> (i32, i32) {
    %c0_i32 = arith.constant 0 : i32
    %c0_i32_0 = arith.constant 0 : i32
    %c0_i32_1 = arith.constant 0 : i32
    return %c0_i32, %c0_i32_0 : i32, i32
  }
  func.func @transform_11(%arg0: i32) -> (i32, i32) {
    %c0_i32 = arith.constant 0 : i32
    %c0_i32_0 = arith.constant 0 : i32
    %c0_i32_1 = arith.constant 0 : i32
    return %c0_i32, %c0_i32_0 : i32, i32
  }
  func.func @transform_12(%arg0: i32) -> (i32, i32) {
    %c0_i32 = arith.constant 0 : i32
    %c0_i32_0 = arith.constant 0 : i32
    %c0_i32_1 = arith.constant 0 : i32
    return %c0_i32, %c0_i32_0 : i32, i32
  }
}

</mosaic_0001>

<llo_original>
// kernel: fine_tuning_bert_forward.1
$region0: #{fine_tuning_bert_forward.1}
  #allocation0 [shape = 'u32[]', space=smem, size = 0x4, offset = 0x4, fixed_abs, tag = 'smem constant byte address 0x4 - core index']
  #allocation1 [shape = 'u32[144,128]{1,0:T(1,128)}', space=vmem, size = 0x12000, scoped, tag = 'internal scratch']
  #allocation2 [shape = 'f32[16,128]{1,0:T(8,128)}', space=vmem, size = 0x2000, scoped, tag = 'scratch operand']
  %s0 = inlined_call_operand.vmem [shape: f32[16,128], index: 0, kind: input, shape index: {}]
  %s1 = inlined_call_operand.vmem [shape: f32[2,1,8], index: 1, kind: input, shape index: {}]
  %s2 = inlined_call_operand.vmem [shape: f32[2,128], index: 2, kind: input, shape index: {}]
  %s3 = inlined_call_operand.hbm [shape: bf16[2,128,384], index: 3, kind: input, shape index: {}]
  %s4 = inlined_call_operand.vmem [shape: f32[2,1,384], index: 4, kind: input, shape index: {}]
  %s5 = inlined_call_operand.vmem [shape: bf16[2,128,128], index: 5, kind: input, shape index: {}]
  %s6 = inlined_call_operand.vmem [shape: bf16[2,128,256], index: 6, kind: input, shape index: {}]
  %s7 = inlined_call_operand.vmem [shape: f32[2,1,256], index: 7, kind: input, shape index: {}]
  %s8 = inlined_call_operand.hbm [shape: bf16[2,256,128], index: 8, kind: input, shape index: {}]
  %s9 = inlined_call_operand.vmem [shape: f32[2,6,128], index: 9, kind: input, shape index: {}]
  %s10 = inlined_call_operand.hbm [shape: bf16[128,512], index: 10, kind: input, shape index: {}]
  %s11 = inlined_call_operand.vmem [shape: f32[1,512], index: 11, kind: input, shape index: {}]
  %s12 = inlined_call_operand.hbm [shape: f32[2,512], index: 12, kind: output, shape index: {}]
  %s13 = sld [smem:[#allocation0]]
  $region101: #{fine_tuning_bert_forward.1} parent=0
    _
  %s15 = ssub.s32 1, %s13
  %s16 = scalar_select 0, %s15, %s13
  $region1: #{fine_tuning_bert_forward.1} parent=0
    #allocation3 [shape = 'u8[196608]{0}', space=vmem, size = 0x30000, scoped, tag = 'input window, operand 3']
    #allocation4 [shape = 's32[2]{0}', space=sflag, size = 0x8, scoped, tag = 'scoped memory for fine_tuning_bert_forward.1']
    #allocation5 [shape = 's32[2]{0}', space=sflag, size = 0x8, scoped, tag = 'scoped memory for fine_tuning_bert_forward.1']
    #allocation6 [shape = 'u8[131072]{0}', space=vmem, size = 0x20000, scoped, tag = 'input window, operand 8']
    #allocation7 [shape = 's32[2]{0}', space=sflag, size = 0x8, scoped, tag = 'scoped memory for fine_tuning_bert_forward.1']
    #allocation8 [shape = 'u8[131072]{0}', space=vmem, size = 0x20000, scoped, tag = 'input window, operand 10, single buffered']
    #allocation9 [shape = 'u8[4096]{0}', space=vmem, size = 0x1000, scoped, tag = 'output window, operand 0, single buffered']
    %17 = vsyncpa [#allocation4], 0
    %s18 = scalar_lea.sflag [#allocation4], 1
    %19 = vsyncpa %s18, 0
    %20 = vsyncpa [#allocation7], 0
    %s21 = scalar_lea.sflag [#allocation7], 1
    %22 = vsyncpa %s21, 0
    %23 = vsyncpa [#allocation5], 0
    loop: start=0, step=1, limit=4
    $region2: #{fine_tuning_bert_forward.1} parent=1 // loop_pre_header
      _
    $region3: #{fine_tuning_bert_forward.1} parent=1 // loop_header
      %s25 = sphi 0, %s29
      %p26 = scmp.ge.s32.totalorder %s25, 4
      %s33 = sphi 0, %s33
      %s35 = sphi 0, %s33
      %s36 = sphi 0, %s35
      %s50 = sphi 0, %s36
      %s54 = sphi 0, %s54
      %s56 = sphi 0, %s54
      %s57 = sphi 0, %s56
      %s71 = sphi 0, %s57
      %s75 = sphi 0, %s75
      %s77 = sphi 0, %s75
      %s78 = sphi 0, %s77
      %s92 = sphi 0, %s78
      %s98 = sphi 0, %s100
      %s101 = sphi 0, %s98
      %s102 = sphi 0, %s101
      %s118 = sphi 0, %s102
      %s124 = sphi 0, %s126
      %s127 = sphi 0, %s124
      %s128 = sphi 0, %s127
      %s144 = sphi 0, %s128
      %s150 = sphi 0, %s152
      %s153 = sphi 0, %s150
      %s154 = sphi 0, %s153
      %s170 = sphi 0, %s154
      %s176 = sphi 0, %s178
      %s179 = sphi 0, %s176
      %s180 = sphi 0, %s179
      %s196 = sphi 0, %s180
      %s202 = sphi 0, %s204
      %s205 = sphi 0, %s202
      %s206 = sphi 0, %s205
      %s222 = sphi 0, %s206
      %s228 = sphi 0, %s230
      %s231 = sphi 0, %s228
      %s232 = sphi 0, %s231
      %s248 = sphi 0, %s232
      %s254 = sphi 0, %s256
      %s257 = sphi 0, %s254
      %s258 = sphi 0, %s257
      %s274 = sphi 0, %s258
      %s278 = sphi 0, %s278
      %s280 = sphi 0, %s278
      %s281 = sphi 0, %s280
      %s295 = sphi 0, %s281
      %s299 = sphi 0, %s299
      %s301 = sphi 0, %s299
      %s302 = sphi 0, %s301
      %s316 = sphi 0, %s302
      %s320 = sphi 0, %s320
      %s322 = sphi 0, %s320
      %s323 = sphi 0, %s322
      %s337 = sphi 0, %s323
    $region4: #{fine_tuning_bert_forward.1} parent=1 // loop_header_branch
      %28 = sbr.rel (%p26) target = $region8
    $region5: #{fine_tuning_bert_forward.1} parent=1 // loop_body
      %s30 = ssub.s32 %s25, 1
      %s31 = ssub.s32 %s25, 2
      %s32 = sadd.s32 %s25, 1
      %s34 = sadd.s32 %s33, 1
      %p37 = scmp.eq.s32.totalorder %s25, 1
      %p38 = scmp.ne.s32.totalorder %s33, %s35
      %p39 = scmp.eq.s32.totalorder %s25, 0
      %p40 = por %p38, %p39
      %p41 = scmp.ne.s32.totalorder %s33, %s35
      %p42 = scmp.eq.s32.totalorder %s30, 1
      %p43 = por %p41, %p42
      %p44 = scmp.ne.s32.totalorder %s35, %s36
      %p45 = scmp.eq.s32.totalorder %s30, 0
      %p46 = por %p44, %p45
      %p47 = scmp.ne.s32.totalorder %s35, %s36
      %p48 = scmp.eq.s32.totalorder %s31, 1
      %p49 = por %p47, %p48
      %p51 = scmp.ne.s32.totalorder %s36, %s50
      %p52 = scmp.eq.s32.totalorder %s31, 0
      %p53 = por %p51, %p52
      %s55 = sadd.s32 %s54, 1
      %p58 = scmp.eq.s32.totalorder %s25, 1
      %p59 = scmp.ne.s32.totalorder %s54, %s56
      %p60 = scmp.eq.s32.totalorder %s25, 0
      %p61 = por %p59, %p60
      %p62 = scmp.ne.s32.totalorder %s54, %s56
      %p63 = scmp.eq.s32.totalorder %s30, 1
      %p64 = por %p62, %p63
      %p65 = scmp.ne.s32.totalorder %s56, %s57
      %p66 = scmp.eq.s32.totalorder %s30, 0
      %p67 = por %p65, %p66
      %p68 = scmp.ne.s32.totalorder %s56, %s57
      %p69 = scmp.eq.s32.totalorder %s31, 1
      %p70 = por %p68, %p69
      %p72 = scmp.ne.s32.totalorder %s57, %s71
      %p73 = scmp.eq.s32.totalorder %s31, 0
      %p74 = por %p72, %p73
      %s76 = sadd.s32 %s75, 1
      %p79 = scmp.eq.s32.totalorder %s25, 1
      %p80 = scmp.ne.s32.totalorder %s75, %s77
      %p81 = scmp.eq.s32.totalorder %s25, 0
      %p82 = por %p80, %p81
      %p83 = scmp.ne.s32.totalorder %s75, %s77
      %p84 = scmp.eq.s32.totalorder %s30, 1
      %p85 = por %p83, %p84
      %p86 = scmp.ne.s32.totalorder %s77, %s78
      %p87 = scmp.eq.s32.totalorder %s30, 0
      %p88 = por %p86, %p87
      %p89 = scmp.ne.s32.totalorder %s77, %s78
      %p90 = scmp.eq.s32.totalorder %s31, 1
      %p91 = por %p89, %p90
      %p93 = scmp.ne.s32.totalorder %s78, %s92
      %p94 = scmp.eq.s32.totalorder %s31, 0
      %p95 = por %p93, %p94
      %s96 = ssub.s32 %s25, %s32
      %p97 = scmp.eq.s32.totalorder %s96, 0
      %s99 = sadd.s32 %s98, 1
      %s100 = scalar_select %p97, %s98, %s99
      %p103 = pneg %p97
      %p104 = scmp.eq.s32.totalorder %s25, 1
      %p105 = por %p103, %p104
      %p106 = scmp.ne.s32.totalorder %s98, %s101
      %p107 = scmp.eq.s32.totalorder %s25, 0
      %p108 = por %p106, %p107
      %p109 = scmp.ne.s32.totalorder %s98, %s101
      %p110 = scmp.eq.s32.totalorder %s30, 1
      %p111 = por %p109, %p110
      %p112 = scmp.ne.s32.totalorder %s101, %s102
      %p113 = scmp.eq.s32.totalorder %s30, 0
      %p114 = por %p112, %p113
      %p115 = scmp.ne.s32.totalorder %s101, %s102
      %p116 = scmp.eq.s32.totalorder %s31, 1
      %p117 = por %p115, %p116
      %p119 = scmp.ne.s32.totalorder %s102, %s118
      %p120 = scmp.eq.s32.totalorder %s31, 0
      %p121 = por %p119, %p120
      %s122 = ssub.s32 %s25, %s32
      %p123 = scmp.eq.s32.totalorder %s122, 0
      %s125 = sadd.s32 %s124, 1
      %s126 = scalar_select %p123, %s124, %s125
      %p129 = pneg %p123
      %p130 = scmp.eq.s32.totalorder %s25, 1
      %p131 = por %p129, %p130
      %p132 = scmp.ne.s32.totalorder %s124, %s127
      %p133 = scmp.eq.s32.totalorder %s25, 0
      %p134 = por %p132, %p133
      %p135 = scmp.ne.s32.totalorder %s124, %s127
      %p136 = scmp.eq.s32.totalorder %s30, 1
      %p137 = por %p135, %p136
      %p138 = scmp.ne.s32.totalorder %s127, %s128
      %p139 = scmp.eq.s32.totalorder %s30, 0
      %p140 = por %p138, %p139
      %p141 = scmp.ne.s32.totalorder %s127, %s128
      %p142 = scmp.eq.s32.totalorder %s31, 1
      %p143 = por %p141, %p142
      %p145 = scmp.ne.s32.totalorder %s128, %s144
      %p146 = scmp.eq.s32.totalorder %s31, 0
      %p147 = por %p145, %p146
      %s148 = ssub.s32 %s25, %s32
      %p149 = scmp.eq.s32.totalorder %s148, 0
      %s151 = sadd.s32 %s150, 1
      %s152 = scalar_select %p149, %s150, %s151
      %p155 = pneg %p149
      %p156 = scmp.eq.s32.totalorder %s25, 1
      %p157 = por %p155, %p156
      %p158 = scmp.ne.s32.totalorder %s150, %s153
      %p159 = scmp.eq.s32.totalorder %s25, 0
      %p160 = por %p158, %p159
      %p161 = scmp.ne.s32.totalorder %s150, %s153
      %p162 = scmp.eq.s32.totalorder %s30, 1
      %p163 = por %p161, %p162
      %p164 = scmp.ne.s32.totalorder %s153, %s154
      %p165 = scmp.eq.s32.totalorder %s30, 0
      %p166 = por %p164, %p165
      %p167 = scmp.ne.s32.totalorder %s153, %s154
      %p168 = scmp.eq.s32.totalorder %s31, 1
      %p169 = por %p167, %p168
      %p171 = scmp.ne.s32.totalorder %s154, %s170
      %p172 = scmp.eq.s32.totalorder %s31, 0
      %p173 = por %p171, %p172
      %s174 = ssub.s32 %s25, %s32
      %p175 = scmp.eq.s32.totalorder %s174, 0
      %s177 = sadd.s32 %s176, 1
      %s178 = scalar_select %p175, %s176, %s177
      %p181 = pneg %p175
      %p182 = scmp.eq.s32.totalorder %s25, 1
      %p183 = por %p181, %p182
      %p184 = scmp.ne.s32.totalorder %s176, %s179
      %p185 = scmp.eq.s32.totalorder %s25, 0
      %p186 = por %p184, %p185
      %p187 = scmp.ne.s32.totalorder %s176, %s179
      %p188 = scmp.eq.s32.totalorder %s30, 1
      %p189 = por %p187, %p188
      %p190 = scmp.ne.s32.totalorder %s179, %s180
      %p191 = scmp.eq.s32.totalorder %s30, 0
      %p192 = por %p190, %p191
      %p193 = scmp.ne.s32.totalorder %s179, %s180
      %p194 = scmp.eq.s32.totalorder %s31, 1
      %p195 = por %p193, %p194
      %p197 = scmp.ne.s32.totalorder %s180, %s196
      %p198 = scmp.eq.s32.totalorder %s31, 0
      %p199 = por %p197, %p198
      %s200 = ssub.s32 %s25, %s32
      %p201 = scmp.eq.s32.totalorder %s200, 0
      %s203 = sadd.s32 %s202, 1
      %s204 = scalar_select %p201, %s202, %s203
      %p207 = pneg %p201
      %p208 = scmp.eq.s32.totalorder %s25, 1
      %p209 = por %p207, %p208
      %p210 = scmp.ne.s32.totalorder %s202, %s205
      %p211 = scmp.eq.s32.totalorder %s25, 0
      %p212 = por %p210, %p211
      %p213 = scmp.ne.s32.totalorder %s202, %s205
      %p214 = scmp.eq.s32.totalorder %s30, 1
      %p215 = por %p213, %p214
      %p216 = scmp.ne.s32.totalorder %s205, %s206
      %p217 = scmp.eq.s32.totalorder %s30, 0
      %p218 = por %p216, %p217
      %p219 = scmp.ne.s32.totalorder %s205, %s206
      %p220 = scmp.eq.s32.totalorder %s31, 1
      %p221 = por %p219, %p220
      %p223 = scmp.ne.s32.totalorder %s206, %s222
      %p224 = scmp.eq.s32.totalorder %s31, 0
      %p225 = por %p223, %p224
      %s226 = ssub.s32 %s25, %s32
      %p227 = scmp.eq.s32.totalorder %s226, 0
      %s229 = sadd.s32 %s228, 1
      %s230 = scalar_select %p227, %s228, %s229
      %p233 = pneg %p227
      %p234 = scmp.eq.s32.totalorder %s25, 1
      %p235 = por %p233, %p234
      %p236 = scmp.ne.s32.totalorder %s228, %s231
      %p237 = scmp.eq.s32.totalorder %s25, 0
      %p238 = por %p236, %p237
      %p239 = scmp.ne.s32.totalorder %s228, %s231
      %p240 = scmp.eq.s32.totalorder %s30, 1
      %p241 = por %p239, %p240
      %p242 = scmp.ne.s32.totalorder %s231, %s232
      %p243 = scmp.eq.s32.totalorder %s30, 0
      %p244 = por %p242, %p243
      %p245 = scmp.ne.s32.totalorder %s231, %s232
      %p246 = scmp.eq.s32.totalorder %s31, 1
      %p247 = por %p245, %p246
      %p249 = scmp.ne.s32.totalorder %s232, %s248
      %p250 = scmp.eq.s32.totalorder %s31, 0
      %p251 = por %p249, %p250
      %s252 = ssub.s32 %s25, %s32
      %p253 = scmp.eq.s32.totalorder %s252, 0
      %s255 = sadd.s32 %s254, 1
      %s256 = scalar_select %p253, %s254, %s255
      %p259 = pneg %p253
      %p260 = scmp.eq.s32.totalorder %s25, 1
      %p261 = por %p259, %p260
      %p262 = scmp.ne.s32.totalorder %s254, %s257
      %p263 = scmp.eq.s32.totalorder %s25, 0
      %p264 = por %p262, %p263
      %p265 = scmp.ne.s32.totalorder %s254, %s257
      %p266 = scmp.eq.s32.totalorder %s30, 1
      %p267 = por %p265, %p266
      %p268 = scmp.ne.s32.totalorder %s257, %s258
      %p269 = scmp.eq.s32.totalorder %s30, 0
      %p270 = por %p268, %p269
      %p271 = scmp.ne.s32.totalorder %s257, %s258
      %p272 = scmp.eq.s32.totalorder %s31, 1
      %p273 = por %p271, %p272
      %p275 = scmp.ne.s32.totalorder %s258, %s274
      %p276 = scmp.eq.s32.totalorder %s31, 0
      %p277 = por %p275, %p276
      %s279 = sadd.s32 %s278, 1
      %p282 = scmp.eq.s32.totalorder %s25, 1
      %p283 = scmp.ne.s32.totalorder %s278, %s280
      %p284 = scmp.eq.s32.totalorder %s25, 0
      %p285 = por %p283, %p284
      %p286 = scmp.ne.s32.totalorder %s278, %s280
      %p287 = scmp.eq.s32.totalorder %s30, 1
      %p288 = por %p286, %p287
      %p289 = scmp.ne.s32.totalorder %s280, %s281
      %p290 = scmp.eq.s32.totalorder %s30, 0
      %p291 = por %p289, %p290
      %p292 = scmp.ne.s32.totalorder %s280, %s281
      %p293 = scmp.eq.s32.totalorder %s31, 1
      %p294 = por %p292, %p293
      %p296 = scmp.ne.s32.totalorder %s281, %s295
      %p297 = scmp.eq.s32.totalorder %s31, 0
      %p298 = por %p296, %p297
      %s300 = sadd.s32 %s299, 1
      %p303 = scmp.eq.s32.totalorder %s25, 1
      %p304 = scmp.ne.s32.totalorder %s299, %s301
      %p305 = scmp.eq.s32.totalorder %s25, 0
      %p306 = por %p304, %p305
      %p307 = scmp.ne.s32.totalorder %s299, %s301
      %p308 = scmp.eq.s32.totalorder %s30, 1
      %p309 = por %p307, %p308
      %p310 = scmp.ne.s32.totalorder %s301, %s302
      %p311 = scmp.eq.s32.totalorder %s30, 0
      %p312 = por %p310, %p311
      %p313 = scmp.ne.s32.totalorder %s301, %s302
      %p314 = scmp.eq.s32.totalorder %s31, 1
      %p315 = por %p313, %p314
      %p317 = scmp.ne.s32.totalorder %s302, %s316
      %p318 = scmp.eq.s32.totalorder %s31, 0
      %p319 = por %p317, %p318
      %s321 = sadd.s32 %s320, 1
      %p324 = scmp.eq.s32.totalorder %s25, 1
      %p325 = scmp.ne.s32.totalorder %s320, %s322
      %p326 = scmp.eq.s32.totalorder %s25, 0
      %p327 = por %p325, %p326
      %p328 = scmp.ne.s32.totalorder %s320, %s322
      %p329 = scmp.eq.s32.totalorder %s30, 1
      %p330 = por %p328, %p329
      %p331 = scmp.ne.s32.totalorder %s322, %s323
      %p332 = scmp.eq.s32.totalorder %s30, 0
      %p333 = por %p331, %p332
      %p334 = scmp.ne.s32.totalorder %s322, %s323
      %p335 = scmp.eq.s32.totalorder %s31, 1
      %p336 = por %p334, %p335
      %p338 = scmp.ne.s32.totalorder %s323, %s337
      %p339 = scmp.eq.s32.totalorder %s31, 0
      %p340 = por %p338, %p339
      %p341 = scmp.le.s32.totalorder 1, %s25
      %p342 = scmp.lt.s32.totalorder %s25, 3
      %p343 = pnand %p341, %p342
      %p344 = pneg %p343
      // Predicated region
      $region9: #{fine_tuning_bert_forward.1} parent=5 // pred_check
        _
      $region10: #{fine_tuning_bert_forward.1} parent=5 // pred_check_branch
        %346 = sbr.rel (%p343) target = $region12
      $region11: #{fine_tuning_bert_forward.1} parent=5 // pred_region
        %s347 = ssub.s32 %s25, 1
        // Predicated region
        $region13: #{fine_tuning_bert_forward.1} parent=11 // pred_check
          %p348 = pneg %p46
        $region14: #{fine_tuning_bert_forward.1} parent=11 // pred_check_branch
          %350 = sbr.rel (%p348) target = $region16
        $region15: #{fine_tuning_bert_forward.1} parent=11 // pred_region
          _
        $region16: #{fine_tuning_bert_forward.1} parent=11 // pred_fallthru
          _
        // Predicated region
        $region17: #{fine_tuning_bert_forward.1} parent=11 // pred_check
          %p351 = pneg %p67
        $region18: #{fine_tuning_bert_forward.1} parent=11 // pred_check_branch
          %353 = sbr.rel (%p351) target = $region20
        $region19: #{fine_tuning_bert_forward.1} parent=11 // pred_region
          _
        $region20: #{fine_tuning_bert_forward.1} parent=11 // pred_fallthru
          _
        // Predicated region
        $region21: #{fine_tuning_bert_forward.1} parent=11 // pred_check
          %p354 = pneg %p88
        $region22: #{fine_tuning_bert_forward.1} parent=11 // pred_check_branch
          %356 = sbr.rel (%p354) target = $region24
        $region23: #{fine_tuning_bert_forward.1} parent=11 // pred_region
          _
        $region24: #{fine_tuning_bert_forward.1} parent=11 // pred_fallthru
          _
        // Predicated region
        $region25: #{fine_tuning_bert_forward.1} parent=11 // pred_check
          %p357 = pneg %p291
        $region26: #{fine_tuning_bert_forward.1} parent=11 // pred_check_branch
          %359 = sbr.rel (%p357) target = $region28
        $region27: #{fine_tuning_bert_forward.1} parent=11 // pred_region
          %s361 = ssub.s32 4096, 4096
          %362 = vsyncadd [#allocation7], %s361
          %s363 = sshll.u32 [#allocation8], 4
          %s364 = int_to_ptr.vmem [resolvable:$true] %s363
          %369 = dma.hbm_to_vmem [thread:$0]  %s10, 4096, %s364, [#allocation7], 256, 256, 16
        $region28: #{fine_tuning_bert_forward.1} parent=11 // pred_fallthru
          _
        // Predicated region
        $region29: #{fine_tuning_bert_forward.1} parent=11 // pred_check
          %p370 = pneg %p312
        $region30: #{fine_tuning_bert_forward.1} parent=11 // pred_check_branch
          %372 = sbr.rel (%p370) target = $region32
        $region31: #{fine_tuning_bert_forward.1} parent=11 // pred_region
          _
        $region32: #{fine_tuning_bert_forward.1} parent=11 // pred_fallthru
          _
      $region12: #{fine_tuning_bert_forward.1} parent=5 // pred_fallthru
        _
      %p373 = scmp.lt.s32.totalorder %s25, 2
      // Predicated region
      $region33: #{fine_tuning_bert_forward.1} parent=5 // pred_check
        %p374 = pneg %p373
      $region34: #{fine_tuning_bert_forward.1} parent=5 // pred_check_branch
        %376 = sbr.rel (%p374) target = $region36
      $region35: #{fine_tuning_bert_forward.1} parent=5 // pred_region
        // Predicated region
        $region37: #{fine_tuning_bert_forward.1} parent=35 // pred_check
          %p377 = pneg %p108
        $region38: #{fine_tuning_bert_forward.1} parent=35 // pred_check_branch
          %379 = sbr.rel (%p377) target = $region40
        $region39: #{fine_tuning_bert_forward.1} parent=35 // pred_region
          %s380 = sand.u32 %s98, 1
          %s381 = scalar_lea.sflag [#allocation4], %s380
          %s382 = sand.u32 %s98, 1
          %s383 = smul.addr %s382, 192
          %s384 = scalar_lea.vmem [#allocation3], %s383
          %s386 = ssub.s32 3072, 3072
          %387 = vsyncadd %s381, %s386
          %s388 = smul.addr %s25, 48
          %s389 = smul.addr %s388, 64
          %s390 = scalar_lea.hbm %s3, %s389
          %s391 = sshll.u32 %s384, 4
          %s392 = int_to_ptr.vmem [resolvable:$true] %s391
          %397 = dma.hbm_to_vmem [thread:$0]  %s390, 3072, %s392, %s381, 192, 192, 12
        $region40: #{fine_tuning_bert_forward.1} parent=35 // pred_fallthru
          _
        // Predicated region
        $region41: #{fine_tuning_bert_forward.1} parent=35 // pred_check
          %p398 = pneg %p134
        $region42: #{fine_tuning_bert_forward.1} parent=35 // pred_check_branch
          %400 = sbr.rel (%p398) target = $region44
        $region43: #{fine_tuning_bert_forward.1} parent=35 // pred_region
          %p401 = scmp.lt.s32.totalorder %s25, 1
          %s402 = scalar_select %p401, %s25, 1
          %s403 = smul.addr %s402, 3
          %s404 = scalar_lea.vmem %s4, %s403
        $region44: #{fine_tuning_bert_forward.1} parent=35 // pred_fallthru
          _
        // Predicated region
        $region45: #{fine_tuning_bert_forward.1} parent=35 // pred_check
          %p405 = pneg %p160
        $region46: #{fine_tuning_bert_forward.1} parent=35 // pred_check_branch
          %407 = sbr.rel (%p405) target = $region48
        $region47: #{fine_tuning_bert_forward.1} parent=35 // pred_region
          %p408 = scmp.lt.s32.totalorder %s25, 1
          %s409 = scalar_select %p408, %s25, 1
          %s410 = smul.addr %s409, 16
          %s411 = smul.addr %s410, 4
          %s412 = scalar_lea.vmem %s5, %s411
        $region48: #{fine_tuning_bert_forward.1} parent=35 // pred_fallthru
          _
        // Predicated region
        $region49: #{fine_tuning_bert_forward.1} parent=35 // pred_check
          %p413 = pneg %p186
        $region50: #{fine_tuning_bert_forward.1} parent=35 // pred_check_branch
          %415 = sbr.rel (%p413) target = $region52
        $region51: #{fine_tuning_bert_forward.1} parent=35 // pred_region
          %p416 = scmp.lt.s32.totalorder %s25, 1
          %s417 = scalar_select %p416, %s25, 1
          %s418 = smul.addr %s417, 32
          %s419 = smul.addr %s418, 4
          %s420 = scalar_lea.vmem %s6, %s419
        $region52: #{fine_tuning_bert_forward.1} parent=35 // pred_fallthru
          _
        // Predicated region
        $region53: #{fine_tuning_bert_forward.1} parent=35 // pred_check
          %p421 = pneg %p212
        $region54: #{fine_tuning_bert_forward.1} parent=35 // pred_check_branch
          %423 = sbr.rel (%p421) target = $region56
        $region55: #{fine_tuning_bert_forward.1} parent=35 // pred_region
          %p424 = scmp.lt.s32.totalorder %s25, 1
          %s425 = scalar_select %p424, %s25, 1
          %s426 = smul.addr %s425, 2
          %s427 = scalar_lea.vmem %s7, %s426
        $region56: #{fine_tuning_bert_forward.1} parent=35 // pred_fallthru
          _
        // Predicated region
        $region57: #{fine_tuning_bert_forward.1} parent=35 // pred_check
          %p428 = pneg %p238
        $region58: #{fine_tuning_bert_forward.1} parent=35 // pred_check_branch
          %430 = sbr.rel (%p428) target = $region60
        $region59: #{fine_tuning_bert_forward.1} parent=35 // pred_region
          %s431 = sand.u32 %s25, 1
          %s432 = scalar_lea.sflag [#allocation7], %s431
          %s433 = sand.u32 %s228, 1
          %s434 = smul.addr %s433, 128
          %s435 = scalar_lea.vmem [#allocation6], %s434
          %s437 = ssub.s32 2048, 2048
          %438 = vsyncadd %s432, %s437
          %s439 = smul.addr %s25, 32
          %s440 = smul.addr %s439, 64
          %s441 = scalar_lea.hbm %s8, %s440
          %s442 = sshll.u32 %s435, 4
          %s443 = int_to_ptr.vmem [resolvable:$true] %s442
          %448 = dma.hbm_to_vmem [thread:$0]  %s441, 2048, %s443, %s432, 64, 64, 4
        $region60: #{fine_tuning_bert_forward.1} parent=35 // pred_fallthru
          _
        // Predicated region
        $region61: #{fine_tuning_bert_forward.1} parent=35 // pred_check
          %p449 = pneg %p264
        $region62: #{fine_tuning_bert_forward.1} parent=35 // pred_check_branch
          %451 = sbr.rel (%p449) target = $region64
        $region63: #{fine_tuning_bert_forward.1} parent=35 // pred_region
          %p452 = scmp.lt.s32.totalorder %s25, 1
          %s453 = scalar_select %p452, %s25, 1
          %s454 = smul.addr %s453, 8
          %s455 = scalar_lea.vmem %s9, %s454
        $region64: #{fine_tuning_bert_forward.1} parent=35 // pred_fallthru
          _
      $region36: #{fine_tuning_bert_forward.1} parent=5 // pred_fallthru
        _
      %p456 = scmp.le.s32.totalorder 1, %s25
      %p457 = scmp.lt.s32.totalorder %s25, 3
      %p458 = pnand %p456, %p457
      %p459 = pneg %p458
      // Predicated region
      $region65: #{fine_tuning_bert_forward.1} parent=5 // pred_check
        _
      $region66: #{fine_tuning_bert_forward.1} parent=5 // pred_check_branch
        %461 = sbr.rel (%p458) target = $region68
      $region67: #{fine_tuning_bert_forward.1} parent=5 // pred_region
        %s462 = ssub.s32 %s25, 1
        %s463 = sand.u32 %s101, 1
        %s464 = scalar_lea.sflag [#allocation4], %s463
        %s465 = sand.u32 %s101, 1
        %s466 = smul.addr %s465, 192
        %s467 = scalar_lea.vmem [#allocation3], %s466
        // Predicated region
        $region69: #{fine_tuning_bert_forward.1} parent=67 // pred_check
          %p468 = pneg %p114
        $region70: #{fine_tuning_bert_forward.1} parent=67 // pred_check_branch
          %470 = sbr.rel (%p468) target = $region72
        $region71: #{fine_tuning_bert_forward.1} parent=67 // pred_region
          %471 = dma.done %s464, 3072
        $region72: #{fine_tuning_bert_forward.1} parent=67 // pred_fallthru
          _
        %s472 = sand.u32 %s30, 1
        %s473 = scalar_lea.sflag [#allocation7], %s472
        %s474 = sand.u32 %s231, 1
        %s475 = smul.addr %s474, 128
        %s476 = scalar_lea.vmem [#allocation6], %s475
        // Predicated region
        $region73: #{fine_tuning_bert_forward.1} parent=67 // pred_check
          %p477 = pneg %p244
        $region74: #{fine_tuning_bert_forward.1} parent=67 // pred_check_branch
          %479 = sbr.rel (%p477) target = $region76
        $region75: #{fine_tuning_bert_forward.1} parent=67 // pred_region
          %480 = dma.done %s473, 2048
        $region76: #{fine_tuning_bert_forward.1} parent=67 // pred_fallthru
          _
        // Predicated region
        $region77: #{fine_tuning_bert_forward.1} parent=67 // pred_check
          %p481 = pneg %p291
        $region78: #{fine_tuning_bert_forward.1} parent=67 // pred_check_branch
          %483 = sbr.rel (%p481) target = $region80
        $region79: #{fine_tuning_bert_forward.1} parent=67 // pred_region
          %484 = dma.done [#allocation7], 4096
        $region80: #{fine_tuning_bert_forward.1} parent=67 // pred_fallthru
          _
        %p485 = pneg %p46
        %p486 = pneg %p43
        %p487 = pneg %p67
        %p488 = pneg %p64
        %p489 = pneg %p88
        %p490 = pneg %p85
        %s491 = sand.u32 %s101, 1
        %s492 = scalar_lea.sflag [#allocation4], %s491
        %s493 = sand.u32 %s101, 1
        %s494 = smul.addr %s493, 192
        %s495 = scalar_lea.vmem [#allocation3], %s494
        %p496 = pneg %p114
        %p497 = pneg %p111
        %p498 = scmp.lt.s32.totalorder %s30, 1
        %s499 = scalar_select %p498, %s30, 1
        %s500 = smul.addr %s499, 3
        %s501 = scalar_lea.vmem %s4, %s500
        %p502 = pneg %p140
        %p503 = pneg %p137
        %p504 = scmp.lt.s32.totalorder %s30, 1
        %s505 = scalar_select %p504, %s30, 1
        %s506 = smul.addr %s505, 16
        %s507 = smul.addr %s506, 4
        %s508 = scalar_lea.vmem %s5, %s507
        %p509 = pneg %p166
        %p510 = pneg %p163
        %p511 = scmp.lt.s32.totalorder %s30, 1
        %s512 = scalar_select %p511, %s30, 1
        %s513 = smul.addr %s512, 32
        %s514 = smul.addr %s513, 4
        %s515 = scalar_lea.vmem %s6, %s514
        %p516 = pneg %p192
        %p517 = pneg %p189
        %p518 = scmp.lt.s32.totalorder %s30, 1
        %s519 = scalar_select %p518, %s30, 1
        %s520 = smul.addr %s519, 2
        %s521 = scalar_lea.vmem %s7, %s520
        %p522 = pneg %p218
        %p523 = pneg %p215
        %s524 = sand.u32 %s30, 1
        %s525 = scalar_lea.sflag [#allocation7], %s524
        %s526 = sand.u32 %s231, 1
        %s527 = smul.addr %s526, 128
        %s528 = scalar_lea.vmem [#allocation6], %s527
        %p529 = pneg %p244
        %p530 = pneg %p241
        %p531 = scmp.lt.s32.totalorder %s30, 1
        %s532 = scalar_select %p531, %s30, 1
        %s533 = smul.addr %s532, 8
        %s534 = scalar_lea.vmem %s9, %s533
        %p535 = pneg %p270
        %p536 = pneg %p267
        %p537 = pneg %p291
        %p538 = pneg %p288
        %p539 = pneg %p312
        %p540 = pneg %p309
        %p541 = pneg %p333
        %p542 = pneg %p330
        %p543 = scmp.lt.s32.totalorder %s30, 1
        %s544 = scalar_select %p543, %s30, 1
        %s545 = smul.addr %s544, 3
        %s546 = scalar_lea.vmem %s4, %s545
        %p547 = scmp.lt.s32.totalorder %s30, 1
        %s548 = scalar_select %p547, %s30, 1
        %s549 = smul.addr %s548, 16
        %s550 = smul.addr %s549, 4
        %s551 = scalar_lea.vmem %s5, %s550
        %p552 = scmp.lt.s32.totalorder %s30, 1
        %s553 = scalar_select %p552, %s30, 1
        %s554 = smul.addr %s553, 32
        %s555 = smul.addr %s554, 4
        %s556 = scalar_lea.vmem %s6, %s555
        %p557 = scmp.lt.s32.totalorder %s30, 1
        %s558 = scalar_select %p557, %s30, 1
        %s559 = smul.addr %s558, 2
        %s560 = scalar_lea.vmem %s7, %s559
        %p561 = scmp.lt.s32.totalorder %s30, 1
        %s562 = scalar_select %p561, %s30, 1
        %s563 = smul.addr %s562, 8
        %s564 = scalar_lea.vmem %s9, %s563
        %p566 = scmp.eq.s32.totalorder %s30, 0
        // Predicated region
        $region81: #{fine_tuning_bert_forward.1} parent=67 // pred_check
          %p567 = pneg %p566
        $region82: #{fine_tuning_bert_forward.1} parent=67 // pred_check_branch
          %569 = sbr.rel (%p567) target = $region84
        $region83: #{fine_tuning_bert_forward.1} parent=67 // pred_region
          %v570 = vld [vmem:[%s0] sm:$0xff]
          %v571 = vld [vmem:[%s0 + $0x8] sm:$0xff]
          %v572 = vld [vmem:[%s2] sm:$0x1]
          %v573 = vld [vmem:[%s2 + $0x1] sm:$0x1]
          %574 = vadd.xlane.f32.xlu0 %v570
          %v575 = vpop.xlane.xlu0 %574
          %576 = vadd.xlane.f32.xlu0 %v571
          %v577 = vpop.xlane.xlu0 %576
          %v578 = vrcp.pop 128.0
          %v579 = vmul.f32 %v575, %v578
          %v580 = vmul.f32 %v577, %v578
          %v581 = vsub.f32 %v570, %v579
          %v582 = vsub.f32 %v571, %v580
          %v583 = vmul.f32 %v581, %v581
          %v584 = vmul.f32 %v582, %v582
          %585 = vadd.xlane.f32.xlu0 %v583
          %v586 = vpop.xlane.xlu0 %585
          %587 = vadd.xlane.f32.xlu0 %v584
          %v588 = vpop.xlane.xlu0 %587
          %v589 = vmul.f32 %v586, %v578
          %v590 = vmul.f32 %v588, %v578
          %v591 = vadd.f32 %v589, 1e-12
          %v592 = vadd.f32 %v590, 1e-12
          %v593 = vrsqrt.pop %v591
          %v594 = vrsqrt.pop %v592
          %v595 = vmul.f32 %v581, %v593
          %v596 = vmul.f32 %v582, %v594
          %v597 = vlaneseq
          %v598 = vshrl.u32 %v597, 7
          %v599 = vsub.s32 0, %v598
          %v600 = vrot.slane %v572, %v599
          %v601 = vmul.f32 %v595, %v600
          %v602 = vmul.f32 %v596, %v600
          %v603 = vlaneseq
          %v604 = vshrl.u32 %v603, 7
          %v605 = vsub.s32 0, %v604
          %v606 = vrot.slane %v573, %v605
          %v607 = vadd.f32 %v601, %v606
          %v608 = vadd.f32 %v602, %v606
          %609 = vst [vmem:[#allocation2] sm:$0xff] %v607
          %610 = vst [vmem:[#allocation2 + $0x8] sm:$0xff] %v608
        $region84: #{fine_tuning_bert_forward.1} parent=67 // pred_fallthru
          _
        %v611 = vld [vmem:[#allocation2] sm:$0xff]
        %v612 = vld [vmem:[#allocation2 + $0x8] sm:$0xff]
        %v613 = vpack.c.bf16 %v612, %v611
        %v614 = vld [vmem:[%s467] sm:$0xff]
        %v615 = vld [vmem:[%s467 + $0x8] sm:$0xf]
        %v616 = vld [vmem:[%s467 + $0xc] sm:$0xff]
        %v617 = vld [vmem:[%s467 + $0x14] sm:$0xf]
        %v618 = vld [vmem:[%s467 + $0x18] sm:$0xff]
        %v619 = vld [vmem:[%s467 + $0x20] sm:$0xf]
        %v620 = vld [vmem:[%s467 + $0x24] sm:$0xff]
        %v621 = vld [vmem:[%s467 + $0x2c] sm:$0xf]
        %v622 = vld [vmem:[%s467 + $0x30] sm:$0xff]
        %v623 = vld [vmem:[%s467 + $0x38] sm:$0xf]
        %v624 = vld [vmem:[%s467 + $0x3c] sm:$0xff]
        %v625 = vld [vmem:[%s467 + $0x44] sm:$0xf]
        %v626 = vld [vmem:[%s467 + $0x48] sm:$0xff]
        %v627 = vld [vmem:[%s467 + $0x50] sm:$0xf]
        %v628 = vld [vmem:[%s467 + $0x54] sm:$0xff]
        %v629 = vld [vmem:[%s467 + $0x5c] sm:$0xf]
        %v630 = vld [vmem:[%s467 + $0x60] sm:$0xff]
        %v631 = vld [vmem:[%s467 + $0x68] sm:$0xf]
        %v632 = vld [vmem:[%s467 + $0x6c] sm:$0xff]
        %v633 = vld [vmem:[%s467 + $0x74] sm:$0xf]
        %v634 = vld [vmem:[%s467 + $0x78] sm:$0xff]
        %v635 = vld [vmem:[%s467 + $0x80] sm:$0xf]
        %v636 = vld [vmem:[%s467 + $0x84] sm:$0xff]
        %v637 = vld [vmem:[%s467 + $0x8c] sm:$0xf]
        %v638 = vld [vmem:[%s467 + $0x90] sm:$0xff]
        %v639 = vld [vmem:[%s467 + $0x98] sm:$0xf]
        %v640 = vld [vmem:[%s467 + $0x9c] sm:$0xff]
        %v641 = vld [vmem:[%s467 + $0xa4] sm:$0xf]
        %v642 = vld [vmem:[%s467 + $0xa8] sm:$0xff]
        %v643 = vld [vmem:[%s467 + $0xb0] sm:$0xf]
        %v644 = vld [vmem:[%s467 + $0xb4] sm:$0xff]
        %v645 = vld [vmem:[%s467 + $0xbc] sm:$0xf]
        %v646 = vld [vmem:[%s546] sm:$0x7]
        %v648 = vlaneseq
        %v649 = vshrl.u32 %v648, 7
        %v650 = vsub.s32 0, %v649
        %v651 = vrot.slane %v646, %v650
        %v652 = vlaneseq
        %v653 = vshrl.u32 %v652, 7
        %v654 = vsub.s32 1, %v653
        %v655 = vrot.slane %v646, %v654
        %v656 = vlaneseq
        %v657 = vshrl.u32 %v656, 7
        %v658 = vsub.s32 2, %v657
        %v659 = vrot.slane %v646, %v658
        %v695 = vunpack.c.l.b16 %v614
        %v696 = vunpack.c.h.b16 %v614
        %v697 = vunpack.c.l.b16 %v615
        %v698 = vunpack.c.l.b16 %v616
        %v699 = vunpack.c.h.b16 %v616
        %v700 = vunpack.c.l.b16 %v617
        %v701 = vunpack.c.l.b16 %v618
        %v702 = vunpack.c.h.b16 %v618
        %v703 = vunpack.c.l.b16 %v619
        %v704 = vunpack.c.l.b16 %v620
        %v705 = vunpack.c.h.b16 %v620
        %v706 = vunpack.c.l.b16 %v621
        %v707 = vunpack.c.l.b16 %v622
        %v708 = vunpack.c.h.b16 %v622
        %v709 = vunpack.c.l.b16 %v623
        %v710 = vunpack.c.l.b16 %v624
        %v711 = vunpack.c.h.b16 %v624
        %v712 = vunpack.c.l.b16 %v625
        %v713 = vunpack.c.l.b16 %v626
        %v714 = vunpack.c.h.b16 %v626
        %v715 = vunpack.c.l.b16 %v627
        %v716 = vunpack.c.l.b16 %v628
        %v717 = vunpack.c.h.b16 %v628
        %v718 = vunpack.c.l.b16 %v629
        %v719 = vunpack.c.l.b16 %v630
        %v720 = vunpack.c.h.b16 %v630
        %v721 = vunpack.c.l.b16 %v631
        %v722 = vunpack.c.l.b16 %v632
        %v723 = vunpack.c.h.b16 %v632
        %v724 = vunpack.c.l.b16 %v633
        %v725 = vunpack.c.l.b16 %v634
        %v726 = vunpack.c.h.b16 %v634
        %v727 = vunpack.c.l.b16 %v635
        %v728 = vunpack.c.l.b16 %v636
        %v729 = vunpack.c.h.b16 %v636
        %v730 = vunpack.c.l.b16 %v637
        %v731 = vunpack.c.l.b16 %v638
        %v732 = vunpack.c.h.b16 %v638
        %v733 = vunpack.c.l.b16 %v639
        %v734 = vunpack.c.l.b16 %v640
        %v735 = vunpack.c.h.b16 %v640
        %v736 = vunpack.c.l.b16 %v641
        %v737 = vunpack.c.l.b16 %v642
        %v738 = vunpack.c.h.b16 %v642
        %v739 = vunpack.c.l.b16 %v643
        %v740 = vunpack.c.l.b16 %v644
        %v741 = vunpack.c.h.b16 %v644
        %v742 = vunpack.c.l.b16 %v645
        %v743 = vpack.c.b16 %v698, %v695
        %v744 = vpack.c.b16 %v699, %v696
        %v745 = vpack.c.b16 %v700, %v697
        %v746 = vpack.c.b16 %v704, %v701
        %v747 = vpack.c.b16 %v705, %v702
        %v748 = vpack.c.b16 %v706, %v703
        %v749 = vpack.c.b16 %v710, %v707
        %v750 = vpack.c.b16 %v711, %v708
        %v751 = vpack.c.b16 %v712, %v709
        %v752 = vpack.c.b16 %v716, %v713
        %v753 = vpack.c.b16 %v717, %v714
        %v754 = vpack.c.b16 %v718, %v715
        %v755 = vpack.c.b16 %v722, %v719
        %v756 = vpack.c.b16 %v723, %v720
        %v757 = vpack.c.b16 %v724, %v721
        %v758 = vpack.c.b16 %v728, %v725
        %v759 = vpack.c.b16 %v729, %v726
        %v760 = vpack.c.b16 %v730, %v727
        %v761 = vpack.c.b16 %v734, %v731
        %v762 = vpack.c.b16 %v735, %v732
        %v763 = vpack.c.b16 %v736, %v733
        %v764 = vpack.c.b16 %v740, %v737
        %v765 = vpack.c.b16 %v741, %v738
        %v766 = vpack.c.b16 %v742, %v739
        %791 = vmatprep.subr.bf16.mxu0 %v765
        %792 = vmatpush1.bf16.msra.mxu0 %v764
        %793 = vmatprep.subr.bf16.mxu0 %v762
        %794 = vmatpush1.bf16.msra.mxu0 %v761
        %795 = vmatprep.subr.bf16.mxu0 %v759
        %796 = vmatpush1.bf16.msra.mxu0 %v758
        %797 = vmatprep.subr.bf16.mxu0 %v756
        %798 = vmatpush1.bf16.msra.mxu0 %v755
        %799 = vmatprep.subr.bf16.mxu0 %v753
        %800 = vmatpush1.bf16.msra.mxu0 %v752
        %801 = vmatprep.subr.bf16.mxu0 %v750
        %802 = vmatpush1.bf16.msra.mxu0 %v749
        %803 = vmatprep.subr.bf16.mxu0 %v747
        %804 = vmatpush1.bf16.msra.mxu0 %v746
        %805 = vmatprep.subr.bf16.mxu0 %v744
        %806 = vmatpush1.bf16.msra.mxu0 %v743
        %807 = vmatprep.subr.bf16.mxu0 0
        %808 = vmatpush2.bf16.msra.mxu0 0
        %809 = vmatprep.subr.bf16.mxu0 0
        %810 = vmatpush2.bf16.msra.mxu0 0
        %811 = vmatprep.subr.bf16.mxu0 0
        %812 = vmatpush2.bf16.msra.mxu0 0
        %813 = vmatprep.subr.bf16.mxu0 0
        %814 = vmatpush2.bf16.msra.mxu0 0
        %815 = vmatprep.subr.bf16.mxu0 0
        %816 = vmatpush2.bf16.msra.mxu0 0
        %817 = vmatprep.subr.bf16.mxu0 0
        %818 = vmatpush2.bf16.msra.mxu0 0
        %819 = vmatprep.subr.bf16.mxu0 0
        %820 = vmatpush2.bf16.msra.mxu0 0
        %821 = vmatprep.subr.bf16.mxu0 0
        %822 = vmatpush2.bf16.msra.mxu0 0
        %823 = vmatprep.mubr.bf16.mxu0 0
        %824 = vmatmul.mubr.bf16.gmra.mxu0 %v613
        %v825 = vpop.f32.mrf.mxu0
        %v826 = vadd.f32 %v651, %v825
        %v827 = vpop.f32.mrf.mxu0
        %v828 = vadd.f32 %v655, %v827
        %v829 = vpop.f32.mrf.mxu0
        %v830 = vadd.f32 %v651, %v829
        %v831 = vpop.f32.mrf.mxu0
        %v832 = vadd.f32 %v655, %v831
        %833 = vdwg.mxu0
        %834 = vmatprep.subr.bf16.mxu0 0
        %835 = vmatpush1.bf16.msra.mxu0 %v766
        %836 = vmatprep.subr.bf16.mxu0 0
        %837 = vmatpush1.bf16.msra.mxu0 %v763
        %838 = vmatprep.subr.bf16.mxu0 0
        %839 = vmatpush1.bf16.msra.mxu0 %v760
        %840 = vmatprep.subr.bf16.mxu0 0
        %841 = vmatpush1.bf16.msra.mxu0 %v757
        %842 = vmatprep.subr.bf16.mxu0 0
        %843 = vmatpush1.bf16.msra.mxu0 %v754
        %844 = vmatprep.subr.bf16.mxu0 0
        %845 = vmatpush1.bf16.msra.mxu0 %v751
        %846 = vmatprep.subr.bf16.mxu0 0
        %847 = vmatpush1.bf16.msra.mxu0 %v748
        %848 = vmatprep.subr.bf16.mxu0 0
        %849 = vmatpush1.bf16.msra.mxu0 %v745
        %850 = vmatprep.subr.bf16.mxu0 0
        %851 = vmatpush2.bf16.msra.mxu0 0
        %852 = vmatprep.subr.bf16.mxu0 0
        %853 = vmatpush2.bf16.msra.mxu0 0
        %854 = vmatprep.subr.bf16.mxu0 0
        %855 = vmatpush2.bf16.msra.mxu0 0
        %856 = vmatprep.subr.bf16.mxu0 0
        %857 = vmatpush2.bf16.msra.mxu0 0
        %858 = vmatprep.subr.bf16.mxu0 0
        %859 = vmatpush2.bf16.msra.mxu0 0
        %860 = vmatprep.subr.bf16.mxu0 0
        %861 = vmatpush2.bf16.msra.mxu0 0
        %862 = vmatprep.subr.bf16.mxu0 0
        %863 = vmatpush2.bf16.msra.mxu0 0
        %864 = vmatprep.subr.bf16.mxu0 0
        %865 = vmatpush2.bf16.msra.mxu0 0
        %866 = vmatprep.mubr.bf16.mxu0 0
        %867 = vmatmul.mubr.bf16.gmra.mxu0 %v613
        %v868 = vpop.f32.mrf.mxu0
        %v869 = vadd.f32 %v659, %v868
        %v870 = vpop.f32.mrf.mxu0
        %v871 = vpop.f32.mrf.mxu0
        %v872 = vadd.f32 %v659, %v871
        %v873 = vpop.f32.mrf.mxu0
        %874 = vdwg.mxu0
        %v875 = vld [vmem:[%s1] sm:$0x1]
        %v876 = vld [vmem:[%s1 + $0x1] sm:$0x1]
        %v877 = vpack.c.bf16 %v826, %v826
        %v878 = vpack.c.bf16 %v830, %v830
        %v879 = vpack.c.bf16 %v828, %v828
        %v880 = vpack.c.bf16 %v832, %v832
        %v881 = vpack.c.bf16 %v869, %v869
        %v882 = vpack.c.bf16 %v872, %v872
        %vm883 = vcmask 261120
        %v885 = vsel %vm883, %v877, 0
        %v888 = vsel %vm883, %v879, 0
        %890 = vmatprep.subr.bf16.mxu0 0
        %891 = vmatpush1.bf16.xpose.msra.mxu0 0
        %892 = vmatprep.subr.bf16.mxu0 0
        %893 = vmatpush1.bf16.xpose.msra.mxu0 0
        %894 = vmatprep.subr.bf16.mxu0 0
        %895 = vmatpush1.bf16.xpose.msra.mxu0 0
        %896 = vmatprep.subr.bf16.mxu0 0
        %897 = vmatpush1.bf16.xpose.msra.mxu0 0
        %898 = vmatprep.subr.bf16.mxu0 0
        %899 = vmatpush1.bf16.xpose.msra.mxu0 0
        %900 = vmatprep.subr.bf16.mxu0 0
        %901 = vmatpush1.bf16.xpose.msra.mxu0 0
        %902 = vmatprep.subr.bf16.mxu0 0
        %903 = vmatpush1.bf16.xpose.msra.mxu0 0
        %904 = vmatprep.subr.bf16.mxu0 0
        %905 = vmatpush1.bf16.xpose.msra.mxu0 %v888
        %906 = vmatprep.subr.bf16.mxu0 0
        %907 = vmatpush2.bf16.xpose.msra.mxu0 0
        %908 = vmatprep.subr.bf16.mxu0 0
        %909 = vmatpush2.bf16.xpose.msra.mxu0 0
        %910 = vmatprep.subr.bf16.mxu0 0
        %911 = vmatpush2.bf16.xpose.msra.mxu0 0
        %912 = vmatprep.subr.bf16.mxu0 0
        %913 = vmatpush2.bf16.xpose.msra.mxu0 0
        %914 = vmatprep.subr.bf16.mxu0 0
        %915 = vmatpush2.bf16.xpose.msra.mxu0 0
        %916 = vmatprep.subr.bf16.mxu0 0
        %917 = vmatpush2.bf16.xpose.msra.mxu0 0
        %918 = vmatprep.subr.bf16.mxu0 0
        %919 = vmatpush2.bf16.xpose.msra.mxu0 0
        %920 = vmatprep.subr.bf16.mxu0 0
        %921 = vmatpush2.bf16.xpose.msra.mxu0 0
        %922 = vmatprep.mubr.bf16.mxu0 0
        %923 = vmatmul.mubr.bf16.gmra.mxu0 %v885
        %v924 = vpop.f32.mrf.mxu0
        %v925 = vadd.f32 0.0, %v924
        %v926 = vpop.f32.mrf.mxu0
        %v927 = vpop.f32.mrf.mxu0
        %v928 = vpop.f32.mrf.mxu0
        %929 = vdwg.mxu0
        %v931 = vsel %vm883, %v878, 0
        %v934 = vsel %vm883, %v880, 0
        %936 = vmatprep.subr.bf16.mxu0 0
        %937 = vmatpush1.bf16.xpose.msra.mxu0 0
        %938 = vmatprep.subr.bf16.mxu0 0
        %939 = vmatpush1.bf16.xpose.msra.mxu0 0
        %940 = vmatprep.subr.bf16.mxu0 0
        %941 = vmatpush1.bf16.xpose.msra.mxu0 0
        %942 = vmatprep.subr.bf16.mxu0 0
        %943 = vmatpush1.bf16.xpose.msra.mxu0 0
        %944 = vmatprep.subr.bf16.mxu0 0
        %945 = vmatpush1.bf16.xpose.msra.mxu0 0
        %946 = vmatprep.subr.bf16.mxu0 0
        %947 = vmatpush1.bf16.xpose.msra.mxu0 0
        %948 = vmatprep.subr.bf16.mxu0 0
        %949 = vmatpush1.bf16.xpose.msra.mxu0 0
        %950 = vmatprep.subr.bf16.mxu0 0
        %951 = vmatpush1.bf16.xpose.msra.mxu0 %v934
        %952 = vmatprep.subr.bf16.mxu0 0
        %953 = vmatpush2.bf16.xpose.msra.mxu0 0
        %954 = vmatprep.subr.bf16.mxu0 0
        %955 = vmatpush2.bf16.xpose.msra.mxu0 0
        %956 = vmatprep.subr.bf16.mxu0 0
        %957 = vmatpush2.bf16.xpose.msra.mxu0 0
        %958 = vmatprep.subr.bf16.mxu0 0
        %959 = vmatpush2.bf16.xpose.msra.mxu0 0
        %960 = vmatprep.subr.bf16.mxu0 0
        %961 = vmatpush2.bf16.xpose.msra.mxu0 0
        %962 = vmatprep.subr.bf16.mxu0 0
        %963 = vmatpush2.bf16.xpose.msra.mxu0 0
        %964 = vmatprep.subr.bf16.mxu0 0
        %965 = vmatpush2.bf16.xpose.msra.mxu0 0
        %966 = vmatprep.subr.bf16.mxu0 0
        %967 = vmatpush2.bf16.xpose.msra.mxu0 0
        %968 = vmatprep.mubr.bf16.mxu0 0
        %969 = vmatmul.mubr.bf16.gmra.mxu0 %v931
        %v970 = vpop.f32.mrf.mxu0
        %v971 = vadd.f32 0.0, %v970
        %v972 = vpop.f32.mrf.mxu0
        %v973 = vpop.f32.mrf.mxu0
        %v974 = vpop.f32.mrf.mxu0
        %975 = vdwg.mxu0
        %v976 = vmul.f32 %v925, 0.17677669
        %v977 = vmul.f32 %v971, 0.17677669
        %v980 = vlaneseq
        %v981 = vshrl.u32 %v980, 7
        %v982 = vsub.s32 0, %v981
        %v983 = vrot.slane %v875, %v982
        %v984 = vlaneseq
        %v985 = vshrl.u32 %v984, 7
        %v986 = vsub.s32 0, %v985
        %v987 = vrot.slane %v876, %v986
        %v990 = vadd.f32 %v976, %v983
        %v991 = vadd.f32 %v977, %v987
        %vm992 = vcmask 64512
        %v993 = vsel %vm992, %v990, -inf
        %994 = vmax.xlane.f32.xlu0 %v993
        %v995 = vpop.xlane.xlu0 %994
        %v996 = vsel %vm992, %v991, -inf
        %997 = vmax.xlane.f32.xlu0 %v996
        %v998 = vpop.xlane.xlu0 %997
        %v999 = vsub.f32 %v990, %v995
        %v1000 = vsub.f32 %v991, %v998
        %v1001 = vmul.f32 %v999, 1.442695
        %v1002 = vpow.pop %v1001
        %v1003 = vmul.f32 %v1000, 1.442695
        %v1004 = vpow.pop %v1003
        %v1005 = vsel %vm992, %v1002, 0.0
        %1006 = vadd.xlane.f32.xlu0 %v1005
        %v1007 = vpop.xlane.xlu0 %1006
        %v1008 = vsel %vm992, %v1004, 0.0
        %1009 = vadd.xlane.f32.xlu0 %v1008
        %v1010 = vpop.xlane.xlu0 %1009
        %v1011 = vrcp.pop %v1007
        %v1012 = vrcp.pop %v1010
        %v1013 = vmul.f32 %v1002, %v1011
        %v1014 = vmul.f32 %v1004, %v1012
        %v1015 = vpack.c.bf16 %v1013, %v1013
        %v1016 = vpack.c.bf16 %v1014, %v1014
        %v1018 = vsel %vm992, %v1015, 0
        %vm1020 = vcmask 1043456
        %v1022 = vsel %vm1020, %v881, 0
        %1024 = vmatprep.subr.bf16.mxu0 0
        %1025 = vmatpush1.bf16.msra.mxu0 0
        %1026 = vmatprep.subr.bf16.mxu0 0
        %1027 = vmatpush1.bf16.msra.mxu0 0
        %1028 = vmatprep.subr.bf16.mxu0 0
        %1029 = vmatpush1.bf16.msra.mxu0 0
        %1030 = vmatprep.subr.bf16.mxu0 0
        %1031 = vmatpush1.bf16.msra.mxu0 0
        %1032 = vmatprep.subr.bf16.mxu0 0
        %1033 = vmatpush1.bf16.msra.mxu0 0
        %1034 = vmatprep.subr.bf16.mxu0 0
        %1035 = vmatpush1.bf16.msra.mxu0 0
        %1036 = vmatprep.subr.bf16.mxu0 0
        %1037 = vmatpush1.bf16.msra.mxu0 0
        %1038 = vmatprep.subr.bf16.mxu0 0
        %1039 = vmatpush1.bf16.msra.mxu0 %v1022
        %1040 = vmatprep.subr.bf16.mxu0 0
        %1041 = vmatpush2.bf16.msra.mxu0 0
        %1042 = vmatprep.subr.bf16.mxu0 0
        %1043 = vmatpush2.bf16.msra.mxu0 0
        %1044 = vmatprep.subr.bf16.mxu0 0
        %1045 = vmatpush2.bf16.msra.mxu0 0
        %1046 = vmatprep.subr.bf16.mxu0 0
        %1047 = vmatpush2.bf16.msra.mxu0 0
        %1048 = vmatprep.subr.bf16.mxu0 0
        %1049 = vmatpush2.bf16.msra.mxu0 0
        %1050 = vmatprep.subr.bf16.mxu0 0
        %1051 = vmatpush2.bf16.msra.mxu0 0
        %1052 = vmatprep.subr.bf16.mxu0 0
        %1053 = vmatpush2.bf16.msra.mxu0 0
        %1054 = vmatprep.subr.bf16.mxu0 0
        %1055 = vmatpush2.bf16.msra.mxu0 0
        %1056 = vmatprep.mubr.bf16.mxu0 0
        %1057 = vmatmul.mubr.bf16.gmra.mxu0 %v1018
        %v1058 = vpop.f32.mrf.mxu0
        %v1059 = vadd.f32 0.0, %v1058
        %v1060 = vpop.f32.mrf.mxu0
        %v1061 = vpop.f32.mrf.mxu0
        %v1062 = vpop.f32.mrf.mxu0
        %1063 = vdwg.mxu0
        %v1065 = vsel %vm992, %v1016, 0
        %v1068 = vsel %vm1020, %v882, 0
        %1070 = vmatprep.subr.bf16.mxu0 0
        %1071 = vmatpush1.bf16.msra.mxu0 0
        %1072 = vmatprep.subr.bf16.mxu0 0
        %1073 = vmatpush1.bf16.msra.mxu0 0
        %1074 = vmatprep.subr.bf16.mxu0 0
        %1075 = vmatpush1.bf16.msra.mxu0 0
        %1076 = vmatprep.subr.bf16.mxu0 0
        %1077 = vmatpush1.bf16.msra.mxu0 0
        %1078 = vmatprep.subr.bf16.mxu0 0
        %1079 = vmatpush1.bf16.msra.mxu0 0
        %1080 = vmatprep.subr.bf16.mxu0 0
        %1081 = vmatpush1.bf16.msra.mxu0 0
        %1082 = vmatprep.subr.bf16.mxu0 0
        %1083 = vmatpush1.bf16.msra.mxu0 0
        %1084 = vmatprep.subr.bf16.mxu0 0
        %1085 = vmatpush1.bf16.msra.mxu0 %v1068
        %1086 = vmatprep.subr.bf16.mxu0 0
        %1087 = vmatpush2.bf16.msra.mxu0 0
        %1088 = vmatprep.subr.bf16.mxu0 0
        %1089 = vmatpush2.bf16.msra.mxu0 0
        %1090 = vmatprep.subr.bf16.mxu0 0
        %1091 = vmatpush2.bf16.msra.mxu0 0
        %1092 = vmatprep.subr.bf16.mxu0 0
        %1093 = vmatpush2.bf16.msra.mxu0 0
        %1094 = vmatprep.subr.bf16.mxu0 0
        %1095 = vmatpush2.bf16.msra.mxu0 0
        %1096 = vmatprep.subr.bf16.mxu0 0
        %1097 = vmatpush2.bf16.msra.mxu0 0
        %1098 = vmatprep.subr.bf16.mxu0 0
        %1099 = vmatpush2.bf16.msra.mxu0 0
        %1100 = vmatprep.subr.bf16.mxu0 0
        %1101 = vmatpush2.bf16.msra.mxu0 0
        %1102 = vmatprep.mubr.bf16.mxu0 0
        %1103 = vmatmul.mubr.bf16.gmra.mxu0 %v1065
        %v1104 = vpop.f32.mrf.mxu0
        %v1105 = vadd.f32 0.0, %v1104
        %v1106 = vpop.f32.mrf.mxu0
        %v1107 = vpop.f32.mrf.mxu0
        %v1108 = vpop.f32.mrf.mxu0
        %1109 = vdwg.mxu0
        %1111 = vrot.lane.b32.xlu0 %v877, 96
        %v1112 = vpop.permute.xlu0 %1111
        %1114 = vrot.lane.b32.xlu0 %v879, 96
        %v1115 = vpop.permute.xlu0 %1114
        %v1117 = vsel %vm883, %v1112, 0
        %v1120 = vsel %vm883, %v1115, 0
        %1122 = vmatprep.subr.bf16.mxu0 0
        %1123 = vmatpush1.bf16.xpose.msra.mxu0 0
        %1124 = vmatprep.subr.bf16.mxu0 0
        %1125 = vmatpush1.bf16.xpose.msra.mxu0 0
        %1126 = vmatprep.subr.bf16.mxu0 0
        %1127 = vmatpush1.bf16.xpose.msra.mxu0 0
        %1128 = vmatprep.subr.bf16.mxu0 0
        %1129 = vmatpush1.bf16.xpose.msra.mxu0 0
        %1130 = vmatprep.subr.bf16.mxu0 0
        %1131 = vmatpush1.bf16.xpose.msra.mxu0 0
        %1132 = vmatprep.subr.bf16.mxu0 0
        %1133 = vmatpush1.bf16.xpose.msra.mxu0 0
        %1134 = vmatprep.subr.bf16.mxu0 0
        %1135 = vmatpush1.bf16.xpose.msra.mxu0 0
        %1136 = vmatprep.subr.bf16.mxu0 0
        %1137 = vmatpush1.bf16.xpose.msra.mxu0 %v1120
        %1138 = vmatprep.subr.bf16.mxu0 0
        %1139 = vmatpush2.bf16.xpose.msra.mxu0 0
        %1140 = vmatprep.subr.bf16.mxu0 0
        %1141 = vmatpush2.bf16.xpose.msra.mxu0 0
        %1142 = vmatprep.subr.bf16.mxu0 0
        %1143 = vmatpush2.bf16.xpose.msra.mxu0 0
        %1144 = vmatprep.subr.bf16.mxu0 0
        %1145 = vmatpush2.bf16.xpose.msra.mxu0 0
        %1146 = vmatprep.subr.bf16.mxu0 0
        %1147 = vmatpush2.bf16.xpose.msra.mxu0 0
        %1148 = vmatprep.subr.bf16.mxu0 0
        %1149 = vmatpush2.bf16.xpose.msra.mxu0 0
        %1150 = vmatprep.subr.bf16.mxu0 0
        %1151 = vmatpush2.bf16.xpose.msra.mxu0 0
        %1152 = vmatprep.subr.bf16.mxu0 0
        %1153 = vmatpush2.bf16.xpose.msra.mxu0 0
        %1154 = vmatprep.mubr.bf16.mxu0 0
        %1155 = vmatmul.mubr.bf16.gmra.mxu0 %v1117
        %v1156 = vpop.f32.mrf.mxu0
        %v1157 = vadd.f32 0.0, %v1156
        %v1158 = vpop.f32.mrf.mxu0
        %v1159 = vpop.f32.mrf.mxu0
        %v1160 = vpop.f32.mrf.mxu0
        %1161 = vdwg.mxu0
        %1163 = vrot.lane.b32.xlu0 %v878, 96
        %v1164 = vpop.permute.xlu0 %1163
        %1166 = vrot.lane.b32.xlu0 %v880, 96
        %v1167 = vpop.permute.xlu0 %1166
        %v1169 = vsel %vm883, %v1164, 0
        %v1172 = vsel %vm883, %v1167, 0
        %1174 = vmatprep.subr.bf16.mxu0 0
        %1175 = vmatpush1.bf16.xpose.msra.mxu0 0
        %1176 = vmatprep.subr.bf16.mxu0 0
        %1177 = vmatpush1.bf16.xpose.msra.mxu0 0
        %1178 = vmatprep.subr.bf16.mxu0 0
        %1179 = vmatpush1.bf16.xpose.msra.mxu0 0
        %1180 = vmatprep.subr.bf16.mxu0 0
        %1181 = vmatpush1.bf16.xpose.msra.mxu0 0
        %1182 = vmatprep.subr.bf16.mxu0 0
        %1183 = vmatpush1.bf16.xpose.msra.mxu0 0
        %1184 = vmatprep.subr.bf16.mxu0 0
        %1185 = vmatpush1.bf16.xpose.msra.mxu0 0
        %1186 = vmatprep.subr.bf16.mxu0 0
        %1187 = vmatpush1.bf16.xpose.msra.mxu0 0
        %1188 = vmatprep.subr.bf16.mxu0 0
        %1189 = vmatpush1.bf16.xpose.msra.mxu0 %v1172
        %1190 = vmatprep.subr.bf16.mxu0 0
        %1191 = vmatpush2.bf16.xpose.msra.mxu0 0
        %1192 = vmatprep.subr.bf16.mxu0 0
        %1193 = vmatpush2.bf16.xpose.msra.mxu0 0
        %1194 = vmatprep.subr.bf16.mxu0 0
        %1195 = vmatpush2.bf16.xpose.msra.mxu0 0
        %1196 = vmatprep.subr.bf16.mxu0 0
        %1197 = vmatpush2.bf16.xpose.msra.mxu0 0
        %1198 = vmatprep.subr.bf16.mxu0 0
        %1199 = vmatpush2.bf16.xpose.msra.mxu0 0
        %1200 = vmatprep.subr.bf16.mxu0 0
        %1201 = vmatpush2.bf16.xpose.msra.mxu0 0
        %1202 = vmatprep.subr.bf16.mxu0 0
        %1203 = vmatpush2.bf16.xpose.msra.mxu0 0
        %1204 = vmatprep.subr.bf16.mxu0 0
        %1205 = vmatpush2.bf16.xpose.msra.mxu0 0
        %1206 = vmatprep.mubr.bf16.mxu0 0
        %1207 = vmatmul.mubr.bf16.gmra.mxu0 %v1169
        %v1208 = vpop.f32.mrf.mxu0
        %v1209 = vadd.f32 0.0, %v1208
        %v1210 = vpop.f32.mrf.mxu0
        %v1211 = vpop.f32.mrf.mxu0
        %v1212 = vpop.f32.mrf.mxu0
        %1213 = vdwg.mxu0
        %v1214 = vmul.f32 %v1157, 0.17677669
        %v1215 = vmul.f32 %v1209, 0.17677669
        %v1216 = vadd.f32 %v1214, %v983
        %v1217 = vadd.f32 %v1215, %v987
        %v1218 = vsel %vm992, %v1216, -inf
        %1219 = vmax.xlane.f32.xlu0 %v1218
        %v1220 = vpop.xlane.xlu0 %1219
        %v1221 = vsel %vm992, %v1217, -inf
        %1222 = vmax.xlane.f32.xlu0 %v1221
        %v1223 = vpop.xlane.xlu0 %1222
        %v1224 = vsub.f32 %v1216, %v1220
        %v1225 = vsub.f32 %v1217, %v1223
        %v1226 = vmul.f32 %v1224, 1.442695
        %v1227 = vpow.pop %v1226
        %v1228 = vmul.f32 %v1225, 1.442695
        %v1229 = vpow.pop %v1228
        %v1230 = vsel %vm992, %v1227, 0.0
        %1231 = vadd.xlane.f32.xlu0 %v1230
        %v1232 = vpop.xlane.xlu0 %1231
        %v1233 = vsel %vm992, %v1229, 0.0
        %1234 = vadd.xlane.f32.xlu0 %v1233
        %v1235 = vpop.xlane.xlu0 %1234
        %v1236 = vrcp.pop %v1232
        %v1237 = vrcp.pop %v1235
        %v1238 = vmul.f32 %v1227, %v1236
        %v1239 = vmul.f32 %v1229, %v1237
        %v1240 = vpack.c.bf16 %v1238, %v1238
        %v1241 = vpack.c.bf16 %v1239, %v1239
        %1243 = vrot.lane.b32.xlu0 %v881, 96
        %v1244 = vpop.permute.xlu0 %1243
        %v1246 = vsel %vm992, %v1240, 0
        %v1249 = vsel %vm1020, %v1244, 0
        %1251 = vmatprep.subr.bf16.mxu0 0
        %1252 = vmatpush1.bf16.msra.mxu0 0
        %1253 = vmatprep.subr.bf16.mxu0 0
        %1254 = vmatpush1.bf16.msra.mxu0 0
        %1255 = vmatprep.subr.bf16.mxu0 0
        %1256 = vmatpush1.bf16.msra.mxu0 0
        %1257 = vmatprep.subr.bf16.mxu0 0
        %1258 = vmatpush1.bf16.msra.mxu0 0
        %1259 = vmatprep.subr.bf16.mxu0 0
        %1260 = vmatpush1.bf16.msra.mxu0 0
        %1261 = vmatprep.subr.bf16.mxu0 0
        %1262 = vmatpush1.bf16.msra.mxu0 0
        %1263 = vmatprep.subr.bf16.mxu0 0
        %1264 = vmatpush1.bf16.msra.mxu0 0
        %1265 = vmatprep.subr.bf16.mxu0 0
        %1266 = vmatpush1.bf16.msra.mxu0 %v1249
        %1267 = vmatprep.subr.bf16.mxu0 0
        %1268 = vmatpush2.bf16.msra.mxu0 0
        %1269 = vmatprep.subr.bf16.mxu0 0
        %1270 = vmatpush2.bf16.msra.mxu0 0
        %1271 = vmatprep.subr.bf16.mxu0 0
        %1272 = vmatpush2.bf16.msra.mxu0 0
        %1273 = vmatprep.subr.bf16.mxu0 0
        %1274 = vmatpush2.bf16.msra.mxu0 0
        %1275 = vmatprep.subr.bf16.mxu0 0
        %1276 = vmatpush2.bf16.msra.mxu0 0
        %1277 = vmatprep.subr.bf16.mxu0 0
        %1278 = vmatpush2.bf16.msra.mxu0 0
        %1279 = vmatprep.subr.bf16.mxu0 0
        %1280 = vmatpush2.bf16.msra.mxu0 0
        %1281 = vmatprep.subr.bf16.mxu0 0
        %1282 = vmatpush2.bf16.msra.mxu0 0
        %1283 = vmatprep.mubr.bf16.mxu0 0
        %1284 = vmatmul.mubr.bf16.gmra.mxu0 %v1246
        %v1285 = vpop.f32.mrf.mxu0
        %v1286 = vadd.f32 0.0, %v1285
        %v1287 = vpop.f32.mrf.mxu0
        %v1288 = vpop.f32.mrf.mxu0
        %v1289 = vpop.f32.mrf.mxu0
        %1290 = vdwg.mxu0
        %1292 = vrot.lane.b32.xlu0 %v882, 96
        %v1293 = vpop.permute.xlu0 %1292
        %v1295 = vsel %vm992, %v1241, 0
        %v1298 = vsel %vm1020, %v1293, 0
        %1300 = vmatprep.subr.bf16.mxu0 0
        %1301 = vmatpush1.bf16.msra.mxu0 0
        %1302 = vmatprep.subr.bf16.mxu0 0
        %1303 = vmatpush1.bf16.msra.mxu0 0
        %1304 = vmatprep.subr.bf16.mxu0 0
        %1305 = vmatpush1.bf16.msra.mxu0 0
        %1306 = vmatprep.subr.bf16.mxu0 0
        %1307 = vmatpush1.bf16.msra.mxu0 0
        %1308 = vmatprep.subr.bf16.mxu0 0
        %1309 = vmatpush1.bf16.msra.mxu0 0
        %1310 = vmatprep.subr.bf16.mxu0 0
        %1311 = vmatpush1.bf16.msra.mxu0 0
        %1312 = vmatprep.subr.bf16.mxu0 0
        %1313 = vmatpush1.bf16.msra.mxu0 0
        %1314 = vmatprep.subr.bf16.mxu0 0
        %1315 = vmatpush1.bf16.msra.mxu0 %v1298
        %1316 = vmatprep.subr.bf16.mxu0 0
        %1317 = vmatpush2.bf16.msra.mxu0 0
        %1318 = vmatprep.subr.bf16.mxu0 0
        %1319 = vmatpush2.bf16.msra.mxu0 0
        %1320 = vmatprep.subr.bf16.mxu0 0
        %1321 = vmatpush2.bf16.msra.mxu0 0
        %1322 = vmatprep.subr.bf16.mxu0 0
        %1323 = vmatpush2.bf16.msra.mxu0 0
        %1324 = vmatprep.subr.bf16.mxu0 0
        %1325 = vmatpush2.bf16.msra.mxu0 0
        %1326 = vmatprep.subr.bf16.mxu0 0
        %1327 = vmatpush2.bf16.msra.mxu0 0
        %1328 = vmatprep.subr.bf16.mxu0 0
        %1329 = vmatpush2.bf16.msra.mxu0 0
        %1330 = vmatprep.subr.bf16.mxu0 0
        %1331 = vmatpush2.bf16.msra.mxu0 0
        %1332 = vmatprep.mubr.bf16.mxu0 0
        %1333 = vmatmul.mubr.bf16.gmra.mxu0 %v1295
        %v1334 = vpop.f32.mrf.mxu0
        %v1335 = vadd.f32 0.0, %v1334
        %v1336 = vpop.f32.mrf.mxu0
        %v1337 = vpop.f32.mrf.mxu0
        %v1338 = vpop.f32.mrf.mxu0
        %1339 = vdwg.mxu0
        %1340 = vrot.lane.b32.xlu0 %v877, 64
        %v1341 = vpop.permute.xlu0 %1340
        %1342 = vrot.lane.b32.xlu0 %v879, 64
        %v1343 = vpop.permute.xlu0 %1342
        %v1345 = vsel %vm883, %v1341, 0
        %v1348 = vsel %vm883, %v1343, 0
        %1350 = vmatprep.subr.bf16.mxu0 0
        %1351 = vmatpush1.bf16.xpose.msra.mxu0 0
        %1352 = vmatprep.subr.bf16.mxu0 0
        %1353 = vmatpush1.bf16.xpose.msra.mxu0 0
        %1354 = vmatprep.subr.bf16.mxu0 0
        %1355 = vmatpush1.bf16.xpose.msra.mxu0 0
        %1356 = vmatprep.subr.bf16.mxu0 0
        %1357 = vmatpush1.bf16.xpose.msra.mxu0 0
        %1358 = vmatprep.subr.bf16.mxu0 0
        %1359 = vmatpush1.bf16.xpose.msra.mxu0 0
        %1360 = vmatprep.subr.bf16.mxu0 0
        %1361 = vmatpush1.bf16.xpose.msra.mxu0 0
        %1362 = vmatprep.subr.bf16.mxu0 0
        %1363 = vmatpush1.bf16.xpose.msra.mxu0 0
        %1364 = vmatprep.subr.bf16.mxu0 0
        %1365 = vmatpush1.bf16.xpose.msra.mxu0 %v1348
        %1366 = vmatprep.subr.bf16.mxu0 0
        %1367 = vmatpush2.bf16.xpose.msra.mxu0 0
        %1368 = vmatprep.subr.bf16.mxu0 0
        %1369 = vmatpush2.bf16.xpose.msra.mxu0 0
        %1370 = vmatprep.subr.bf16.mxu0 0
        %1371 = vmatpush2.bf16.xpose.msra.mxu0 0
        %1372 = vmatprep.subr.bf16.mxu0 0
        %1373 = vmatpush2.bf16.xpose.msra.mxu0 0
        %1374 = vmatprep.subr.bf16.mxu0 0
        %1375 = vmatpush2.bf16.xpose.msra.mxu0 0
        %1376 = vmatprep.subr.bf16.mxu0 0
        %1377 = vmatpush2.bf16.xpose.msra.mxu0 0
        %1378 = vmatprep.subr.bf16.mxu0 0
        %1379 = vmatpush2.bf16.xpose.msra.mxu0 0
        %1380 = vmatprep.subr.bf16.mxu0 0
        %1381 = vmatpush2.bf16.xpose.msra.mxu0 0
        %1382 = vmatprep.mubr.bf16.mxu0 0
        %1383 = vmatmul.mubr.bf16.gmra.mxu0 %v1345
        %v1384 = vpop.f32.mrf.mxu0
        %v1385 = vadd.f32 0.0, %v1384
        %v1386 = vpop.f32.mrf.mxu0
        %v1387 = vpop.f32.mrf.mxu0
        %v1388 = vpop.f32.mrf.mxu0
        %1389 = vdwg.mxu0
        %1390 = vrot.lane.b32.xlu0 %v878, 64
        %v1391 = vpop.permute.xlu0 %1390
        %1392 = vrot.lane.b32.xlu0 %v880, 64
        %v1393 = vpop.permute.xlu0 %1392
        %v1395 = vsel %vm883, %v1391, 0
        %v1398 = vsel %vm883, %v1393, 0
        %1400 = vmatprep.subr.bf16.mxu0 0
        %1401 = vmatpush1.bf16.xpose.msra.mxu0 0
        %1402 = vmatprep.subr.bf16.mxu0 0
        %1403 = vmatpush1.bf16.xpose.msra.mxu0 0
        %1404 = vmatprep.subr.bf16.mxu0 0
        %1405 = vmatpush1.bf16.xpose.msra.mxu0 0
        %1406 = vmatprep.subr.bf16.mxu0 0
        %1407 = vmatpush1.bf16.xpose.msra.mxu0 0
        %1408 = vmatprep.subr.bf16.mxu0 0
        %1409 = vmatpush1.bf16.xpose.msra.mxu0 0
        %1410 = vmatprep.subr.bf16.mxu0 0
        %1411 = vmatpush1.bf16.xpose.msra.mxu0 0
        %1412 = vmatprep.subr.bf16.mxu0 0
        %1413 = vmatpush1.bf16.xpose.msra.mxu0 0
        %1414 = vmatprep.subr.bf16.mxu0 0
        %1415 = vmatpush1.bf16.xpose.msra.mxu0 %v1398
        %1416 = vmatprep.subr.bf16.mxu0 0
        %1417 = vmatpush2.bf16.xpose.msra.mxu0 0
        %1418 = vmatprep.subr.bf16.mxu0 0
        %1419 = vmatpush2.bf16.xpose.msra.mxu0 0
        %1420 = vmatprep.subr.bf16.mxu0 0
        %1421 = vmatpush2.bf16.xpose.msra.mxu0 0
        %1422 = vmatprep.subr.bf16.mxu0 0
        %1423 = vmatpush2.bf16.xpose.msra.mxu0 0
        %1424 = vmatprep.subr.bf16.mxu0 0
        %1425 = vmatpush2.bf16.xpose.msra.mxu0 0
        %1426 = vmatprep.subr.bf16.mxu0 0
        %1427 = vmatpush2.bf16.xpose.msra.mxu0 0
        %1428 = vmatprep.subr.bf16.mxu0 0
        %1429 = vmatpush2.bf16.xpose.msra.mxu0 0
        %1430 = vmatprep.subr.bf16.mxu0 0
        %1431 = vmatpush2.bf16.xpose.msra.mxu0 0
        %1432 = vmatprep.mubr.bf16.mxu0 0
        %1433 = vmatmul.mubr.bf16.gmra.mxu0 %v1395
        %v1434 = vpop.f32.mrf.mxu0
        %v1435 = vadd.f32 0.0, %v1434
        %v1436 = vpop.f32.mrf.mxu0
        %v1437 = vpop.f32.mrf.mxu0
        %v1438 = vpop.f32.mrf.mxu0
        %1439 = vdwg.mxu0
        %v1440 = vmul.f32 %v1385, 0.17677669
        %v1441 = vmul.f32 %v1435, 0.17677669
        %v1442 = vadd.f32 %v1440, %v983
        %v1443 = vadd.f32 %v1441, %v987
        %v1444 = vsel %vm992, %v1442, -inf
        %1445 = vmax.xlane.f32.xlu0 %v1444
        %v1446 = vpop.xlane.xlu0 %1445
        %v1447 = vsel %vm992, %v1443, -inf
        %1448 = vmax.xlane.f32.xlu0 %v1447
        %v1449 = vpop.xlane.xlu0 %1448
        %v1450 = vsub.f32 %v1442, %v1446
        %v1451 = vsub.f32 %v1443, %v1449
        %v1452 = vmul.f32 %v1450, 1.442695
        %v1453 = vpow.pop %v1452
        %v1454 = vmul.f32 %v1451, 1.442695
        %v1455 = vpow.pop %v1454
        %v1456 = vsel %vm992, %v1453, 0.0
        %1457 = vadd.xlane.f32.xlu0 %v1456
        %v1458 = vpop.xlane.xlu0 %1457
        %v1459 = vsel %vm992, %v1455, 0.0
        %1460 = vadd.xlane.f32.xlu0 %v1459
        %v1461 = vpop.xlane.xlu0 %1460
        %v1462 = vrcp.pop %v1458
        %v1463 = vrcp.pop %v1461
        %v1464 = vmul.f32 %v1453, %v1462
        %v1465 = vmul.f32 %v1455, %v1463
        %v1466 = vpack.c.bf16 %v1464, %v1464
        %v1467 = vpack.c.bf16 %v1465, %v1465
        %1468 = vrot.lane.b32.xlu0 %v881, 64
        %v1469 = vpop.permute.xlu0 %1468
        %v1471 = vsel %vm992, %v1466, 0
        %v1474 = vsel %vm1020, %v1469, 0
        %1476 = vmatprep.subr.bf16.mxu0 0
        %1477 = vmatpush1.bf16.msra.mxu0 0
        %1478 = vmatprep.subr.bf16.mxu0 0
        %1479 = vmatpush1.bf16.msra.mxu0 0
        %1480 = vmatprep.subr.bf16.mxu0 0
        %1481 = vmatpush1.bf16.msra.mxu0 0
        %1482 = vmatprep.subr.bf16.mxu0 0
        %1483 = vmatpush1.bf16.msra.mxu0 0
        %1484 = vmatprep.subr.bf16.mxu0 0
        %1485 = vmatpush1.bf16.msra.mxu0 0
        %1486 = vmatprep.subr.bf16.mxu0 0
        %1487 = vmatpush1.bf16.msra.mxu0 0
        %1488 = vmatprep.subr.bf16.mxu0 0
        %1489 = vmatpush1.bf16.msra.mxu0 0
        %1490 = vmatprep.subr.bf16.mxu0 0
        %1491 = vmatpush1.bf16.msra.mxu0 %v1474
        %1492 = vmatprep.subr.bf16.mxu0 0
        %1493 = vmatpush2.bf16.msra.mxu0 0
        %1494 = vmatprep.subr.bf16.mxu0 0
        %1495 = vmatpush2.bf16.msra.mxu0 0
        %1496 = vmatprep.subr.bf16.mxu0 0
        %1497 = vmatpush2.bf16.msra.mxu0 0
        %1498 = vmatprep.subr.bf16.mxu0 0
        %1499 = vmatpush2.bf16.msra.mxu0 0
        %1500 = vmatprep.subr.bf16.mxu0 0
        %1501 = vmatpush2.bf16.msra.mxu0 0
        %1502 = vmatprep.subr.bf16.mxu0 0
        %1503 = vmatpush2.bf16.msra.mxu0 0
        %1504 = vmatprep.subr.bf16.mxu0 0
        %1505 = vmatpush2.bf16.msra.mxu0 0
        %1506 = vmatprep.subr.bf16.mxu0 0
        %1507 = vmatpush2.bf16.msra.mxu0 0
        %1508 = vmatprep.mubr.bf16.mxu0 0
        %1509 = vmatmul.mubr.bf16.gmra.mxu0 %v1471
        %v1510 = vpop.f32.mrf.mxu0
        %v1511 = vadd.f32 0.0, %v1510
        %v1512 = vpop.f32.mrf.mxu0
        %v1513 = vpop.f32.mrf.mxu0
        %v1514 = vpop.f32.mrf.mxu0
        %1515 = vdwg.mxu0
        %1516 = vrot.lane.b32.xlu0 %v882, 64
        %v1517 = vpop.permute.xlu0 %1516
        %v1519 = vsel %vm992, %v1467, 0
        %v1522 = vsel %vm1020, %v1517, 0
        %1524 = vmatprep.subr.bf16.mxu0 0
        %1525 = vmatpush1.bf16.msra.mxu0 0
        %1526 = vmatprep.subr.bf16.mxu0 0
        %1527 = vmatpush1.bf16.msra.mxu0 0
        %1528 = vmatprep.subr.bf16.mxu0 0
        %1529 = vmatpush1.bf16.msra.mxu0 0
        %1530 = vmatprep.subr.bf16.mxu0 0
        %1531 = vmatpush1.bf16.msra.mxu0 0
        %1532 = vmatprep.subr.bf16.mxu0 0
        %1533 = vmatpush1.bf16.msra.mxu0 0
        %1534 = vmatprep.subr.bf16.mxu0 0
        %1535 = vmatpush1.bf16.msra.mxu0 0
        %1536 = vmatprep.subr.bf16.mxu0 0
        %1537 = vmatpush1.bf16.msra.mxu0 0
        %1538 = vmatprep.subr.bf16.mxu0 0
        %1539 = vmatpush1.bf16.msra.mxu0 %v1522
        %1540 = vmatprep.subr.bf16.mxu0 0
        %1541 = vmatpush2.bf16.msra.mxu0 0
        %1542 = vmatprep.subr.bf16.mxu0 0
        %1543 = vmatpush2.bf16.msra.mxu0 0
        %1544 = vmatprep.subr.bf16.mxu0 0
        %1545 = vmatpush2.bf16.msra.mxu0 0
        %1546 = vmatprep.subr.bf16.mxu0 0
        %1547 = vmatpush2.bf16.msra.mxu0 0
        %1548 = vmatprep.subr.bf16.mxu0 0
        %1549 = vmatpush2.bf16.msra.mxu0 0
        %1550 = vmatprep.subr.bf16.mxu0 0
        %1551 = vmatpush2.bf16.msra.mxu0 0
        %1552 = vmatprep.subr.bf16.mxu0 0
        %1553 = vmatpush2.bf16.msra.mxu0 0
        %1554 = vmatprep.subr.bf16.mxu0 0
        %1555 = vmatpush2.bf16.msra.mxu0 0
        %1556 = vmatprep.mubr.bf16.mxu0 0
        %1557 = vmatmul.mubr.bf16.gmra.mxu0 %v1519
        %v1558 = vpop.f32.mrf.mxu0
        %v1559 = vadd.f32 0.0, %v1558
        %v1560 = vpop.f32.mrf.mxu0
        %v1561 = vpop.f32.mrf.mxu0
        %v1562 = vpop.f32.mrf.mxu0
        %1563 = vdwg.mxu0
        %1564 = vrot.lane.b32.xlu0 %v877, 32
        %v1565 = vpop.permute.xlu0 %1564
        %1566 = vrot.lane.b32.xlu0 %v879, 32
        %v1567 = vpop.permute.xlu0 %1566
        %v1569 = vsel %vm883, %v1565, 0
        %v1572 = vsel %vm883, %v1567, 0
        %1574 = vmatprep.subr.bf16.mxu0 0
        %1575 = vmatpush1.bf16.xpose.msra.mxu0 0
        %1576 = vmatprep.subr.bf16.mxu0 0
        %1577 = vmatpush1.bf16.xpose.msra.mxu0 0
        %1578 = vmatprep.subr.bf16.mxu0 0
        %1579 = vmatpush1.bf16.xpose.msra.mxu0 0
        %1580 = vmatprep.subr.bf16.mxu0 0
        %1581 = vmatpush1.bf16.xpose.msra.mxu0 0
        %1582 = vmatprep.subr.bf16.mxu0 0
        %1583 = vmatpush1.bf16.xpose.msra.mxu0 0
        %1584 = vmatprep.subr.bf16.mxu0 0
        %1585 = vmatpush1.bf16.xpose.msra.mxu0 0
        %1586 = vmatprep.subr.bf16.mxu0 0
        %1587 = vmatpush1.bf16.xpose.msra.mxu0 0
        %1588 = vmatprep.subr.bf16.mxu0 0
        %1589 = vmatpush1.bf16.xpose.msra.mxu0 %v1572
        %1590 = vmatprep.subr.bf16.mxu0 0
        %1591 = vmatpush2.bf16.xpose.msra.mxu0 0
        %1592 = vmatprep.subr.bf16.mxu0 0
        %1593 = vmatpush2.bf16.xpose.msra.mxu0 0
        %1594 = vmatprep.subr.bf16.mxu0 0
        %1595 = vmatpush2.bf16.xpose.msra.mxu0 0
        %1596 = vmatprep.subr.bf16.mxu0 0
        %1597 = vmatpush2.bf16.xpose.msra.mxu0 0
        %1598 = vmatprep.subr.bf16.mxu0 0
        %1599 = vmatpush2.bf16.xpose.msra.mxu0 0
        %1600 = vmatprep.subr.bf16.mxu0 0
        %1601 = vmatpush2.bf16.xpose.msra.mxu0 0
        %1602 = vmatprep.subr.bf16.mxu0 0
        %1603 = vmatpush2.bf16.xpose.msra.mxu0 0
        %1604 = vmatprep.subr.bf16.mxu0 0
        %1605 = vmatpush2.bf16.xpose.msra.mxu0 0
        %1606 = vmatprep.mubr.bf16.mxu0 0
        %1607 = vmatmul.mubr.bf16.gmra.mxu0 %v1569
        %v1608 = vpop.f32.mrf.mxu0
        %v1609 = vadd.f32 0.0, %v1608
        %v1610 = vpop.f32.mrf.mxu0
        %v1611 = vpop.f32.mrf.mxu0
        %v1612 = vpop.f32.mrf.mxu0
        %1613 = vdwg.mxu0
        %1614 = vrot.lane.b32.xlu0 %v878, 32
        %v1615 = vpop.permute.xlu0 %1614
        %1616 = vrot.lane.b32.xlu0 %v880, 32
        %v1617 = vpop.permute.xlu0 %1616
        %v1619 = vsel %vm883, %v1615, 0
        %v1622 = vsel %vm883, %v1617, 0
        %1624 = vmatprep.subr.bf16.mxu0 0
        %1625 = vmatpush1.bf16.xpose.msra.mxu0 0
        %1626 = vmatprep.subr.bf16.mxu0 0
        %1627 = vmatpush1.bf16.xpose.msra.mxu0 0
        %1628 = vmatprep.subr.bf16.mxu0 0
        %1629 = vmatpush1.bf16.xpose.msra.mxu0 0
        %1630 = vmatprep.subr.bf16.mxu0 0
        %1631 = vmatpush1.bf16.xpose.msra.mxu0 0
        %1632 = vmatprep.subr.bf16.mxu0 0
        %1633 = vmatpush1.bf16.xpose.msra.mxu0 0
        %1634 = vmatprep.subr.bf16.mxu0 0
        %1635 = vmatpush1.bf16.xpose.msra.mxu0 0
        %1636 = vmatprep.subr.bf16.mxu0 0
        %1637 = vmatpush1.bf16.xpose.msra.mxu0 0
        %1638 = vmatprep.subr.bf16.mxu0 0
        %1639 = vmatpush1.bf16.xpose.msra.mxu0 %v1622
        %1640 = vmatprep.subr.bf16.mxu0 0
        %1641 = vmatpush2.bf16.xpose.msra.mxu0 0
        %1642 = vmatprep.subr.bf16.mxu0 0
        %1643 = vmatpush2.bf16.xpose.msra.mxu0 0
        %1644 = vmatprep.subr.bf16.mxu0 0
        %1645 = vmatpush2.bf16.xpose.msra.mxu0 0
        %1646 = vmatprep.subr.bf16.mxu0 0
        %1647 = vmatpush2.bf16.xpose.msra.mxu0 0
        %1648 = vmatprep.subr.bf16.mxu0 0
        %1649 = vmatpush2.bf16.xpose.msra.mxu0 0
        %1650 = vmatprep.subr.bf16.mxu0 0
        %1651 = vmatpush2.bf16.xpose.msra.mxu0 0
        %1652 = vmatprep.subr.bf16.mxu0 0
        %1653 = vmatpush2.bf16.xpose.msra.mxu0 0
        %1654 = vmatprep.subr.bf16.mxu0 0
        %1655 = vmatpush2.bf16.xpose.msra.mxu0 0
        %1656 = vmatprep.mubr.bf16.mxu0 0
        %1657 = vmatmul.mubr.bf16.gmra.mxu0 %v1619
        %v1658 = vpop.f32.mrf.mxu0
        %v1659 = vadd.f32 0.0, %v1658
        %v1660 = vpop.f32.mrf.mxu0
        %v1661 = vpop.f32.mrf.mxu0
        %v1662 = vpop.f32.mrf.mxu0
        %1663 = vdwg.mxu0
        %v1664 = vmul.f32 %v1609, 0.17677669
        %v1665 = vmul.f32 %v1659, 0.17677669
        %v1666 = vadd.f32 %v1664, %v983
        %v1667 = vadd.f32 %v1665, %v987
        %v1668 = vsel %vm992, %v1666, -inf
        %1669 = vmax.xlane.f32.xlu0 %v1668
        %v1670 = vpop.xlane.xlu0 %1669
        %v1671 = vsel %vm992, %v1667, -inf
        %1672 = vmax.xlane.f32.xlu0 %v1671
        %v1673 = vpop.xlane.xlu0 %1672
        %v1674 = vsub.f32 %v1666, %v1670
        %v1675 = vsub.f32 %v1667, %v1673
        %v1676 = vmul.f32 %v1674, 1.442695
        %v1677 = vpow.pop %v1676
        %v1678 = vmul.f32 %v1675, 1.442695
        %v1679 = vpow.pop %v1678
        %v1680 = vsel %vm992, %v1677, 0.0
        %1681 = vadd.xlane.f32.xlu0 %v1680
        %v1682 = vpop.xlane.xlu0 %1681
        %v1683 = vsel %vm992, %v1679, 0.0
        %1684 = vadd.xlane.f32.xlu0 %v1683
        %v1685 = vpop.xlane.xlu0 %1684
        %v1686 = vrcp.pop %v1682
        %v1687 = vrcp.pop %v1685
        %v1688 = vmul.f32 %v1677, %v1686
        %v1689 = vmul.f32 %v1679, %v1687
        %v1690 = vpack.c.bf16 %v1688, %v1688
        %v1691 = vpack.c.bf16 %v1689, %v1689
        %1692 = vrot.lane.b32.xlu0 %v881, 32
        %v1693 = vpop.permute.xlu0 %1692
        %v1695 = vsel %vm992, %v1690, 0
        %v1698 = vsel %vm1020, %v1693, 0
        %1700 = vmatprep.subr.bf16.mxu0 0
        %1701 = vmatpush1.bf16.msra.mxu0 0
        %1702 = vmatprep.subr.bf16.mxu0 0
        %1703 = vmatpush1.bf16.msra.mxu0 0
        %1704 = vmatprep.subr.bf16.mxu0 0
        %1705 = vmatpush1.bf16.msra.mxu0 0
        %1706 = vmatprep.subr.bf16.mxu0 0
        %1707 = vmatpush1.bf16.msra.mxu0 0
        %1708 = vmatprep.subr.bf16.mxu0 0
        %1709 = vmatpush1.bf16.msra.mxu0 0
        %1710 = vmatprep.subr.bf16.mxu0 0
        %1711 = vmatpush1.bf16.msra.mxu0 0
        %1712 = vmatprep.subr.bf16.mxu0 0
        %1713 = vmatpush1.bf16.msra.mxu0 0
        %1714 = vmatprep.subr.bf16.mxu0 0
        %1715 = vmatpush1.bf16.msra.mxu0 %v1698
        %1716 = vmatprep.subr.bf16.mxu0 0
        %1717 = vmatpush2.bf16.msra.mxu0 0
        %1718 = vmatprep.subr.bf16.mxu0 0
        %1719 = vmatpush2.bf16.msra.mxu0 0
        %1720 = vmatprep.subr.bf16.mxu0 0
        %1721 = vmatpush2.bf16.msra.mxu0 0
        %1722 = vmatprep.subr.bf16.mxu0 0
        %1723 = vmatpush2.bf16.msra.mxu0 0
        %1724 = vmatprep.subr.bf16.mxu0 0
        %1725 = vmatpush2.bf16.msra.mxu0 0
        %1726 = vmatprep.subr.bf16.mxu0 0
        %1727 = vmatpush2.bf16.msra.mxu0 0
        %1728 = vmatprep.subr.bf16.mxu0 0
        %1729 = vmatpush2.bf16.msra.mxu0 0
        %1730 = vmatprep.subr.bf16.mxu0 0
        %1731 = vmatpush2.bf16.msra.mxu0 0
        %1732 = vmatprep.mubr.bf16.mxu0 0
        %1733 = vmatmul.mubr.bf16.gmra.mxu0 %v1695
        %v1734 = vpop.f32.mrf.mxu0
        %v1735 = vadd.f32 0.0, %v1734
        %v1736 = vpop.f32.mrf.mxu0
        %v1737 = vpop.f32.mrf.mxu0
        %v1738 = vpop.f32.mrf.mxu0
        %1739 = vdwg.mxu0
        %1740 = vrot.lane.b32.xlu0 %v882, 32
        %v1741 = vpop.permute.xlu0 %1740
        %v1743 = vsel %vm992, %v1691, 0
        %v1746 = vsel %vm1020, %v1741, 0
        %1748 = vmatprep.subr.bf16.mxu0 0
        %1749 = vmatpush1.bf16.msra.mxu0 0
        %1750 = vmatprep.subr.bf16.mxu0 0
        %1751 = vmatpush1.bf16.msra.mxu0 0
        %1752 = vmatprep.subr.bf16.mxu0 0
        %1753 = vmatpush1.bf16.msra.mxu0 0
        %1754 = vmatprep.subr.bf16.mxu0 0
        %1755 = vmatpush1.bf16.msra.mxu0 0
        %1756 = vmatprep.subr.bf16.mxu0 0
        %1757 = vmatpush1.bf16.msra.mxu0 0
        %1758 = vmatprep.subr.bf16.mxu0 0
        %1759 = vmatpush1.bf16.msra.mxu0 0
        %1760 = vmatprep.subr.bf16.mxu0 0
        %1761 = vmatpush1.bf16.msra.mxu0 0
        %1762 = vmatprep.subr.bf16.mxu0 0
        %1763 = vmatpush1.bf16.msra.mxu0 %v1746
        %1764 = vmatprep.subr.bf16.mxu0 0
        %1765 = vmatpush2.bf16.msra.mxu0 0
        %1766 = vmatprep.subr.bf16.mxu0 0
        %1767 = vmatpush2.bf16.msra.mxu0 0
        %1768 = vmatprep.subr.bf16.mxu0 0
        %1769 = vmatpush2.bf16.msra.mxu0 0
        %1770 = vmatprep.subr.bf16.mxu0 0
        %1771 = vmatpush2.bf16.msra.mxu0 0
        %1772 = vmatprep.subr.bf16.mxu0 0
        %1773 = vmatpush2.bf16.msra.mxu0 0
        %1774 = vmatprep.subr.bf16.mxu0 0
        %1775 = vmatpush2.bf16.msra.mxu0 0
        %1776 = vmatprep.subr.bf16.mxu0 0
        %1777 = vmatpush2.bf16.msra.mxu0 0
        %1778 = vmatprep.subr.bf16.mxu0 0
        %1779 = vmatpush2.bf16.msra.mxu0 0
        %1780 = vmatprep.mubr.bf16.mxu0 0
        %1781 = vmatmul.mubr.bf16.gmra.mxu0 %v1743
        %v1782 = vpop.f32.mrf.mxu0
        %v1783 = vadd.f32 0.0, %v1782
        %v1784 = vpop.f32.mrf.mxu0
        %v1785 = vpop.f32.mrf.mxu0
        %v1786 = vpop.f32.mrf.mxu0
        %1787 = vdwg.mxu0
        %1790 = vrot.lane.b32.xlu0 %v1286, 32
        %v1791 = vpop.permute.xlu0 %1790
        %1792 = vrot.lane.b32.xlu0 %v1335, 32
        %v1793 = vpop.permute.xlu0 %1792
        %1798 = vrot.lane.b32.xlu0 %v1511, 64
        %v1799 = vpop.permute.xlu0 %1798
        %1800 = vrot.lane.b32.xlu0 %v1559, 64
        %v1801 = vpop.permute.xlu0 %1800
        %1806 = vrot.lane.b32.xlu0 %v1735, 96
        %v1807 = vpop.permute.xlu0 %1806
        %1808 = vrot.lane.b32.xlu0 %v1783, 96
        %v1809 = vpop.permute.xlu0 %1808
        %v1812 = vsel %vm883, %v1059, %v1791
        %v1813 = vsel %vm883, %v1105, %v1793
        %vm1814 = vcmask 523264
        %v1815 = vsel %vm1814, %v1812, %v1799
        %v1816 = vsel %vm1814, %v1813, %v1801
        %vm1817 = vcmask 785408
        %v1818 = vsel %vm1817, %v1815, %v1807
        %v1819 = vsel %vm1817, %v1816, %v1809
        %v1820 = vld [vmem:[%s564] sm:$0x3f]
        %v1821 = vpack.c.bf16 %v1819, %v1818
        %v1822 = vld [vmem:[%s551] sm:$0xf]
        %v1823 = vld [vmem:[%s551 + $0x4] sm:$0xf]
        %v1824 = vld [vmem:[%s551 + $0x8] sm:$0xf]
        %v1825 = vld [vmem:[%s551 + $0xc] sm:$0xf]
        %v1826 = vld [vmem:[%s551 + $0x10] sm:$0xf]
        %v1827 = vld [vmem:[%s551 + $0x14] sm:$0xf]
        %v1828 = vld [vmem:[%s551 + $0x18] sm:$0xf]
        %v1829 = vld [vmem:[%s551 + $0x1c] sm:$0xf]
        %v1830 = vld [vmem:[%s551 + $0x20] sm:$0xf]
        %v1831 = vld [vmem:[%s551 + $0x24] sm:$0xf]
        %v1832 = vld [vmem:[%s551 + $0x28] sm:$0xf]
        %v1833 = vld [vmem:[%s551 + $0x2c] sm:$0xf]
        %v1834 = vld [vmem:[%s551 + $0x30] sm:$0xf]
        %v1835 = vld [vmem:[%s551 + $0x34] sm:$0xf]
        %v1836 = vld [vmem:[%s551 + $0x38] sm:$0xf]
        %v1837 = vld [vmem:[%s551 + $0x3c] sm:$0xf]
        %v1838 = vlaneseq
        %v1839 = vshrl.u32 %v1838, 7
        %v1840 = vsub.s32 0, %v1839
        %v1841 = vrot.slane %v1820, %v1840
        %v1858 = vunpack.c.l.b16 %v1822
        %v1859 = vunpack.c.l.b16 %v1823
        %v1860 = vunpack.c.l.b16 %v1824
        %v1861 = vunpack.c.l.b16 %v1825
        %v1862 = vunpack.c.l.b16 %v1826
        %v1863 = vunpack.c.l.b16 %v1827
        %v1864 = vunpack.c.l.b16 %v1828
        %v1865 = vunpack.c.l.b16 %v1829
        %v1866 = vunpack.c.l.b16 %v1830
        %v1867 = vunpack.c.l.b16 %v1831
        %v1868 = vunpack.c.l.b16 %v1832
        %v1869 = vunpack.c.l.b16 %v1833
        %v1870 = vunpack.c.l.b16 %v1834
        %v1871 = vunpack.c.l.b16 %v1835
        %v1872 = vunpack.c.l.b16 %v1836
        %v1873 = vunpack.c.l.b16 %v1837
        %v1874 = vpack.c.b16 %v1859, %v1858
        %v1875 = vpack.c.b16 %v1861, %v1860
        %v1876 = vpack.c.b16 %v1863, %v1862
        %v1877 = vpack.c.b16 %v1865, %v1864
        %v1878 = vpack.c.b16 %v1867, %v1866
        %v1879 = vpack.c.b16 %v1869, %v1868
        %v1880 = vpack.c.b16 %v1871, %v1870
        %v1881 = vpack.c.b16 %v1873, %v1872
        %1890 = vmatprep.subr.bf16.mxu0 0
        %1891 = vmatpush1.bf16.msra.mxu0 %v1881
        %1892 = vmatprep.subr.bf16.mxu0 0
        %1893 = vmatpush1.bf16.msra.mxu0 %v1880
        %1894 = vmatprep.subr.bf16.mxu0 0
        %1895 = vmatpush1.bf16.msra.mxu0 %v1879
        %1896 = vmatprep.subr.bf16.mxu0 0
        %1897 = vmatpush1.bf16.msra.mxu0 %v1878
        %1898 = vmatprep.subr.bf16.mxu0 0
        %1899 = vmatpush1.bf16.msra.mxu0 %v1877
        %1900 = vmatprep.subr.bf16.mxu0 0
        %1901 = vmatpush1.bf16.msra.mxu0 %v1876
        %1902 = vmatprep.subr.bf16.mxu0 0
        %1903 = vmatpush1.bf16.msra.mxu0 %v1875
        %1904 = vmatprep.subr.bf16.mxu0 0
        %1905 = vmatpush1.bf16.msra.mxu0 %v1874
        %1906 = vmatprep.subr.bf16.mxu0 0
        %1907 = vmatpush2.bf16.msra.mxu0 0
        %1908 = vmatprep.subr.bf16.mxu0 0
        %1909 = vmatpush2.bf16.msra.mxu0 0
        %1910 = vmatprep.subr.bf16.mxu0 0
        %1911 = vmatpush2.bf16.msra.mxu0 0
        %1912 = vmatprep.subr.bf16.mxu0 0
        %1913 = vmatpush2.bf16.msra.mxu0 0
        %1914 = vmatprep.subr.bf16.mxu0 0
        %1915 = vmatpush2.bf16.msra.mxu0 0
        %1916 = vmatprep.subr.bf16.mxu0 0
        %1917 = vmatpush2.bf16.msra.mxu0 0
        %1918 = vmatprep.subr.bf16.mxu0 0
        %1919 = vmatpush2.bf16.msra.mxu0 0
        %1920 = vmatprep.subr.bf16.mxu0 0
        %1921 = vmatpush2.bf16.msra.mxu0 0
        %1922 = vmatprep.mubr.bf16.mxu0 0
        %1923 = vmatmul.mubr.bf16.gmra.mxu0 %v1821
        %v1924 = vpop.f32.mrf.mxu0
        %v1925 = vadd.f32 %v1841, %v1924
        %v1926 = vpop.f32.mrf.mxu0
        %v1927 = vpop.f32.mrf.mxu0
        %v1928 = vadd.f32 %v1841, %v1927
        %v1929 = vpop.f32.mrf.mxu0
        %1930 = vdwg.mxu0
        %v1931 = vadd.f32 %v611, %v1925
        %v1932 = vadd.f32 %v612, %v1928
        %1933 = vadd.xlane.f32.xlu0 %v1931
        %v1934 = vpop.xlane.xlu0 %1933
        %1935 = vadd.xlane.f32.xlu0 %v1932
        %v1936 = vpop.xlane.xlu0 %1935
        %v1937 = vrcp.pop 128.0
        %v1938 = vmul.f32 %v1934, %v1937
        %v1939 = vmul.f32 %v1936, %v1937
        %v1940 = vsub.f32 %v1931, %v1938
        %v1941 = vsub.f32 %v1932, %v1939
        %v1942 = vmul.f32 %v1940, %v1940
        %v1943 = vmul.f32 %v1941, %v1941
        %1944 = vadd.xlane.f32.xlu0 %v1942
        %v1945 = vpop.xlane.xlu0 %1944
        %1946 = vadd.xlane.f32.xlu0 %v1943
        %v1947 = vpop.xlane.xlu0 %1946
        %v1948 = vmul.f32 %v1945, %v1937
        %v1949 = vmul.f32 %v1947, %v1937
        %v1950 = vadd.f32 %v1948, 1e-12
        %v1951 = vadd.f32 %v1949, 1e-12
        %v1952 = vrsqrt.pop %v1950
        %v1953 = vrsqrt.pop %v1951
        %v1954 = vmul.f32 %v1940, %v1952
        %v1955 = vmul.f32 %v1941, %v1953
        %v1956 = vlaneseq
        %v1957 = vshrl.u32 %v1956, 7
        %v1958 = vsub.s32 1, %v1957
        %v1959 = vrot.slane %v1820, %v1958
        %v1960 = vmul.f32 %v1954, %v1959
        %v1961 = vmul.f32 %v1955, %v1959
        %v1962 = vlaneseq
        %v1963 = vshrl.u32 %v1962, 7
        %v1964 = vsub.s32 2, %v1963
        %v1965 = vrot.slane %v1820, %v1964
        %v1966 = vadd.f32 %v1960, %v1965
        %v1967 = vadd.f32 %v1961, %v1965
        %v1968 = vpack.c.bf16 %v1967, %v1966
        %v1969 = vld [vmem:[%s556] sm:$0xff]
        %v1970 = vld [vmem:[%s556 + $0x8] sm:$0xff]
        %v1971 = vld [vmem:[%s556 + $0x10] sm:$0xff]
        %v1972 = vld [vmem:[%s556 + $0x18] sm:$0xff]
        %v1973 = vld [vmem:[%s556 + $0x20] sm:$0xff]
        %v1974 = vld [vmem:[%s556 + $0x28] sm:$0xff]
        %v1975 = vld [vmem:[%s556 + $0x30] sm:$0xff]
        %v1976 = vld [vmem:[%s556 + $0x38] sm:$0xff]
        %v1977 = vld [vmem:[%s556 + $0x40] sm:$0xff]
        %v1978 = vld [vmem:[%s556 + $0x48] sm:$0xff]
        %v1979 = vld [vmem:[%s556 + $0x50] sm:$0xff]
        %v1980 = vld [vmem:[%s556 + $0x58] sm:$0xff]
        %v1981 = vld [vmem:[%s556 + $0x60] sm:$0xff]
        %v1982 = vld [vmem:[%s556 + $0x68] sm:$0xff]
        %v1983 = vld [vmem:[%s556 + $0x70] sm:$0xff]
        %v1984 = vld [vmem:[%s556 + $0x78] sm:$0xff]
        %v1985 = vld [vmem:[%s560] sm:$0x3]
        %v1987 = vlaneseq
        %v1988 = vshrl.u32 %v1987, 7
        %v1989 = vsub.s32 0, %v1988
        %v1990 = vrot.slane %v1985, %v1989
        %v1991 = vlaneseq
        %v1992 = vshrl.u32 %v1991, 7
        %v1993 = vsub.s32 1, %v1992
        %v1994 = vrot.slane %v1985, %v1993
        %v2013 = vunpack.c.l.b16 %v1969
        %v2014 = vunpack.c.h.b16 %v1969
        %v2015 = vunpack.c.l.b16 %v1970
        %v2016 = vunpack.c.h.b16 %v1970
        %v2017 = vunpack.c.l.b16 %v1971
        %v2018 = vunpack.c.h.b16 %v1971
        %v2019 = vunpack.c.l.b16 %v1972
        %v2020 = vunpack.c.h.b16 %v1972
        %v2021 = vunpack.c.l.b16 %v1973
        %v2022 = vunpack.c.h.b16 %v1973
        %v2023 = vunpack.c.l.b16 %v1974
        %v2024 = vunpack.c.h.b16 %v1974
        %v2025 = vunpack.c.l.b16 %v1975
        %v2026 = vunpack.c.h.b16 %v1975
        %v2027 = vunpack.c.l.b16 %v1976
        %v2028 = vunpack.c.h.b16 %v1976
        %v2029 = vunpack.c.l.b16 %v1977
        %v2030 = vunpack.c.h.b16 %v1977
        %v2031 = vunpack.c.l.b16 %v1978
        %v2032 = vunpack.c.h.b16 %v1978
        %v2033 = vunpack.c.l.b16 %v1979
        %v2034 = vunpack.c.h.b16 %v1979
        %v2035 = vunpack.c.l.b16 %v1980
        %v2036 = vunpack.c.h.b16 %v1980
        %v2037 = vunpack.c.l.b16 %v1981
        %v2038 = vunpack.c.h.b16 %v1981
        %v2039 = vunpack.c.l.b16 %v1982
        %v2040 = vunpack.c.h.b16 %v1982
        %v2041 = vunpack.c.l.b16 %v1983
        %v2042 = vunpack.c.h.b16 %v1983
        %v2043 = vunpack.c.l.b16 %v1984
        %v2044 = vunpack.c.h.b16 %v1984
        %v2045 = vpack.c.b16 %v2015, %v2013
        %v2046 = vpack.c.b16 %v2016, %v2014
        %v2047 = vpack.c.b16 %v2019, %v2017
        %v2048 = vpack.c.b16 %v2020, %v2018
        %v2049 = vpack.c.b16 %v2023, %v2021
        %v2050 = vpack.c.b16 %v2024, %v2022
        %v2051 = vpack.c.b16 %v2027, %v2025
        %v2052 = vpack.c.b16 %v2028, %v2026
        %v2053 = vpack.c.b16 %v2031, %v2029
        %v2054 = vpack.c.b16 %v2032, %v2030
        %v2055 = vpack.c.b16 %v2035, %v2033
        %v2056 = vpack.c.b16 %v2036, %v2034
        %v2057 = vpack.c.b16 %v2039, %v2037
        %v2058 = vpack.c.b16 %v2040, %v2038
        %v2059 = vpack.c.b16 %v2043, %v2041
        %v2060 = vpack.c.b16 %v2044, %v2042
        %2077 = vmatprep.subr.bf16.mxu0 %v2060
        %2078 = vmatpush1.bf16.msra.mxu0 %v2059
        %2079 = vmatprep.subr.bf16.mxu0 %v2058
        %2080 = vmatpush1.bf16.msra.mxu0 %v2057
        %2081 = vmatprep.subr.bf16.mxu0 %v2056
        %2082 = vmatpush1.bf16.msra.mxu0 %v2055
        %2083 = vmatprep.subr.bf16.mxu0 %v2054
        %2084 = vmatpush1.bf16.msra.mxu0 %v2053
        %2085 = vmatprep.subr.bf16.mxu0 %v2052
        %2086 = vmatpush1.bf16.msra.mxu0 %v2051
        %2087 = vmatprep.subr.bf16.mxu0 %v2050
        %2088 = vmatpush1.bf16.msra.mxu0 %v2049
        %2089 = vmatprep.subr.bf16.mxu0 %v2048
        %2090 = vmatpush1.bf16.msra.mxu0 %v2047
        %2091 = vmatprep.subr.bf16.mxu0 %v2046
        %2092 = vmatpush1.bf16.msra.mxu0 %v2045
        %2093 = vmatprep.subr.bf16.mxu0 0
        %2094 = vmatpush2.bf16.msra.mxu0 0
        %2095 = vmatprep.subr.bf16.mxu0 0
        %2096 = vmatpush2.bf16.msra.mxu0 0
        %2097 = vmatprep.subr.bf16.mxu0 0
        %2098 = vmatpush2.bf16.msra.mxu0 0
        %2099 = vmatprep.subr.bf16.mxu0 0
        %2100 = vmatpush2.bf16.msra.mxu0 0
        %2101 = vmatprep.subr.bf16.mxu0 0
        %2102 = vmatpush2.bf16.msra.mxu0 0
        %2103 = vmatprep.subr.bf16.mxu0 0
        %2104 = vmatpush2.bf16.msra.mxu0 0
        %2105 = vmatprep.subr.bf16.mxu0 0
        %2106 = vmatpush2.bf16.msra.mxu0 0
        %2107 = vmatprep.subr.bf16.mxu0 0
        %2108 = vmatpush2.bf16.msra.mxu0 0
        %2109 = vmatprep.mubr.bf16.mxu0 0
        %2110 = vmatmul.mubr.bf16.gmra.mxu0 %v1968
        %v2111 = vpop.f32.mrf.mxu0
        %v2112 = vadd.f32 %v1990, %v2111
        %v2113 = vpop.f32.mrf.mxu0
        %v2114 = vadd.f32 %v1994, %v2113
        %v2115 = vpop.f32.mrf.mxu0
        %v2116 = vadd.f32 %v1990, %v2115
        %v2117 = vpop.f32.mrf.mxu0
        %v2118 = vadd.f32 %v1994, %v2117
        %2119 = vdwg.mxu0
        %v2120 = vmul.f32 %v2112, 0.5
        %v2121 = vmul.f32 %v2114, 0.5
        %v2122 = vmul.f32 %v2116, 0.5
        %v2123 = vmul.f32 %v2118, 0.5
        %v2124 = vmul.f32 %v2112, 0.044715
        %v2125 = vmul.f32 %v2114, 0.044715
        %v2126 = vmul.f32 %v2116, 0.044715
        %v2127 = vmul.f32 %v2118, 0.044715
        %v2128 = vmul.f32 %v2124, %v2112
        %v2129 = vmul.f32 %v2125, %v2114
        %v2130 = vmul.f32 %v2126, %v2116
        %v2131 = vmul.f32 %v2127, %v2118
        %v2132 = vmul.f32 %v2128, %v2112
        %v2133 = vmul.f32 %v2129, %v2114
        %v2134 = vmul.f32 %v2130, %v2116
        %v2135 = vmul.f32 %v2131, %v2118
        %v2136 = vadd.f32 %v2112, %v2132
        %v2137 = vadd.f32 %v2114, %v2133
        %v2138 = vadd.f32 %v2116, %v2134
        %v2139 = vadd.f32 %v2118, %v2135
        %v2140 = vmul.f32 %v2136, 0.7978846
        %v2141 = vmul.f32 %v2137, 0.7978846
        %v2142 = vmul.f32 %v2138, 0.7978846
        %v2143 = vmul.f32 %v2139, 0.7978846
        %v2144 = vtanh.pop %v2140
        %v2145 = vtanh.pop %v2141
        %v2146 = vtanh.pop %v2142
        %v2147 = vtanh.pop %v2143
        %v2148 = vadd.f32 %v2144, 1.0
        %v2149 = vadd.f32 %v2145, 1.0
        %v2150 = vadd.f32 %v2146, 1.0
        %v2151 = vadd.f32 %v2147, 1.0
        %v2152 = vmul.f32 %v2120, %v2148
        %v2153 = vmul.f32 %v2121, %v2149
        %v2154 = vmul.f32 %v2122, %v2150
        %v2155 = vmul.f32 %v2123, %v2151
        %v2156 = vpack.c.bf16 %v2154, %v2152
        %v2157 = vpack.c.bf16 %v2155, %v2153
        %v2158 = vld [vmem:[%s476] sm:$0xf]
        %v2159 = vld [vmem:[%s476 + $0x4] sm:$0xf]
        %v2160 = vld [vmem:[%s476 + $0x8] sm:$0xf]
        %v2161 = vld [vmem:[%s476 + $0xc] sm:$0xf]
        %v2162 = vld [vmem:[%s476 + $0x10] sm:$0xf]
        %v2163 = vld [vmem:[%s476 + $0x14] sm:$0xf]
        %v2164 = vld [vmem:[%s476 + $0x18] sm:$0xf]
        %v2165 = vld [vmem:[%s476 + $0x1c] sm:$0xf]
        %v2166 = vld [vmem:[%s476 + $0x20] sm:$0xf]
        %v2167 = vld [vmem:[%s476 + $0x24] sm:$0xf]
        %v2168 = vld [vmem:[%s476 + $0x28] sm:$0xf]
        %v2169 = vld [vmem:[%s476 + $0x2c] sm:$0xf]
        %v2170 = vld [vmem:[%s476 + $0x30] sm:$0xf]
        %v2171 = vld [vmem:[%s476 + $0x34] sm:$0xf]
        %v2172 = vld [vmem:[%s476 + $0x38] sm:$0xf]
        %v2173 = vld [vmem:[%s476 + $0x3c] sm:$0xf]
        %v2174 = vld [vmem:[%s476 + $0x40] sm:$0xf]
        %v2175 = vld [vmem:[%s476 + $0x44] sm:$0xf]
        %v2176 = vld [vmem:[%s476 + $0x48] sm:$0xf]
        %v2177 = vld [vmem:[%s476 + $0x4c] sm:$0xf]
        %v2178 = vld [vmem:[%s476 + $0x50] sm:$0xf]
        %v2179 = vld [vmem:[%s476 + $0x54] sm:$0xf]
        %v2180 = vld [vmem:[%s476 + $0x58] sm:$0xf]
        %v2181 = vld [vmem:[%s476 + $0x5c] sm:$0xf]
        %v2182 = vld [vmem:[%s476 + $0x60] sm:$0xf]
        %v2183 = vld [vmem:[%s476 + $0x64] sm:$0xf]
        %v2184 = vld [vmem:[%s476 + $0x68] sm:$0xf]
        %v2185 = vld [vmem:[%s476 + $0x6c] sm:$0xf]
        %v2186 = vld [vmem:[%s476 + $0x70] sm:$0xf]
        %v2187 = vld [vmem:[%s476 + $0x74] sm:$0xf]
        %v2188 = vld [vmem:[%s476 + $0x78] sm:$0xf]
        %v2189 = vld [vmem:[%s476 + $0x7c] sm:$0xf]
        %v2190 = vlaneseq
        %v2191 = vshrl.u32 %v2190, 7
        %v2192 = vsub.s32 3, %v2191
        %v2193 = vrot.slane %v1820, %v2192
        %v2226 = vunpack.c.l.b16 %v2158
        %v2227 = vunpack.c.l.b16 %v2159
        %v2228 = vunpack.c.l.b16 %v2160
        %v2229 = vunpack.c.l.b16 %v2161
        %v2230 = vunpack.c.l.b16 %v2162
        %v2231 = vunpack.c.l.b16 %v2163
        %v2232 = vunpack.c.l.b16 %v2164
        %v2233 = vunpack.c.l.b16 %v2165
        %v2234 = vunpack.c.l.b16 %v2166
        %v2235 = vunpack.c.l.b16 %v2167
        %v2236 = vunpack.c.l.b16 %v2168
        %v2237 = vunpack.c.l.b16 %v2169
        %v2238 = vunpack.c.l.b16 %v2170
        %v2239 = vunpack.c.l.b16 %v2171
        %v2240 = vunpack.c.l.b16 %v2172
        %v2241 = vunpack.c.l.b16 %v2173
        %v2242 = vunpack.c.l.b16 %v2174
        %v2243 = vunpack.c.l.b16 %v2175
        %v2244 = vunpack.c.l.b16 %v2176
        %v2245 = vunpack.c.l.b16 %v2177
        %v2246 = vunpack.c.l.b16 %v2178
        %v2247 = vunpack.c.l.b16 %v2179
        %v2248 = vunpack.c.l.b16 %v2180
        %v2249 = vunpack.c.l.b16 %v2181
        %v2250 = vunpack.c.l.b16 %v2182
        %v2251 = vunpack.c.l.b16 %v2183
        %v2252 = vunpack.c.l.b16 %v2184
        %v2253 = vunpack.c.l.b16 %v2185
        %v2254 = vunpack.c.l.b16 %v2186
        %v2255 = vunpack.c.l.b16 %v2187
        %v2256 = vunpack.c.l.b16 %v2188
        %v2257 = vunpack.c.l.b16 %v2189
        %v2258 = vpack.c.b16 %v2227, %v2226
        %v2259 = vpack.c.b16 %v2229, %v2228
        %v2260 = vpack.c.b16 %v2231, %v2230
        %v2261 = vpack.c.b16 %v2233, %v2232
        %v2262 = vpack.c.b16 %v2235, %v2234
        %v2263 = vpack.c.b16 %v2237, %v2236
        %v2264 = vpack.c.b16 %v2239, %v2238
        %v2265 = vpack.c.b16 %v2241, %v2240
        %v2266 = vpack.c.b16 %v2243, %v2242
        %v2267 = vpack.c.b16 %v2245, %v2244
        %v2268 = vpack.c.b16 %v2247, %v2246
        %v2269 = vpack.c.b16 %v2249, %v2248
        %v2270 = vpack.c.b16 %v2251, %v2250
        %v2271 = vpack.c.b16 %v2253, %v2252
        %v2272 = vpack.c.b16 %v2255, %v2254
        %v2273 = vpack.c.b16 %v2257, %v2256
        %2290 = vmatprep.subr.bf16.mxu0 0
        %2291 = vmatpush1.bf16.msra.mxu0 %v2265
        %2292 = vmatprep.subr.bf16.mxu0 0
        %2293 = vmatpush1.bf16.msra.mxu0 %v2264
        %2294 = vmatprep.subr.bf16.mxu0 0
        %2295 = vmatpush1.bf16.msra.mxu0 %v2263
        %2296 = vmatprep.subr.bf16.mxu0 0
        %2297 = vmatpush1.bf16.msra.mxu0 %v2262
        %2298 = vmatprep.subr.bf16.mxu0 0
        %2299 = vmatpush1.bf16.msra.mxu0 %v2261
        %2300 = vmatprep.subr.bf16.mxu0 0
        %2301 = vmatpush1.bf16.msra.mxu0 %v2260
        %2302 = vmatprep.subr.bf16.mxu0 0
        %2303 = vmatpush1.bf16.msra.mxu0 %v2259
        %2304 = vmatprep.subr.bf16.mxu0 0
        %2305 = vmatpush1.bf16.msra.mxu0 %v2258
        %2306 = vmatprep.subr.bf16.mxu0 0
        %2307 = vmatpush2.bf16.msra.mxu0 %v2273
        %2308 = vmatprep.subr.bf16.mxu0 0
        %2309 = vmatpush2.bf16.msra.mxu0 %v2272
        %2310 = vmatprep.subr.bf16.mxu0 0
        %2311 = vmatpush2.bf16.msra.mxu0 %v2271
        %2312 = vmatprep.subr.bf16.mxu0 0
        %2313 = vmatpush2.bf16.msra.mxu0 %v2270
        %2314 = vmatprep.subr.bf16.mxu0 0
        %2315 = vmatpush2.bf16.msra.mxu0 %v2269
        %2316 = vmatprep.subr.bf16.mxu0 0
        %2317 = vmatpush2.bf16.msra.mxu0 %v2268
        %2318 = vmatprep.subr.bf16.mxu0 0
        %2319 = vmatpush2.bf16.msra.mxu0 %v2267
        %2320 = vmatprep.subr.bf16.mxu0 0
        %2321 = vmatpush2.bf16.msra.mxu0 %v2266
        %2322 = vmatprep.mubr.bf16.mxu0 %v2157
        %2323 = vmatmul.mubr.bf16.gmra.mxu0 %v2156
        %v2324 = vpop.f32.mrf.mxu0
        %v2325 = vadd.f32 %v2193, %v2324
        %v2326 = vpop.f32.mrf.mxu0
        %v2327 = vpop.f32.mrf.mxu0
        %v2328 = vadd.f32 %v2193, %v2327
        %v2329 = vpop.f32.mrf.mxu0
        %2330 = vdwg.mxu0
        %v2331 = vadd.f32 %v1966, %v2325
        %v2332 = vadd.f32 %v1967, %v2328
        %2333 = vadd.xlane.f32.xlu0 %v2331
        %v2334 = vpop.xlane.xlu0 %2333
        %2335 = vadd.xlane.f32.xlu0 %v2332
        %v2336 = vpop.xlane.xlu0 %2335
        %v2337 = vmul.f32 %v2334, %v1937
        %v2338 = vmul.f32 %v2336, %v1937
        %v2339 = vsub.f32 %v2331, %v2337
        %v2340 = vsub.f32 %v2332, %v2338
        %v2341 = vmul.f32 %v2339, %v2339
        %v2342 = vmul.f32 %v2340, %v2340
        %2343 = vadd.xlane.f32.xlu0 %v2341
        %v2344 = vpop.xlane.xlu0 %2343
        %2345 = vadd.xlane.f32.xlu0 %v2342
        %v2346 = vpop.xlane.xlu0 %2345
        %v2347 = vmul.f32 %v2344, %v1937
        %v2348 = vmul.f32 %v2346, %v1937
        %v2349 = vadd.f32 %v2347, 1e-12
        %v2350 = vadd.f32 %v2348, 1e-12
        %v2351 = vrsqrt.pop %v2349
        %v2352 = vrsqrt.pop %v2350
        %v2353 = vmul.f32 %v2339, %v2351
        %v2354 = vmul.f32 %v2340, %v2352
        %v2355 = vlaneseq
        %v2356 = vshrl.u32 %v2355, 7
        %v2357 = vsub.s32 4, %v2356
        %v2358 = vrot.slane %v1820, %v2357
        %v2359 = vmul.f32 %v2353, %v2358
        %v2360 = vmul.f32 %v2354, %v2358
        %v2361 = vlaneseq
        %v2362 = vshrl.u32 %v2361, 7
        %v2363 = vsub.s32 5, %v2362
        %v2364 = vrot.slane %v1820, %v2363
        %v2365 = vadd.f32 %v2359, %v2364
        %v2366 = vadd.f32 %v2360, %v2364
        %2367 = vst [vmem:[#allocation2] sm:$0xff] %v2365
        %2368 = vst [vmem:[#allocation2 + $0x8] sm:$0xff] %v2366
        %p2369 = scmp.eq.s32.totalorder %s30, 1
        // Predicated region
        $region85: #{fine_tuning_bert_forward.1} parent=67 // pred_check
          %p2370 = pneg %p2369
        $region86: #{fine_tuning_bert_forward.1} parent=67 // pred_check_branch
          %2372 = sbr.rel (%p2370) target = $region88
        $region87: #{fine_tuning_bert_forward.1} parent=67 // pred_region
          %v2374 = vrot.slane %v2366, 7
          %vm2376 = vcmask 1040384
          %v2377 = vsel %vm2376, %v2365, %v2374
          %v2378 = vpack.c.bf16 %v2377, %v2377
          %v2379 = vld [vmem:[#allocation8] sm:$0xff]
          %v2380 = vld [vmem:[#allocation8 + $0x8] sm:$0xff]
          %v2381 = vld [vmem:[#allocation8 + $0x10] sm:$0xff]
          %v2382 = vld [vmem:[#allocation8 + $0x18] sm:$0xff]
          %v2383 = vld [vmem:[#allocation8 + $0x20] sm:$0xff]
          %v2384 = vld [vmem:[#allocation8 + $0x28] sm:$0xff]
          %v2385 = vld [vmem:[#allocation8 + $0x30] sm:$0xff]
          %v2386 = vld [vmem:[#allocation8 + $0x38] sm:$0xff]
          %v2387 = vld [vmem:[#allocation8 + $0x40] sm:$0xff]
          %v2388 = vld [vmem:[#allocation8 + $0x48] sm:$0xff]
          %v2389 = vld [vmem:[#allocation8 + $0x50] sm:$0xff]
          %v2390 = vld [vmem:[#allocation8 + $0x58] sm:$0xff]
          %v2391 = vld [vmem:[#allocation8 + $0x60] sm:$0xff]
          %v2392 = vld [vmem:[#allocation8 + $0x68] sm:$0xff]
          %v2393 = vld [vmem:[#allocation8 + $0x70] sm:$0xff]
          %v2394 = vld [vmem:[#allocation8 + $0x78] sm:$0xff]
          %v2395 = vld [vmem:[#allocation8 + $0x80] sm:$0xff]
          %v2396 = vld [vmem:[#allocation8 + $0x88] sm:$0xff]
          %v2397 = vld [vmem:[#allocation8 + $0x90] sm:$0xff]
          %v2398 = vld [vmem:[#allocation8 + $0x98] sm:$0xff]
          %v2399 = vld [vmem:[#allocation8 + $0xa0] sm:$0xff]
          %v2400 = vld [vmem:[#allocation8 + $0xa8] sm:$0xff]
          %v2401 = vld [vmem:[#allocation8 + $0xb0] sm:$0xff]
          %v2402 = vld [vmem:[#allocation8 + $0xb8] sm:$0xff]
          %v2403 = vld [vmem:[#allocation8 + $0xc0] sm:$0xff]
          %v2404 = vld [vmem:[#allocation8 + $0xc8] sm:$0xff]
          %v2405 = vld [vmem:[#allocation8 + $0xd0] sm:$0xff]
          %v2406 = vld [vmem:[#allocation8 + $0xd8] sm:$0xff]
          %v2407 = vld [vmem:[#allocation8 + $0xe0] sm:$0xff]
          %v2408 = vld [vmem:[#allocation8 + $0xe8] sm:$0xff]
          %v2409 = vld [vmem:[#allocation8 + $0xf0] sm:$0xff]
          %v2410 = vld [vmem:[#allocation8 + $0xf8] sm:$0xff]
          %v2411 = vld [vmem:[%s11] sm:$0xf]
          %v2413 = vlaneseq
          %v2414 = vshrl.u32 %v2413, 7
          %v2415 = vsub.s32 0, %v2414
          %v2416 = vrot.slane %v2411, %v2415
          %v2417 = vlaneseq
          %v2418 = vshrl.u32 %v2417, 7
          %v2419 = vsub.s32 1, %v2418
          %v2420 = vrot.slane %v2411, %v2419
          %v2421 = vlaneseq
          %v2422 = vshrl.u32 %v2421, 7
          %v2423 = vsub.s32 2, %v2422
          %v2424 = vrot.slane %v2411, %v2423
          %v2425 = vlaneseq
          %v2426 = vshrl.u32 %v2425, 7
          %v2427 = vsub.s32 3, %v2426
          %v2428 = vrot.slane %v2411, %v2427
          %v2465 = vunpack.c.l.b16 %v2379
          %v2466 = vunpack.c.h.b16 %v2379
          %v2467 = vunpack.c.l.b16 %v2380
          %v2468 = vunpack.c.h.b16 %v2380
          %v2469 = vunpack.c.l.b16 %v2381
          %v2470 = vunpack.c.h.b16 %v2381
          %v2471 = vunpack.c.l.b16 %v2382
          %v2472 = vunpack.c.h.b16 %v2382
          %v2473 = vunpack.c.l.b16 %v2383
          %v2474 = vunpack.c.h.b16 %v2383
          %v2475 = vunpack.c.l.b16 %v2384
          %v2476 = vunpack.c.h.b16 %v2384
          %v2477 = vunpack.c.l.b16 %v2385
          %v2478 = vunpack.c.h.b16 %v2385
          %v2479 = vunpack.c.l.b16 %v2386
          %v2480 = vunpack.c.h.b16 %v2386
          %v2481 = vunpack.c.l.b16 %v2387
          %v2482 = vunpack.c.h.b16 %v2387
          %v2483 = vunpack.c.l.b16 %v2388
          %v2484 = vunpack.c.h.b16 %v2388
          %v2485 = vunpack.c.l.b16 %v2389
          %v2486 = vunpack.c.h.b16 %v2389
          %v2487 = vunpack.c.l.b16 %v2390
          %v2488 = vunpack.c.h.b16 %v2390
          %v2489 = vunpack.c.l.b16 %v2391
          %v2490 = vunpack.c.h.b16 %v2391
          %v2491 = vunpack.c.l.b16 %v2392
          %v2492 = vunpack.c.h.b16 %v2392
          %v2493 = vunpack.c.l.b16 %v2393
          %v2494 = vunpack.c.h.b16 %v2393
          %v2495 = vunpack.c.l.b16 %v2394
          %v2496 = vunpack.c.h.b16 %v2394
          %v2497 = vunpack.c.l.b16 %v2395
          %v2498 = vunpack.c.h.b16 %v2395
          %v2499 = vunpack.c.l.b16 %v2396
          %v2500 = vunpack.c.h.b16 %v2396
          %v2501 = vunpack.c.l.b16 %v2397
          %v2502 = vunpack.c.h.b16 %v2397
          %v2503 = vunpack.c.l.b16 %v2398
          %v2504 = vunpack.c.h.b16 %v2398
          %v2505 = vunpack.c.l.b16 %v2399
          %v2506 = vunpack.c.h.b16 %v2399
          %v2507 = vunpack.c.l.b16 %v2400
          %v2508 = vunpack.c.h.b16 %v2400
          %v2509 = vunpack.c.l.b16 %v2401
          %v2510 = vunpack.c.h.b16 %v2401
          %v2511 = vunpack.c.l.b16 %v2402
          %v2512 = vunpack.c.h.b16 %v2402
          %v2513 = vunpack.c.l.b16 %v2403
          %v2514 = vunpack.c.h.b16 %v2403
          %v2515 = vunpack.c.l.b16 %v2404
          %v2516 = vunpack.c.h.b16 %v2404
          %v2517 = vunpack.c.l.b16 %v2405
          %v2518 = vunpack.c.h.b16 %v2405
          %v2519 = vunpack.c.l.b16 %v2406
          %v2520 = vunpack.c.h.b16 %v2406
          %v2521 = vunpack.c.l.b16 %v2407
          %v2522 = vunpack.c.h.b16 %v2407
          %v2523 = vunpack.c.l.b16 %v2408
          %v2524 = vunpack.c.h.b16 %v2408
          %v2525 = vunpack.c.l.b16 %v2409
          %v2526 = vunpack.c.h.b16 %v2409
          %v2527 = vunpack.c.l.b16 %v2410
          %v2528 = vunpack.c.h.b16 %v2410
          %v2529 = vpack.c.b16 %v2469, %v2465
          %v2530 = vpack.c.b16 %v2470, %v2466
          %v2531 = vpack.c.b16 %v2471, %v2467
          %v2532 = vpack.c.b16 %v2472, %v2468
          %v2533 = vpack.c.b16 %v2477, %v2473
          %v2534 = vpack.c.b16 %v2478, %v2474
          %v2535 = vpack.c.b16 %v2479, %v2475
          %v2536 = vpack.c.b16 %v2480, %v2476
          %v2537 = vpack.c.b16 %v2485, %v2481
          %v2538 = vpack.c.b16 %v2486, %v2482
          %v2539 = vpack.c.b16 %v2487, %v2483
          %v2540 = vpack.c.b16 %v2488, %v2484
          %v2541 = vpack.c.b16 %v2493, %v2489
          %v2542 = vpack.c.b16 %v2494, %v2490
          %v2543 = vpack.c.b16 %v2495, %v2491
          %v2544 = vpack.c.b16 %v2496, %v2492
          %v2545 = vpack.c.b16 %v2501, %v2497
          %v2546 = vpack.c.b16 %v2502, %v2498
          %v2547 = vpack.c.b16 %v2503, %v2499
          %v2548 = vpack.c.b16 %v2504, %v2500
          %v2549 = vpack.c.b16 %v2509, %v2505
          %v2550 = vpack.c.b16 %v2510, %v2506
          %v2551 = vpack.c.b16 %v2511, %v2507
          %v2552 = vpack.c.b16 %v2512, %v2508
          %v2553 = vpack.c.b16 %v2517, %v2513
          %v2554 = vpack.c.b16 %v2518, %v2514
          %v2555 = vpack.c.b16 %v2519, %v2515
          %v2556 = vpack.c.b16 %v2520, %v2516
          %v2557 = vpack.c.b16 %v2525, %v2521
          %v2558 = vpack.c.b16 %v2526, %v2522
          %v2559 = vpack.c.b16 %v2527, %v2523
          %v2560 = vpack.c.b16 %v2528, %v2524
          %2593 = vmatprep.subr.bf16.mxu0 %v2558
          %2594 = vmatpush1.bf16.msra.mxu0 %v2557
          %2595 = vmatprep.subr.bf16.mxu0 %v2554
          %2596 = vmatpush1.bf16.msra.mxu0 %v2553
          %2597 = vmatprep.subr.bf16.mxu0 %v2550
          %2598 = vmatpush1.bf16.msra.mxu0 %v2549
          %2599 = vmatprep.subr.bf16.mxu0 %v2546
          %2600 = vmatpush1.bf16.msra.mxu0 %v2545
          %2601 = vmatprep.subr.bf16.mxu0 %v2542
          %2602 = vmatpush1.bf16.msra.mxu0 %v2541
          %2603 = vmatprep.subr.bf16.mxu0 %v2538
          %2604 = vmatpush1.bf16.msra.mxu0 %v2537
          %2605 = vmatprep.subr.bf16.mxu0 %v2534
          %2606 = vmatpush1.bf16.msra.mxu0 %v2533
          %2607 = vmatprep.subr.bf16.mxu0 %v2530
          %2608 = vmatpush1.bf16.msra.mxu0 %v2529
          %2609 = vmatprep.subr.bf16.mxu0 0
          %2610 = vmatpush2.bf16.msra.mxu0 0
          %2611 = vmatprep.subr.bf16.mxu0 0
          %2612 = vmatpush2.bf16.msra.mxu0 0
          %2613 = vmatprep.subr.bf16.mxu0 0
          %2614 = vmatpush2.bf16.msra.mxu0 0
          %2615 = vmatprep.subr.bf16.mxu0 0
          %2616 = vmatpush2.bf16.msra.mxu0 0
          %2617 = vmatprep.subr.bf16.mxu0 0
          %2618 = vmatpush2.bf16.msra.mxu0 0
          %2619 = vmatprep.subr.bf16.mxu0 0
          %2620 = vmatpush2.bf16.msra.mxu0 0
          %2621 = vmatprep.subr.bf16.mxu0 0
          %2622 = vmatpush2.bf16.msra.mxu0 0
          %2623 = vmatprep.subr.bf16.mxu0 0
          %2624 = vmatpush2.bf16.msra.mxu0 0
          %2625 = vmatprep.mubr.bf16.mxu0 0
          %2626 = vmatmul.mubr.bf16.gmra.mxu0 %v2378
          %v2627 = vpop.f32.mrf.mxu0
          %v2628 = vadd.f32 %v2416, %v2627
          %v2629 = vpop.f32.mrf.mxu0
          %v2630 = vadd.f32 %v2420, %v2629
          %v2631 = vpop.f32.mrf.mxu0
          %v2632 = vpop.f32.mrf.mxu0
          %2633 = vdwg.mxu0
          %2634 = vmatprep.subr.bf16.mxu0 %v2560
          %2635 = vmatpush1.bf16.msra.mxu0 %v2559
          %2636 = vmatprep.subr.bf16.mxu0 %v2556
          %2637 = vmatpush1.bf16.msra.mxu0 %v2555
          %2638 = vmatprep.subr.bf16.mxu0 %v2552
          %2639 = vmatpush1.bf16.msra.mxu0 %v2551
          %2640 = vmatprep.subr.bf16.mxu0 %v2548
          %2641 = vmatpush1.bf16.msra.mxu0 %v2547
          %2642 = vmatprep.subr.bf16.mxu0 %v2544
          %2643 = vmatpush1.bf16.msra.mxu0 %v2543
          %2644 = vmatprep.subr.bf16.mxu0 %v2540
          %2645 = vmatpush1.bf16.msra.mxu0 %v2539
          %2646 = vmatprep.subr.bf16.mxu0 %v2536
          %2647 = vmatpush1.bf16.msra.mxu0 %v2535
          %2648 = vmatprep.subr.bf16.mxu0 %v2532
          %2649 = vmatpush1.bf16.msra.mxu0 %v2531
          %2650 = vmatprep.subr.bf16.mxu0 0
          %2651 = vmatpush2.bf16.msra.mxu0 0
          %2652 = vmatprep.subr.bf16.mxu0 0
          %2653 = vmatpush2.bf16.msra.mxu0 0
          %2654 = vmatprep.subr.bf16.mxu0 0
          %2655 = vmatpush2.bf16.msra.mxu0 0
          %2656 = vmatprep.subr.bf16.mxu0 0
          %2657 = vmatpush2.bf16.msra.mxu0 0
          %2658 = vmatprep.subr.bf16.mxu0 0
          %2659 = vmatpush2.bf16.msra.mxu0 0
          %2660 = vmatprep.subr.bf16.mxu0 0
          %2661 = vmatpush2.bf16.msra.mxu0 0
          %2662 = vmatprep.subr.bf16.mxu0 0
          %2663 = vmatpush2.bf16.msra.mxu0 0
          %2664 = vmatprep.subr.bf16.mxu0 0
          %2665 = vmatpush2.bf16.msra.mxu0 0
          %2666 = vmatprep.mubr.bf16.mxu0 0
          %2667 = vmatmul.mubr.bf16.gmra.mxu0 %v2378
          %v2668 = vpop.f32.mrf.mxu0
          %v2669 = vadd.f32 %v2424, %v2668
          %v2670 = vpop.f32.mrf.mxu0
          %v2671 = vadd.f32 %v2428, %v2670
          %v2672 = vpop.f32.mrf.mxu0
          %v2673 = vpop.f32.mrf.mxu0
          %2674 = vdwg.mxu0
          %v2679 = vcombine.low %v2628, %v2630
          %v2680 = vcombine.low %v2669, %v2671
          %v2682 = vunpack.c.l.s4 1983009808
          %v2683 = vunpack.c.0.s8 %v2682
          %v2684 = vlaneseq
          %v2685 = vshrl.u32 %v2684, 7
          %v2686 = vsub.s32 %v2683, %v2685
          %v2687 = vrot.slane %v2679, %v2686
          %v2689 = vunpack.c.l.s4 1983009808
          %v2690 = vunpack.c.0.s8 %v2689
          %v2691 = vlaneseq
          %v2692 = vshrl.u32 %v2691, 7
          %v2693 = vsub.s32 %v2690, %v2692
          %v2694 = vrot.slane %v2680, %v2693
          %v2695 = vcombine.low %v2687, %v2694
          %2697 = vst [vmem:[#allocation9] sm:$0xff] %v2695
        $region88: #{fine_tuning_bert_forward.1} parent=67 // pred_fallthru
          _
        // Predicated region
        $region89: #{fine_tuning_bert_forward.1} parent=67 // pred_check
          %p2698 = pneg %p330
        $region90: #{fine_tuning_bert_forward.1} parent=67 // pred_check_branch
          %2700 = sbr.rel (%p2698) target = $region92
        $region91: #{fine_tuning_bert_forward.1} parent=67 // pred_region
          %s2702 = ssub.s32 128, 128
          %2703 = vsyncadd [#allocation5], %s2702
          %s2705 = sshll.u32 [#allocation9], 4
          %s2706 = int_to_ptr.vmem [resolvable:$true] %s2705
          %2708 = dma.vmem_to_hbm [thread:$0]  %s2706, 128, %s12, [#allocation5]
        $region92: #{fine_tuning_bert_forward.1} parent=67 // pred_fallthru
          _
        // Predicated region
        $region93: #{fine_tuning_bert_forward.1} parent=67 // pred_check
          %p2709 = pneg %p330
        $region94: #{fine_tuning_bert_forward.1} parent=67 // pred_check_branch
          %2711 = sbr.rel (%p2709) target = $region96
        $region95: #{fine_tuning_bert_forward.1} parent=67 // pred_region
          %2712 = dma.done [#allocation5], 128
        $region96: #{fine_tuning_bert_forward.1} parent=67 // pred_fallthru
          _
      $region68: #{fine_tuning_bert_forward.1} parent=5 // pred_fallthru
        _
      %p2713 = scmp.le.s32.totalorder 2, %s25
      // Predicated region
      $region97: #{fine_tuning_bert_forward.1} parent=5 // pred_check
        %p2714 = pneg %p2713
      $region98: #{fine_tuning_bert_forward.1} parent=5 // pred_check_branch
        %2716 = sbr.rel (%p2714) target = $region100
      $region99: #{fine_tuning_bert_forward.1} parent=5 // pred_region
        %s2717 = ssub.s32 %s25, 2
      $region100: #{fine_tuning_bert_forward.1} parent=5 // pred_fallthru
        _
    $region6: #{fine_tuning_bert_forward.1} parent=1 // loop_footer
      %s29 = sadd.s32 1, %s25
    $region7: #{fine_tuning_bert_forward.1} parent=1 // loop_footer_branch
      %24 = sbr.rel target = $region3
    $region8: #{fine_tuning_bert_forward.1} parent=1 // loop_exit
      _
    %2718 = vsyncpa [#allocation4], 1
    %s2719 = scalar_lea.sflag [#allocation4], 1
    %2720 = vsyncpa %s2719, 1
    %2721 = vsyncpa [#allocation7], 1
    %s2722 = scalar_lea.sflag [#allocation7], 1
    %2723 = vsyncpa %s2722, 1
    %2724 = vsyncpa [#allocation5], 1
    %s2725 = scalar_lea.sflag [#allocation5], 1
    %2726 = vsyncpa %s2725, 1

</llo_original>
